<compile_context>
chip_gen: v5e
topology: v5e:2x2
jax: 0.10.0
libtpu: 0.0.40
codegen_flags: <defaults>
</compile_context>

<pallas_src>
import functools

import jax
import jax.numpy as jnp
from jax.experimental import pallas as pl
from jax.experimental.pallas import tpu as pltpu

_BN_EPS = 1e-5
_SEG = 128                    # lane width of one feature segment (one vreg lane group)
_MXU_DTYPE = jnp.bfloat16     # HBM/VMEM storage dtype for weights + feature scratch
_FEAT_DTYPE = _MXU_DTYPE      # feature scratch dtype (matmul accumulates in f32)


# ---------------------------------------------------------------------------
# Fused Pallas kernel: full OFENet forward
# ---------------------------------------------------------------------------
def _ofenet_fused_kernel(state_ref, action_ref, w_ref, bgb_ref, pw_ref, pb_ref,
                         out_ref, feat_ref, *, S, A, L, H, B):
    def store_segment(seg, val, width):
        # One aligned segment store + (if needed) one pad-lane zero store.  Every
        # segment is written exactly once, so this also replaces the old
        # full-scratch zero pass.
        off = seg * _SEG
        feat_ref[:, off:off + width] = val.astype(_FEAT_DTYPE)
        if width < _SEG:
            feat_ref[:, off + width:off + _SEG] = jnp.zeros(
                (B, _SEG - width), _FEAT_DTYPE)

    # "concat" = column-segment stores into the persistent VMEM feature scratch.
    store_segment(0, state_ref[...], S)           # segment 0      : state
    store_segment(L + 1, action_ref[...], A)      # segment L + 1  : action

    row_off = 0
    for j in range(2 * L):                        # 2L DenseNet blocks, unrolled
        # Prefix-K slicing: block j reads segments 0..n_in-1 and writes segment n_in.
        n_in = (j + 1) if j < L else (j + 2)
        K = n_in * _SEG                           # static per unrolled j

        x = feat_ref[:, 0:K]                      # (B, K)  bf16
        w = w_ref[row_off:row_off + K, :]         # (K, H)  bf16, no zero rows DMA'd
        b = bgb_ref[j, 0]                         # (1, H)  f32
        gamma = bgb_ref[j, 1]                     # (1, H)  f32
        beta = bgb_ref[j, 2]                      # (1, H)  f32

        z = jnp.dot(x, w, preferred_element_type=jnp.float32) + b

        # BatchNorm1d (training mode, biased batch statistics over the batch dim),
        # gamma folded into the rsqrt scale; all math in f32.
        mean = jnp.mean(z, axis=0, keepdims=True)
        d = z - mean
        var = jnp.mean(d * d, axis=0, keepdims=True)
        y = d * (gamma * jax.lax.rsqrt(var + _BN_EPS)) + beta

        # SiLU via a single EUP op: sigmoid(y) = 0.5*tanh(0.5*y) + 0.5
        h = y * (0.5 * jnp.tanh(0.5 * y) + 0.5)

        store_segment(n_in, h, H)                 # DenseNet concat
        row_off += K

    # pred_layer: plain Linear over the full VMEM-resident feature vector (its
    # weight rows at padding lanes are zero, and padding lanes hold exact zeros).
    out_ref[...] = (
        jnp.dot(feat_ref[...], pw_ref[...], preferred_element_type=jnp.float32)
        + pb_ref[...]
    )


_VMEM_SPEC = pl.BlockSpec(memory_space=pltpu.MemorySpace.VMEM)


@jax.jit
def ofenet_forward(packed, state, action):
    """Fused OFENet forward. `packed` comes from pack_ofenet_params()."""
    state = state.astype(jnp.float32)
    action = action.astype(jnp.float32)
    B, S = state.shape
    A = action.shape[1]

    bgb = packed["bgb_stack"]                     # (2L, 3, 1, H) f32
    twoL, _, _, H = bgb.shape
    L = twoL // 2
    w_cat = packed["w_cat"]                       # (K_total, H)  bf16, ragged concat
    pred_w = packed["pred_w"]                     # (F_pad, T)    bf16
    pred_b = packed["pred_b"]                     # (1, T)        f32
    F_pad, T = pred_w.shape

    k_list = [((j + 1) if j < L else (j + 2)) * _SEG for j in range(twoL)]
    assert w_cat.shape[0] == sum(k_list)
    assert F_pad == (twoL + 2) * _SEG

    kernel = functools.partial(_ofenet_fused_kernel, S=S, A=A, L=L, H=H, B=B)

    # Cost estimate over the ACTIVE contraction widths (prefix-K), not F_pad.
    flops = 2 * B * H * sum(k_list) + 2 * B * F_pad * T
    transcendentals = twoL * B * H                # one tanh per element per block

    def _nbytes(x):
        return x.size * jnp.dtype(x.dtype).itemsize

    io_bytes = (_nbytes(state) + _nbytes(action) + _nbytes(w_cat) + _nbytes(bgb)
                + _nbytes(pred_w) + _nbytes(pred_b) + B * T * 4)
    scratch_bytes = B * F_pad * jnp.dtype(_FEAT_DTYPE).itemsize
    # Explicit VMEM budget (v7x only has 64 MiB physical VMEM; leave headroom).
    vmem_limit = int(min(48 << 20,
                         max(16 << 20, 2 * (io_bytes + scratch_bytes) + (4 << 20))))

    # NOTE: BatchNorm batch statistics are computed over the whole batch inside one
    # invocation on one TensorCore.  Any batch tiling over a grid (or across v7x's
    # two cores) requires a global stats reduction first — do not just add a grid.
    return pl.pallas_call(
        kernel,
        out_shape=jax.ShapeDtypeStruct((B, T), jnp.float32),
        in_specs=[_VMEM_SPEC] * 6,
        out_specs=_VMEM_SPEC,
        scratch_shapes=[pltpu.VMEM((B, F_pad), _FEAT_DTYPE)],
        compiler_params=pltpu.CompilerParams(vmem_limit_bytes=vmem_limit),
        cost_estimate=pl.CostEstimate(flops=flops,
                                      transcendentals=transcendentals,
                                      bytes_accessed=io_bytes),
    )(state, action, w_cat, bgb, pred_w, pred_b)


# ---------------------------------------------------------------------------
# Parameter construction (deterministic, mimics PyTorch defaults)
# ---------------------------------------------------------------------------
def _init_linear(key, fan_in, fan_out):
    kw, kb = jax.random.split(key)
    bound = 1.0 / jnp.sqrt(float(fan_in))
    w = jax.random.uniform(kw, (fan_in, fan_out), jnp.float32, -bound, bound)
    b = jax.random.uniform(kb, (fan_out,), jnp.float32, -bound, bound)
    return w, b


def init_ofenet_params(key, state_size, action_size, target_dim,
                       num_layer=4, hidden_size=40):
    params = {"state_blocks": [], "action_blocks": []}
    keys = jax.random.split(key, 2 * num_layer + 1)

    for i in range(num_layer):
        din = state_size + i * hidden_size
        w, b = _init_linear(keys[i], din, hidden_size)
        params["state_blocks"].append(
            dict(w=w, b=b,
                 gamma=jnp.ones((hidden_size,), jnp.float32),   # BN default init
                 beta=jnp.zeros((hidden_size,), jnp.float32)))

    encode_state_out = state_size + num_layer * hidden_size
    action_block_input = encode_state_out + action_size
    for i in range(num_layer):
        din = action_block_input + i * hidden_size
        w, b = _init_linear(keys[num_layer + i], din, hidden_size)
        params["action_blocks"].append(
            dict(w=w, b=b,
                 gamma=jnp.ones((hidden_size,), jnp.float32),
                 beta=jnp.zeros((hidden_size,), jnp.float32)))

    pred_in = state_size + 2 * num_layer * hidden_size + action_size
    pw, pb = _init_linear(keys[-1], pred_in, target_dim)
    params["pred"] = dict(w=pw, b=pb)
    return params


def pack_ofenet_params(params, state_size, action_size, num_layer, hidden_size):
    """Scatter every Linear weight into the 128-lane segmented feature layout used
    by the fused kernel.  Block weights are prefix-K sliced and concatenated into a
    single ragged (K_total, H) bf16 array (no zero rows stored), per-block vectors
    are stacked, and the pred weight is zero-scattered to the full padded layout."""
    S, A, L, H = state_size, action_size, num_layer, hidden_size
    assert S <= _SEG and A <= _SEG and H <= _SEG, "segment layout assumes dims <= 128"
    widths = [S] + [H] * L + [A] + [H] * L      # active width of each segment
    n_seg = len(widths)                         # 2L + 2
    F_pad = n_seg * _SEG

    blocks = params["state_blocks"] + params["action_blocks"]
    w_parts, bgb_parts = [], []
    for j, blk in enumerate(blocks):
        n_in = (j + 1) if j < L else (j + 2)    # prefix of segments feeding block j
        w = blk["w"]                            # (Din, H) in concat order
        w_pad = jnp.zeros((n_in * _SEG, H), jnp.float32)
        r0 = 0
        for k in range(n_in):
            wk = widths[k]
            w_pad = w_pad.at[k * _SEG:k * _SEG + wk, :].set(w[r0:r0 + wk, :])
            r0 += wk
        assert r0 == w.shape[0]
        w_parts.append(w_pad)
        bgb_parts.append(
            jnp.stack([blk["b"], blk["gamma"], blk["beta"]], axis=0)[:, None, :])

    pw = params["pred"]["w"]
    T = pw.shape[1]
    pw_pad = jnp.zeros((F_pad, T), jnp.float32)
    r0 = 0
    for k in range(n_seg):
        wk = widths[k]
        pw_pad = pw_pad.at[k * _SEG:k * _SEG + wk, :].set(pw[r0:r0 + wk, :])
        r0 += wk
    assert r0 == pw.shape[0]

    return dict(
        w_cat=jnp.concatenate(w_parts, axis=0).astype(_MXU_DTYPE),    # (K_total, H)
        bgb_stack=jnp.stack(bgb_parts, axis=0),                       # (2L, 3, 1, H)
        pred_w=pw_pad.astype(_MXU_DTYPE),                             # (F_pad, T)
        pred_b=params["pred"]["b"].reshape(1, T).astype(jnp.float32), # (1, T)
    )


# ---------------------------------------------------------------------------
# Pure-JAX f32 reference (mirrors the PyTorch module, training-mode BN)
# ---------------------------------------------------------------------------
def ofenet_reference(params, state, action):
    def block(x, blk):
        z = x @ blk["w"] + blk["b"]
        mean = jnp.mean(z, axis=0, keepdims=True)
        var = jnp.mean((z - mean) ** 2, axis=0, keepdims=True)
        y = (z - mean) * jax.lax.rsqrt(var + _BN_EPS) * blk["gamma"] + blk["beta"]
        return jnp.concatenate([x, y * jax.nn.sigmoid(y)], axis=1)

    f = state.astype(jnp.float32)
    for blk in params["state_blocks"]:
        f = block(f, blk)
    f = jnp.concatenate([f, action.astype(jnp.float32)], axis=1)
    for blk in params["action_blocks"]:
        f = block(f, blk)
    return f @ params["pred"]["w"] + params["pred"]["b"]


# ---------------------------------------------------------------------------
if __name__ == "__main__":
    # Small, module-consistent shapes.  BATCH is a multiple of 16 so the bf16
    # feature scratch packs full sublanes.
    BATCH = 16
    STATE_SIZE = 8
    ACTION_SIZE = 4
    TARGET_DIM = 8
    NUM_LAYER = 4
    HIDDEN = 16

    root = jax.random.PRNGKey(0)
    k_params, k_state, k_action = jax.random.split(root, 3)

    params = init_ofenet_params(k_params, STATE_SIZE, ACTION_SIZE, TARGET_DIM,
                                num_layer=NUM_LAYER, hidden_size=HIDDEN)
    packed = pack_ofenet_params(params, STATE_SIZE, ACTION_SIZE, NUM_LAYER, HIDDEN)

    state = jax.random.normal(k_state, (BATCH, STATE_SIZE), jnp.float32)
    action = jax.random.normal(k_action, (BATCH, ACTION_SIZE), jnp.float32)

    pred = ofenet_forward(packed, state, action)
    jax.block_until_ready(pred)

    assert pred.shape == (BATCH, TARGET_DIM), (pred.shape, (BATCH, TARGET_DIM))
    assert bool(jnp.all(jnp.isfinite(pred)))

    ref = ofenet_reference(params, state, action)
    max_err = float(jnp.max(jnp.abs(pred - ref)))
    # Reference is pure f32; the kernel stores features/weights in bf16 (f32
    # accumulation + f32 BN/SiLU), so allow bf16-level end-to-end error.
    assert max_err < 1e-1, f"mismatch vs reference: max abs err = {max_err}"

    print("KERNEL_OK")
</pallas_src>

<mosaic_0001>
module attributes {stable_mosaic.version = 11 : i64} {
  func.func @_ofenet_fused_kernel(%arg0: memref<16x8xf32, #tpu.memory_space<vmem>>, %arg1: memref<16x4xf32, #tpu.memory_space<vmem>>, %arg2: memref<5120x16xbf16, #tpu.memory_space<vmem>>, %arg3: memref<8x3x1x16xf32, #tpu.memory_space<vmem>>, %arg4: memref<1280x8xbf16, #tpu.memory_space<vmem>>, %arg5: memref<1x8xf32, #tpu.memory_space<vmem>>, %arg6: memref<16x8xf32, #tpu.memory_space<vmem>>, %arg7: memref<16x1280xbf16, #tpu.memory_space<vmem>>) attributes {dimension_semantics = [], scalar_prefetch = 0 : i64, scratch_operands = 1 : i64, tpu.core_type = #tpu.core_type<tc>} {
    %c0 = arith.constant 0 : index
    %c0_0 = arith.constant 0 : index
    %0 = vector.load %arg0[%c0, %c0_0] : memref<16x8xf32, #tpu.memory_space<vmem>>, vector<16x8xf32>
    %1 = arith.truncf %0 : vector<16x8xf32> to vector<16x8xbf16>
    %c0_1 = arith.constant 0 : index
    %c0_2 = arith.constant 0 : index
    %2 = vector.load %arg7[%c0_1, %c0_2] : memref<16x1280xbf16, #tpu.memory_space<vmem>>, vector<16x8xbf16>
    tpu.vector_store %arg7[%c0_1, %c0_2], %1 {strides = array<i32>} : memref<16x1280xbf16, #tpu.memory_space<vmem>>, vector<16x8xbf16>,
    %cst = arith.constant 0.000000e+00 : bf16
    %3 = vector.broadcast %cst : bf16 to vector<16x120xbf16>
    %c0_3 = arith.constant 0 : index
    %c8 = arith.constant 8 : index
    %4 = vector.load %arg7[%c0_3, %c8] : memref<16x1280xbf16, #tpu.memory_space<vmem>>, vector<16x120xbf16>
    tpu.vector_store %arg7[%c0_3, %c8], %3 {strides = array<i32>} : memref<16x1280xbf16, #tpu.memory_space<vmem>>, vector<16x120xbf16>,
    %c0_4 = arith.constant 0 : index
    %c0_5 = arith.constant 0 : index
    %5 = vector.load %arg1[%c0_4, %c0_5] : memref<16x4xf32, #tpu.memory_space<vmem>>, vector<16x4xf32>
    %6 = arith.truncf %5 : vector<16x4xf32> to vector<16x4xbf16>
    %c0_6 = arith.constant 0 : index
    %c640 = arith.constant 640 : index
    %7 = vector.load %arg7[%c0_6, %c640] : memref<16x1280xbf16, #tpu.memory_space<vmem>>, vector<16x4xbf16>
    tpu.vector_store %arg7[%c0_6, %c640], %6 {strides = array<i32>} : memref<16x1280xbf16, #tpu.memory_space<vmem>>, vector<16x4xbf16>,
    %cst_7 = arith.constant 0.000000e+00 : bf16
    %8 = vector.broadcast %cst_7 : bf16 to vector<16x124xbf16>
    %c0_8 = arith.constant 0 : index
    %c644 = arith.constant 644 : index
    %9 = vector.load %arg7[%c0_8, %c644] : memref<16x1280xbf16, #tpu.memory_space<vmem>>, vector<16x124xbf16>
    tpu.vector_store %arg7[%c0_8, %c644], %8 {strides = array<i32>} : memref<16x1280xbf16, #tpu.memory_space<vmem>>, vector<16x124xbf16>,
    %c0_9 = arith.constant 0 : index
    %c0_10 = arith.constant 0 : index
    %10 = vector.load %arg7[%c0_9, %c0_10] : memref<16x1280xbf16, #tpu.memory_space<vmem>>, vector<16x128xbf16>
    %c0_11 = arith.constant 0 : index
    %c0_12 = arith.constant 0 : index
    %11 = vector.load %arg2[%c0_11, %c0_12] : memref<5120x16xbf16, #tpu.memory_space<vmem>>, vector<128x16xbf16>
    %c0_13 = arith.constant 0 : index
    %c0_14 = arith.constant 0 : index
    %c0_15 = arith.constant 0 : index
    %c0_16 = arith.constant 0 : index
    %12 = vector.load %arg3[%c0_13, %c0_14, %c0_15, %c0_16] : memref<8x3x1x16xf32, #tpu.memory_space<vmem>>, vector<1x1x1x16xf32>
    %13 = vector.shape_cast %12 : vector<1x1x1x16xf32> to vector<1x16xf32>
    %c0_17 = arith.constant 0 : index
    %c1 = arith.constant 1 : index
    %c0_18 = arith.constant 0 : index
    %c0_19 = arith.constant 0 : index
    %14 = vector.load %arg3[%c0_17, %c1, %c0_18, %c0_19] : memref<8x3x1x16xf32, #tpu.memory_space<vmem>>, vector<1x1x1x16xf32>
    %15 = vector.shape_cast %14 : vector<1x1x1x16xf32> to vector<1x16xf32>
    %c0_20 = arith.constant 0 : index
    %c2 = arith.constant 2 : index
    %c0_21 = arith.constant 0 : index
    %c0_22 = arith.constant 0 : index
    %16 = vector.load %arg3[%c0_20, %c2, %c0_21, %c0_22] : memref<8x3x1x16xf32, #tpu.memory_space<vmem>>, vector<1x1x1x16xf32>
    %17 = vector.shape_cast %16 : vector<1x1x1x16xf32> to vector<1x16xf32>
    %cst_23 = arith.constant dense<0.000000e+00> : vector<16x16xf32>
    %18 = tpu.matmul %10, %11, %cst_23 {dimension_numbers = #tpu.dot_dimension_numbers<[1], [0], [0], [1], [0, 0, 1, 1], [], []>} : vector<16x128xbf16>, vector<128x16xbf16>, vector<16x16xf32> -> vector<16x16xf32>
    %19 = vector.broadcast %13 : vector<1x16xf32> to vector<16x16xf32>
    %20 = arith.addf %18, %19 : vector<16x16xf32>
    %cst_24 = arith.constant dense<0.000000e+00> : vector<16xf32>
    %21 = vector.multi_reduction <add>, %20, %cst_24 [0] : vector<16x16xf32> to vector<16xf32>
    %22 = vector.shape_cast %21 : vector<16xf32> to vector<1x16xf32>
    %cst_25 = arith.constant 1.600000e+01 : f32
    %23 = vector.broadcast %cst_25 : f32 to vector<1x16xf32>
    %24 = arith.divf %22, %23 : vector<1x16xf32>
    %25 = vector.broadcast %24 : vector<1x16xf32> to vector<16x16xf32>
    %26 = arith.subf %20, %25 : vector<16x16xf32>
    %27 = arith.mulf %26, %26 : vector<16x16xf32>
    %cst_26 = arith.constant dense<0.000000e+00> : vector<16xf32>
    %28 = vector.multi_reduction <add>, %27, %cst_26 [0] : vector<16x16xf32> to vector<16xf32>
    %29 = vector.shape_cast %28 : vector<16xf32> to vector<1x16xf32>
    %cst_27 = arith.constant 1.600000e+01 : f32
    %30 = vector.broadcast %cst_27 : f32 to vector<1x16xf32>
    %31 = arith.divf %29, %30 : vector<1x16xf32>
    %cst_28 = arith.constant 9.99999974E-6 : f32
    %32 = vector.broadcast %cst_28 : f32 to vector<1x16xf32>
    %33 = arith.addf %31, %32 : vector<1x16xf32>
    %34 = math.rsqrt %33 : vector<1x16xf32>
    %35 = arith.mulf %15, %34 : vector<1x16xf32>
    %36 = vector.broadcast %35 : vector<1x16xf32> to vector<16x16xf32>
    %37 = arith.mulf %26, %36 : vector<16x16xf32>
    %38 = vector.broadcast %17 : vector<1x16xf32> to vector<16x16xf32>
    %39 = arith.addf %37, %38 : vector<16x16xf32>
    %cst_29 = arith.constant 5.000000e-01 : f32
    %40 = vector.broadcast %cst_29 : f32 to vector<16x16xf32>
    %41 = arith.mulf %40, %39 : vector<16x16xf32>
    %42 = math.tanh %41 : vector<16x16xf32>
    %cst_30 = arith.constant 5.000000e-01 : f32
    %43 = vector.broadcast %cst_30 : f32 to vector<16x16xf32>
    %44 = arith.mulf %43, %42 : vector<16x16xf32>
    %cst_31 = arith.constant 5.000000e-01 : f32
    %45 = vector.broadcast %cst_31 : f32 to vector<16x16xf32>
    %46 = arith.addf %44, %45 : vector<16x16xf32>
    %47 = arith.mulf %39, %46 : vector<16x16xf32>
    %48 = arith.truncf %47 : vector<16x16xf32> to vector<16x16xbf16>
    %c0_32 = arith.constant 0 : index
    %c128 = arith.constant 128 : index
    %49 = vector.load %arg7[%c0_32, %c128] : memref<16x1280xbf16, #tpu.memory_space<vmem>>, vector<16x16xbf16>
    tpu.vector_store %arg7[%c0_32, %c128], %48 {strides = array<i32>} : memref<16x1280xbf16, #tpu.memory_space<vmem>>, vector<16x16xbf16>,
    %cst_33 = arith.constant 0.000000e+00 : bf16
    %50 = vector.broadcast %cst_33 : bf16 to vector<16x112xbf16>
    %c0_34 = arith.constant 0 : index
    %c144 = arith.constant 144 : index
    %51 = vector.load %arg7[%c0_34, %c144] : memref<16x1280xbf16, #tpu.memory_space<vmem>>, vector<16x112xbf16>
    tpu.vector_store %arg7[%c0_34, %c144], %50 {strides = array<i32>} : memref<16x1280xbf16, #tpu.memory_space<vmem>>, vector<16x112xbf16>,
    %c0_35 = arith.constant 0 : index
    %c0_36 = arith.constant 0 : index
    %52 = vector.load %arg7[%c0_35, %c0_36] : memref<16x1280xbf16, #tpu.memory_space<vmem>>, vector<16x256xbf16>
    %c128_37 = arith.constant 128 : index
    %c0_38 = arith.constant 0 : index
    %53 = vector.load %arg2[%c128_37, %c0_38] : memref<5120x16xbf16, #tpu.memory_space<vmem>>, vector<256x16xbf16>
    %c1_39 = arith.constant 1 : index
    %c0_40 = arith.constant 0 : index
    %c0_41 = arith.constant 0 : index
    %c0_42 = arith.constant 0 : index
    %54 = vector.load %arg3[%c1_39, %c0_40, %c0_41, %c0_42] : memref<8x3x1x16xf32, #tpu.memory_space<vmem>>, vector<1x1x1x16xf32>
    %55 = vector.shape_cast %54 : vector<1x1x1x16xf32> to vector<1x16xf32>
    %c1_43 = arith.constant 1 : index
    %c1_44 = arith.constant 1 : index
    %c0_45 = arith.constant 0 : index
    %c0_46 = arith.constant 0 : index
    %56 = vector.load %arg3[%c1_43, %c1_44, %c0_45, %c0_46] : memref<8x3x1x16xf32, #tpu.memory_space<vmem>>, vector<1x1x1x16xf32>
    %57 = vector.shape_cast %56 : vector<1x1x1x16xf32> to vector<1x16xf32>
    %c1_47 = arith.constant 1 : index
    %c2_48 = arith.constant 2 : index
    %c0_49 = arith.constant 0 : index
    %c0_50 = arith.constant 0 : index
    %58 = vector.load %arg3[%c1_47, %c2_48, %c0_49, %c0_50] : memref<8x3x1x16xf32, #tpu.memory_space<vmem>>, vector<1x1x1x16xf32>
    %59 = vector.shape_cast %58 : vector<1x1x1x16xf32> to vector<1x16xf32>
    %cst_51 = arith.constant dense<0.000000e+00> : vector<16x16xf32>
    %60 = tpu.matmul %52, %53, %cst_51 {dimension_numbers = #tpu.dot_dimension_numbers<[1], [0], [0], [1], [0, 0, 1, 1], [], []>} : vector<16x256xbf16>, vector<256x16xbf16>, vector<16x16xf32> -> vector<16x16xf32>
    %61 = vector.broadcast %55 : vector<1x16xf32> to vector<16x16xf32>
    %62 = arith.addf %60, %61 : vector<16x16xf32>
    %cst_52 = arith.constant dense<0.000000e+00> : vector<16xf32>
    %63 = vector.multi_reduction <add>, %62, %cst_52 [0] : vector<16x16xf32> to vector<16xf32>
    %64 = vector.shape_cast %63 : vector<16xf32> to vector<1x16xf32>
    %cst_53 = arith.constant 1.600000e+01 : f32
    %65 = vector.broadcast %cst_53 : f32 to vector<1x16xf32>
    %66 = arith.divf %64, %65 : vector<1x16xf32>
    %67 = vector.broadcast %66 : vector<1x16xf32> to vector<16x16xf32>
    %68 = arith.subf %62, %67 : vector<16x16xf32>
    %69 = arith.mulf %68, %68 : vector<16x16xf32>
    %cst_54 = arith.constant dense<0.000000e+00> : vector<16xf32>
    %70 = vector.multi_reduction <add>, %69, %cst_54 [0] : vector<16x16xf32> to vector<16xf32>
    %71 = vector.shape_cast %70 : vector<16xf32> to vector<1x16xf32>
    %cst_55 = arith.constant 1.600000e+01 : f32
    %72 = vector.broadcast %cst_55 : f32 to vector<1x16xf32>
    %73 = arith.divf %71, %72 : vector<1x16xf32>
    %cst_56 = arith.constant 9.99999974E-6 : f32
    %74 = vector.broadcast %cst_56 : f32 to vector<1x16xf32>
    %75 = arith.addf %73, %74 : vector<1x16xf32>
    %76 = math.rsqrt %75 : vector<1x16xf32>
    %77 = arith.mulf %57, %76 : vector<1x16xf32>
    %78 = vector.broadcast %77 : vector<1x16xf32> to vector<16x16xf32>
    %79 = arith.mulf %68, %78 : vector<16x16xf32>
    %80 = vector.broadcast %59 : vector<1x16xf32> to vector<16x16xf32>
    %81 = arith.addf %79, %80 : vector<16x16xf32>
    %cst_57 = arith.constant 5.000000e-01 : f32
    %82 = vector.broadcast %cst_57 : f32 to vector<16x16xf32>
    %83 = arith.mulf %82, %81 : vector<16x16xf32>
    %84 = math.tanh %83 : vector<16x16xf32>
    %cst_58 = arith.constant 5.000000e-01 : f32
    %85 = vector.broadcast %cst_58 : f32 to vector<16x16xf32>
    %86 = arith.mulf %85, %84 : vector<16x16xf32>
    %cst_59 = arith.constant 5.000000e-01 : f32
    %87 = vector.broadcast %cst_59 : f32 to vector<16x16xf32>
    %88 = arith.addf %86, %87 : vector<16x16xf32>
    %89 = arith.mulf %81, %88 : vector<16x16xf32>
    %90 = arith.truncf %89 : vector<16x16xf32> to vector<16x16xbf16>
    %c0_60 = arith.constant 0 : index
    %c256 = arith.constant 256 : index
    %91 = vector.load %arg7[%c0_60, %c256] : memref<16x1280xbf16, #tpu.memory_space<vmem>>, vector<16x16xbf16>
    tpu.vector_store %arg7[%c0_60, %c256], %90 {strides = array<i32>} : memref<16x1280xbf16, #tpu.memory_space<vmem>>, vector<16x16xbf16>,
    %cst_61 = arith.constant 0.000000e+00 : bf16
    %92 = vector.broadcast %cst_61 : bf16 to vector<16x112xbf16>
    %c0_62 = arith.constant 0 : index
    %c272 = arith.constant 272 : index
    %93 = vector.load %arg7[%c0_62, %c272] : memref<16x1280xbf16, #tpu.memory_space<vmem>>, vector<16x112xbf16>
    tpu.vector_store %arg7[%c0_62, %c272], %92 {strides = array<i32>} : memref<16x1280xbf16, #tpu.memory_space<vmem>>, vector<16x112xbf16>,
    %c0_63 = arith.constant 0 : index
    %c0_64 = arith.constant 0 : index
    %94 = vector.load %arg7[%c0_63, %c0_64] : memref<16x1280xbf16, #tpu.memory_space<vmem>>, vector<16x384xbf16>
    %c384 = arith.constant 384 : index
    %c0_65 = arith.constant 0 : index
    %95 = vector.load %arg2[%c384, %c0_65] : memref<5120x16xbf16, #tpu.memory_space<vmem>>, vector<384x16xbf16>
    %c2_66 = arith.constant 2 : index
    %c0_67 = arith.constant 0 : index
    %c0_68 = arith.constant 0 : index
    %c0_69 = arith.constant 0 : index
    %96 = vector.load %arg3[%c2_66, %c0_67, %c0_68, %c0_69] : memref<8x3x1x16xf32, #tpu.memory_space<vmem>>, vector<1x1x1x16xf32>
    %97 = vector.shape_cast %96 : vector<1x1x1x16xf32> to vector<1x16xf32>
    %c2_70 = arith.constant 2 : index
    %c1_71 = arith.constant 1 : index
    %c0_72 = arith.constant 0 : index
    %c0_73 = arith.constant 0 : index
    %98 = vector.load %arg3[%c2_70, %c1_71, %c0_72, %c0_73] : memref<8x3x1x16xf32, #tpu.memory_space<vmem>>, vector<1x1x1x16xf32>
    %99 = vector.shape_cast %98 : vector<1x1x1x16xf32> to vector<1x16xf32>
    %c2_74 = arith.constant 2 : index
    %c2_75 = arith.constant 2 : index
    %c0_76 = arith.constant 0 : index
    %c0_77 = arith.constant 0 : index
    %100 = vector.load %arg3[%c2_74, %c2_75, %c0_76, %c0_77] : memref<8x3x1x16xf32, #tpu.memory_space<vmem>>, vector<1x1x1x16xf32>
    %101 = vector.shape_cast %100 : vector<1x1x1x16xf32> to vector<1x16xf32>
    %cst_78 = arith.constant dense<0.000000e+00> : vector<16x16xf32>
    %102 = tpu.matmul %94, %95, %cst_78 {dimension_numbers = #tpu.dot_dimension_numbers<[1], [0], [0], [1], [0, 0, 1, 1], [], []>} : vector<16x384xbf16>, vector<384x16xbf16>, vector<16x16xf32> -> vector<16x16xf32>
    %103 = vector.broadcast %97 : vector<1x16xf32> to vector<16x16xf32>
    %104 = arith.addf %102, %103 : vector<16x16xf32>
    %cst_79 = arith.constant dense<0.000000e+00> : vector<16xf32>
    %105 = vector.multi_reduction <add>, %104, %cst_79 [0] : vector<16x16xf32> to vector<16xf32>
    %106 = vector.shape_cast %105 : vector<16xf32> to vector<1x16xf32>
    %cst_80 = arith.constant 1.600000e+01 : f32
    %107 = vector.broadcast %cst_80 : f32 to vector<1x16xf32>
    %108 = arith.divf %106, %107 : vector<1x16xf32>
    %109 = vector.broadcast %108 : vector<1x16xf32> to vector<16x16xf32>
    %110 = arith.subf %104, %109 : vector<16x16xf32>
    %111 = arith.mulf %110, %110 : vector<16x16xf32>
    %cst_81 = arith.constant dense<0.000000e+00> : vector<16xf32>
    %112 = vector.multi_reduction <add>, %111, %cst_81 [0] : vector<16x16xf32> to vector<16xf32>
    %113 = vector.shape_cast %112 : vector<16xf32> to vector<1x16xf32>
    %cst_82 = arith.constant 1.600000e+01 : f32
    %114 = vector.broadcast %cst_82 : f32 to vector<1x16xf32>
    %115 = arith.divf %113, %114 : vector<1x16xf32>
    %cst_83 = arith.constant 9.99999974E-6 : f32
    %116 = vector.broadcast %cst_83 : f32 to vector<1x16xf32>
    %117 = arith.addf %115, %116 : vector<1x16xf32>
    %118 = math.rsqrt %117 : vector<1x16xf32>
    %119 = arith.mulf %99, %118 : vector<1x16xf32>
    %120 = vector.broadcast %119 : vector<1x16xf32> to vector<16x16xf32>
    %121 = arith.mulf %110, %120 : vector<16x16xf32>
    %122 = vector.broadcast %101 : vector<1x16xf32> to vector<16x16xf32>
    %123 = arith.addf %121, %122 : vector<16x16xf32>
    %cst_84 = arith.constant 5.000000e-01 : f32
    %124 = vector.broadcast %cst_84 : f32 to vector<16x16xf32>
    %125 = arith.mulf %124, %123 : vector<16x16xf32>
    %126 = math.tanh %125 : vector<16x16xf32>
    %cst_85 = arith.constant 5.000000e-01 : f32
    %127 = vector.broadcast %cst_85 : f32 to vector<16x16xf32>
    %128 = arith.mulf %127, %126 : vector<16x16xf32>
    %cst_86 = arith.constant 5.000000e-01 : f32
    %129 = vector.broadcast %cst_86 : f32 to vector<16x16xf32>
    %130 = arith.addf %128, %129 : vector<16x16xf32>
    %131 = arith.mulf %123, %130 : vector<16x16xf32>
    %132 = arith.truncf %131 : vector<16x16xf32> to vector<16x16xbf16>
    %c0_87 = arith.constant 0 : index
    %c384_88 = arith.constant 384 : index
    %133 = vector.load %arg7[%c0_87, %c384_88] : memref<16x1280xbf16, #tpu.memory_space<vmem>>, vector<16x16xbf16>
    tpu.vector_store %arg7[%c0_87, %c384_88], %132 {strides = array<i32>} : memref<16x1280xbf16, #tpu.memory_space<vmem>>, vector<16x16xbf16>,
    %cst_89 = arith.constant 0.000000e+00 : bf16
    %134 = vector.broadcast %cst_89 : bf16 to vector<16x112xbf16>
    %c0_90 = arith.constant 0 : index
    %c400 = arith.constant 400 : index
    %135 = vector.load %arg7[%c0_90, %c400] : memref<16x1280xbf16, #tpu.memory_space<vmem>>, vector<16x112xbf16>
    tpu.vector_store %arg7[%c0_90, %c400], %134 {strides = array<i32>} : memref<16x1280xbf16, #tpu.memory_space<vmem>>, vector<16x112xbf16>,
    %c0_91 = arith.constant 0 : index
    %c0_92 = arith.constant 0 : index
    %136 = vector.load %arg7[%c0_91, %c0_92] : memref<16x1280xbf16, #tpu.memory_space<vmem>>, vector<16x512xbf16>
    %c768 = arith.constant 768 : index
    %c0_93 = arith.constant 0 : index
    %137 = vector.load %arg2[%c768, %c0_93] : memref<5120x16xbf16, #tpu.memory_space<vmem>>, vector<512x16xbf16>
    %c3 = arith.constant 3 : index
    %c0_94 = arith.constant 0 : index
    %c0_95 = arith.constant 0 : index
    %c0_96 = arith.constant 0 : index
    %138 = vector.load %arg3[%c3, %c0_94, %c0_95, %c0_96] : memref<8x3x1x16xf32, #tpu.memory_space<vmem>>, vector<1x1x1x16xf32>
    %139 = vector.shape_cast %138 : vector<1x1x1x16xf32> to vector<1x16xf32>
    %c3_97 = arith.constant 3 : index
    %c1_98 = arith.constant 1 : index
    %c0_99 = arith.constant 0 : index
    %c0_100 = arith.constant 0 : index
    %140 = vector.load %arg3[%c3_97, %c1_98, %c0_99, %c0_100] : memref<8x3x1x16xf32, #tpu.memory_space<vmem>>, vector<1x1x1x16xf32>
    %141 = vector.shape_cast %140 : vector<1x1x1x16xf32> to vector<1x16xf32>
    %c3_101 = arith.constant 3 : index
    %c2_102 = arith.constant 2 : index
    %c0_103 = arith.constant 0 : index
    %c0_104 = arith.constant 0 : index
    %142 = vector.load %arg3[%c3_101, %c2_102, %c0_103, %c0_104] : memref<8x3x1x16xf32, #tpu.memory_space<vmem>>, vector<1x1x1x16xf32>
    %143 = vector.shape_cast %142 : vector<1x1x1x16xf32> to vector<1x16xf32>
    %cst_105 = arith.constant dense<0.000000e+00> : vector<16x16xf32>
    %144 = tpu.matmul %136, %137, %cst_105 {dimension_numbers = #tpu.dot_dimension_numbers<[1], [0], [0], [1], [0, 0, 1, 1], [], []>} : vector<16x512xbf16>, vector<512x16xbf16>, vector<16x16xf32> -> vector<16x16xf32>
    %145 = vector.broadcast %139 : vector<1x16xf32> to vector<16x16xf32>
    %146 = arith.addf %144, %145 : vector<16x16xf32>
    %cst_106 = arith.constant dense<0.000000e+00> : vector<16xf32>
    %147 = vector.multi_reduction <add>, %146, %cst_106 [0] : vector<16x16xf32> to vector<16xf32>
    %148 = vector.shape_cast %147 : vector<16xf32> to vector<1x16xf32>
    %cst_107 = arith.constant 1.600000e+01 : f32
    %149 = vector.broadcast %cst_107 : f32 to vector<1x16xf32>
    %150 = arith.divf %148, %149 : vector<1x16xf32>
    %151 = vector.broadcast %150 : vector<1x16xf32> to vector<16x16xf32>
    %152 = arith.subf %146, %151 : vector<16x16xf32>
    %153 = arith.mulf %152, %152 : vector<16x16xf32>
    %cst_108 = arith.constant dense<0.000000e+00> : vector<16xf32>
    %154 = vector.multi_reduction <add>, %153, %cst_108 [0] : vector<16x16xf32> to vector<16xf32>
    %155 = vector.shape_cast %154 : vector<16xf32> to vector<1x16xf32>
    %cst_109 = arith.constant 1.600000e+01 : f32
    %156 = vector.broadcast %cst_109 : f32 to vector<1x16xf32>
    %157 = arith.divf %155, %156 : vector<1x16xf32>
    %cst_110 = arith.constant 9.99999974E-6 : f32
    %158 = vector.broadcast %cst_110 : f32 to vector<1x16xf32>
    %159 = arith.addf %157, %158 : vector<1x16xf32>
    %160 = math.rsqrt %159 : vector<1x16xf32>
    %161 = arith.mulf %141, %160 : vector<1x16xf32>
    %162 = vector.broadcast %161 : vector<1x16xf32> to vector<16x16xf32>
    %163 = arith.mulf %152, %162 : vector<16x16xf32>
    %164 = vector.broadcast %143 : vector<1x16xf32> to vector<16x16xf32>
    %165 = arith.addf %163, %164 : vector<16x16xf32>
    %cst_111 = arith.constant 5.000000e-01 : f32
    %166 = vector.broadcast %cst_111 : f32 to vector<16x16xf32>
    %167 = arith.mulf %166, %165 : vector<16x16xf32>
    %168 = math.tanh %167 : vector<16x16xf32>
    %cst_112 = arith.constant 5.000000e-01 : f32
    %169 = vector.broadcast %cst_112 : f32 to vector<16x16xf32>
    %170 = arith.mulf %169, %168 : vector<16x16xf32>
    %cst_113 = arith.constant 5.000000e-01 : f32
    %171 = vector.broadcast %cst_113 : f32 to vector<16x16xf32>
    %172 = arith.addf %170, %171 : vector<16x16xf32>
    %173 = arith.mulf %165, %172 : vector<16x16xf32>
    %174 = arith.truncf %173 : vector<16x16xf32> to vector<16x16xbf16>
    %c0_114 = arith.constant 0 : index
    %c512 = arith.constant 512 : index
    %175 = vector.load %arg7[%c0_114, %c512] : memref<16x1280xbf16, #tpu.memory_space<vmem>>, vector<16x16xbf16>
    tpu.vector_store %arg7[%c0_114, %c512], %174 {strides = array<i32>} : memref<16x1280xbf16, #tpu.memory_space<vmem>>, vector<16x16xbf16>,
    %cst_115 = arith.constant 0.000000e+00 : bf16
    %176 = vector.broadcast %cst_115 : bf16 to vector<16x112xbf16>
    %c0_116 = arith.constant 0 : index
    %c528 = arith.constant 528 : index
    %177 = vector.load %arg7[%c0_116, %c528] : memref<16x1280xbf16, #tpu.memory_space<vmem>>, vector<16x112xbf16>
    tpu.vector_store %arg7[%c0_116, %c528], %176 {strides = array<i32>} : memref<16x1280xbf16, #tpu.memory_space<vmem>>, vector<16x112xbf16>,
    %c0_117 = arith.constant 0 : index
    %c0_118 = arith.constant 0 : index
    %178 = vector.load %arg7[%c0_117, %c0_118] : memref<16x1280xbf16, #tpu.memory_space<vmem>>, vector<16x768xbf16>
    %c1280 = arith.constant 1280 : index
    %c0_119 = arith.constant 0 : index
    %179 = vector.load %arg2[%c1280, %c0_119] : memref<5120x16xbf16, #tpu.memory_space<vmem>>, vector<768x16xbf16>
    %c4 = arith.constant 4 : index
    %c0_120 = arith.constant 0 : index
    %c0_121 = arith.constant 0 : index
    %c0_122 = arith.constant 0 : index
    %180 = vector.load %arg3[%c4, %c0_120, %c0_121, %c0_122] : memref<8x3x1x16xf32, #tpu.memory_space<vmem>>, vector<1x1x1x16xf32>
    %181 = vector.shape_cast %180 : vector<1x1x1x16xf32> to vector<1x16xf32>
    %c4_123 = arith.constant 4 : index
    %c1_124 = arith.constant 1 : index
    %c0_125 = arith.constant 0 : index
    %c0_126 = arith.constant 0 : index
    %182 = vector.load %arg3[%c4_123, %c1_124, %c0_125, %c0_126] : memref<8x3x1x16xf32, #tpu.memory_space<vmem>>, vector<1x1x1x16xf32>
    %183 = vector.shape_cast %182 : vector<1x1x1x16xf32> to vector<1x16xf32>
    %c4_127 = arith.constant 4 : index
    %c2_128 = arith.constant 2 : index
    %c0_129 = arith.constant 0 : index
    %c0_130 = arith.constant 0 : index
    %184 = vector.load %arg3[%c4_127, %c2_128, %c0_129, %c0_130] : memref<8x3x1x16xf32, #tpu.memory_space<vmem>>, vector<1x1x1x16xf32>
    %185 = vector.shape_cast %184 : vector<1x1x1x16xf32> to vector<1x16xf32>
    %cst_131 = arith.constant dense<0.000000e+00> : vector<16x16xf32>
    %186 = tpu.matmul %178, %179, %cst_131 {dimension_numbers = #tpu.dot_dimension_numbers<[1], [0], [0], [1], [0, 0, 1, 1], [], []>} : vector<16x768xbf16>, vector<768x16xbf16>, vector<16x16xf32> -> vector<16x16xf32>
    %187 = vector.broadcast %181 : vector<1x16xf32> to vector<16x16xf32>
    %188 = arith.addf %186, %187 : vector<16x16xf32>
    %cst_132 = arith.constant dense<0.000000e+00> : vector<16xf32>
    %189 = vector.multi_reduction <add>, %188, %cst_132 [0] : vector<16x16xf32> to vector<16xf32>
    %190 = vector.shape_cast %189 : vector<16xf32> to vector<1x16xf32>
    %cst_133 = arith.constant 1.600000e+01 : f32
    %191 = vector.broadcast %cst_133 : f32 to vector<1x16xf32>
    %192 = arith.divf %190, %191 : vector<1x16xf32>
    %193 = vector.broadcast %192 : vector<1x16xf32> to vector<16x16xf32>
    %194 = arith.subf %188, %193 : vector<16x16xf32>
    %195 = arith.mulf %194, %194 : vector<16x16xf32>
    %cst_134 = arith.constant dense<0.000000e+00> : vector<16xf32>
    %196 = vector.multi_reduction <add>, %195, %cst_134 [0] : vector<16x16xf32> to vector<16xf32>
    %197 = vector.shape_cast %196 : vector<16xf32> to vector<1x16xf32>
    %cst_135 = arith.constant 1.600000e+01 : f32
    %198 = vector.broadcast %cst_135 : f32 to vector<1x16xf32>
    %199 = arith.divf %197, %198 : vector<1x16xf32>
    %cst_136 = arith.constant 9.99999974E-6 : f32
    %200 = vector.broadcast %cst_136 : f32 to vector<1x16xf32>
    %201 = arith.addf %199, %200 : vector<1x16xf32>
    %202 = math.rsqrt %201 : vector<1x16xf32>
    %203 = arith.mulf %183, %202 : vector<1x16xf32>
    %204 = vector.broadcast %203 : vector<1x16xf32> to vector<16x16xf32>
    %205 = arith.mulf %194, %204 : vector<16x16xf32>
    %206 = vector.broadcast %185 : vector<1x16xf32> to vector<16x16xf32>
    %207 = arith.addf %205, %206 : vector<16x16xf32>
    %cst_137 = arith.constant 5.000000e-01 : f32
    %208 = vector.broadcast %cst_137 : f32 to vector<16x16xf32>
    %209 = arith.mulf %208, %207 : vector<16x16xf32>
    %210 = math.tanh %209 : vector<16x16xf32>
    %cst_138 = arith.constant 5.000000e-01 : f32
    %211 = vector.broadcast %cst_138 : f32 to vector<16x16xf32>
    %212 = arith.mulf %211, %210 : vector<16x16xf32>
    %cst_139 = arith.constant 5.000000e-01 : f32
    %213 = vector.broadcast %cst_139 : f32 to vector<16x16xf32>
    %214 = arith.addf %212, %213 : vector<16x16xf32>
    %215 = arith.mulf %207, %214 : vector<16x16xf32>
    %216 = arith.truncf %215 : vector<16x16xf32> to vector<16x16xbf16>
    %c0_140 = arith.constant 0 : index
    %c768_141 = arith.constant 768 : index
    %217 = vector.load %arg7[%c0_140, %c768_141] : memref<16x1280xbf16, #tpu.memory_space<vmem>>, vector<16x16xbf16>
    tpu.vector_store %arg7[%c0_140, %c768_141], %216 {strides = array<i32>} : memref<16x1280xbf16, #tpu.memory_space<vmem>>, vector<16x16xbf16>,
    %cst_142 = arith.constant 0.000000e+00 : bf16
    %218 = vector.broadcast %cst_142 : bf16 to vector<16x112xbf16>
    %c0_143 = arith.constant 0 : index
    %c784 = arith.constant 784 : index
    %219 = vector.load %arg7[%c0_143, %c784] : memref<16x1280xbf16, #tpu.memory_space<vmem>>, vector<16x112xbf16>
    tpu.vector_store %arg7[%c0_143, %c784], %218 {strides = array<i32>} : memref<16x1280xbf16, #tpu.memory_space<vmem>>, vector<16x112xbf16>,
    %c0_144 = arith.constant 0 : index
    %c0_145 = arith.constant 0 : index
    %220 = vector.load %arg7[%c0_144, %c0_145] : memref<16x1280xbf16, #tpu.memory_space<vmem>>, vector<16x896xbf16>
    %c2048 = arith.constant 2048 : index
    %c0_146 = arith.constant 0 : index
    %221 = vector.load %arg2[%c2048, %c0_146] : memref<5120x16xbf16, #tpu.memory_space<vmem>>, vector<896x16xbf16>
    %c5 = arith.constant 5 : index
    %c0_147 = arith.constant 0 : index
    %c0_148 = arith.constant 0 : index
    %c0_149 = arith.constant 0 : index
    %222 = vector.load %arg3[%c5, %c0_147, %c0_148, %c0_149] : memref<8x3x1x16xf32, #tpu.memory_space<vmem>>, vector<1x1x1x16xf32>
    %223 = vector.shape_cast %222 : vector<1x1x1x16xf32> to vector<1x16xf32>
    %c5_150 = arith.constant 5 : index
    %c1_151 = arith.constant 1 : index
    %c0_152 = arith.constant 0 : index
    %c0_153 = arith.constant 0 : index
    %224 = vector.load %arg3[%c5_150, %c1_151, %c0_152, %c0_153] : memref<8x3x1x16xf32, #tpu.memory_space<vmem>>, vector<1x1x1x16xf32>
    %225 = vector.shape_cast %224 : vector<1x1x1x16xf32> to vector<1x16xf32>
    %c5_154 = arith.constant 5 : index
    %c2_155 = arith.constant 2 : index
    %c0_156 = arith.constant 0 : index
    %c0_157 = arith.constant 0 : index
    %226 = vector.load %arg3[%c5_154, %c2_155, %c0_156, %c0_157] : memref<8x3x1x16xf32, #tpu.memory_space<vmem>>, vector<1x1x1x16xf32>
    %227 = vector.shape_cast %226 : vector<1x1x1x16xf32> to vector<1x16xf32>
    %cst_158 = arith.constant dense<0.000000e+00> : vector<16x16xf32>
    %228 = tpu.matmul %220, %221, %cst_158 {dimension_numbers = #tpu.dot_dimension_numbers<[1], [0], [0], [1], [0, 0, 1, 1], [], []>} : vector<16x896xbf16>, vector<896x16xbf16>, vector<16x16xf32> -> vector<16x16xf32>
    %229 = vector.broadcast %223 : vector<1x16xf32> to vector<16x16xf32>
    %230 = arith.addf %228, %229 : vector<16x16xf32>
    %cst_159 = arith.constant dense<0.000000e+00> : vector<16xf32>
    %231 = vector.multi_reduction <add>, %230, %cst_159 [0] : vector<16x16xf32> to vector<16xf32>
    %232 = vector.shape_cast %231 : vector<16xf32> to vector<1x16xf32>
    %cst_160 = arith.constant 1.600000e+01 : f32
    %233 = vector.broadcast %cst_160 : f32 to vector<1x16xf32>
    %234 = arith.divf %232, %233 : vector<1x16xf32>
    %235 = vector.broadcast %234 : vector<1x16xf32> to vector<16x16xf32>
    %236 = arith.subf %230, %235 : vector<16x16xf32>
    %237 = arith.mulf %236, %236 : vector<16x16xf32>
    %cst_161 = arith.constant dense<0.000000e+00> : vector<16xf32>
    %238 = vector.multi_reduction <add>, %237, %cst_161 [0] : vector<16x16xf32> to vector<16xf32>
    %239 = vector.shape_cast %238 : vector<16xf32> to vector<1x16xf32>
    %cst_162 = arith.constant 1.600000e+01 : f32
    %240 = vector.broadcast %cst_162 : f32 to vector<1x16xf32>
    %241 = arith.divf %239, %240 : vector<1x16xf32>
    %cst_163 = arith.constant 9.99999974E-6 : f32
    %242 = vector.broadcast %cst_163 : f32 to vector<1x16xf32>
    %243 = arith.addf %241, %242 : vector<1x16xf32>
    %244 = math.rsqrt %243 : vector<1x16xf32>
    %245 = arith.mulf %225, %244 : vector<1x16xf32>
    %246 = vector.broadcast %245 : vector<1x16xf32> to vector<16x16xf32>
    %247 = arith.mulf %236, %246 : vector<16x16xf32>
    %248 = vector.broadcast %227 : vector<1x16xf32> to vector<16x16xf32>
    %249 = arith.addf %247, %248 : vector<16x16xf32>
    %cst_164 = arith.constant 5.000000e-01 : f32
    %250 = vector.broadcast %cst_164 : f32 to vector<16x16xf32>
    %251 = arith.mulf %250, %249 : vector<16x16xf32>
    %252 = math.tanh %251 : vector<16x16xf32>
    %cst_165 = arith.constant 5.000000e-01 : f32
    %253 = vector.broadcast %cst_165 : f32 to vector<16x16xf32>
    %254 = arith.mulf %253, %252 : vector<16x16xf32>
    %cst_166 = arith.constant 5.000000e-01 : f32
    %255 = vector.broadcast %cst_166 : f32 to vector<16x16xf32>
    %256 = arith.addf %254, %255 : vector<16x16xf32>
    %257 = arith.mulf %249, %256 : vector<16x16xf32>
    %258 = arith.truncf %257 : vector<16x16xf32> to vector<16x16xbf16>
    %c0_167 = arith.constant 0 : index
    %c896 = arith.constant 896 : index
    %259 = vector.load %arg7[%c0_167, %c896] : memref<16x1280xbf16, #tpu.memory_space<vmem>>, vector<16x16xbf16>
    tpu.vector_store %arg7[%c0_167, %c896], %258 {strides = array<i32>} : memref<16x1280xbf16, #tpu.memory_space<vmem>>, vector<16x16xbf16>,
    %cst_168 = arith.constant 0.000000e+00 : bf16
    %260 = vector.broadcast %cst_168 : bf16 to vector<16x112xbf16>
    %c0_169 = arith.constant 0 : index
    %c912 = arith.constant 912 : index
    %261 = vector.load %arg7[%c0_169, %c912] : memref<16x1280xbf16, #tpu.memory_space<vmem>>, vector<16x112xbf16>
    tpu.vector_store %arg7[%c0_169, %c912], %260 {strides = array<i32>} : memref<16x1280xbf16, #tpu.memory_space<vmem>>, vector<16x112xbf16>,
    %c0_170 = arith.constant 0 : index
    %c0_171 = arith.constant 0 : index
    %262 = vector.load %arg7[%c0_170, %c0_171] : memref<16x1280xbf16, #tpu.memory_space<vmem>>, vector<16x1024xbf16>
    %c2944 = arith.constant 2944 : index
    %c0_172 = arith.constant 0 : index
    %263 = vector.load %arg2[%c2944, %c0_172] : memref<5120x16xbf16, #tpu.memory_space<vmem>>, vector<1024x16xbf16>
    %c6 = arith.constant 6 : index
    %c0_173 = arith.constant 0 : index
    %c0_174 = arith.constant 0 : index
    %c0_175 = arith.constant 0 : index
    %264 = vector.load %arg3[%c6, %c0_173, %c0_174, %c0_175] : memref<8x3x1x16xf32, #tpu.memory_space<vmem>>, vector<1x1x1x16xf32>
    %265 = vector.shape_cast %264 : vector<1x1x1x16xf32> to vector<1x16xf32>
    %c6_176 = arith.constant 6 : index
    %c1_177 = arith.constant 1 : index
    %c0_178 = arith.constant 0 : index
    %c0_179 = arith.constant 0 : index
    %266 = vector.load %arg3[%c6_176, %c1_177, %c0_178, %c0_179] : memref<8x3x1x16xf32, #tpu.memory_space<vmem>>, vector<1x1x1x16xf32>
    %267 = vector.shape_cast %266 : vector<1x1x1x16xf32> to vector<1x16xf32>
    %c6_180 = arith.constant 6 : index
    %c2_181 = arith.constant 2 : index
    %c0_182 = arith.constant 0 : index
    %c0_183 = arith.constant 0 : index
    %268 = vector.load %arg3[%c6_180, %c2_181, %c0_182, %c0_183] : memref<8x3x1x16xf32, #tpu.memory_space<vmem>>, vector<1x1x1x16xf32>
    %269 = vector.shape_cast %268 : vector<1x1x1x16xf32> to vector<1x16xf32>
    %cst_184 = arith.constant dense<0.000000e+00> : vector<16x16xf32>
    %270 = tpu.matmul %262, %263, %cst_184 {dimension_numbers = #tpu.dot_dimension_numbers<[1], [0], [0], [1], [0, 0, 1, 1], [], []>} : vector<16x1024xbf16>, vector<1024x16xbf16>, vector<16x16xf32> -> vector<16x16xf32>
    %271 = vector.broadcast %265 : vector<1x16xf32> to vector<16x16xf32>
    %272 = arith.addf %270, %271 : vector<16x16xf32>
    %cst_185 = arith.constant dense<0.000000e+00> : vector<16xf32>
    %273 = vector.multi_reduction <add>, %272, %cst_185 [0] : vector<16x16xf32> to vector<16xf32>
    %274 = vector.shape_cast %273 : vector<16xf32> to vector<1x16xf32>
    %cst_186 = arith.constant 1.600000e+01 : f32
    %275 = vector.broadcast %cst_186 : f32 to vector<1x16xf32>
    %276 = arith.divf %274, %275 : vector<1x16xf32>
    %277 = vector.broadcast %276 : vector<1x16xf32> to vector<16x16xf32>
    %278 = arith.subf %272, %277 : vector<16x16xf32>
    %279 = arith.mulf %278, %278 : vector<16x16xf32>
    %cst_187 = arith.constant dense<0.000000e+00> : vector<16xf32>
    %280 = vector.multi_reduction <add>, %279, %cst_187 [0] : vector<16x16xf32> to vector<16xf32>
    %281 = vector.shape_cast %280 : vector<16xf32> to vector<1x16xf32>
    %cst_188 = arith.constant 1.600000e+01 : f32
    %282 = vector.broadcast %cst_188 : f32 to vector<1x16xf32>
    %283 = arith.divf %281, %282 : vector<1x16xf32>
    %cst_189 = arith.constant 9.99999974E-6 : f32
    %284 = vector.broadcast %cst_189 : f32 to vector<1x16xf32>
    %285 = arith.addf %283, %284 : vector<1x16xf32>
    %286 = math.rsqrt %285 : vector<1x16xf32>
    %287 = arith.mulf %267, %286 : vector<1x16xf32>
    %288 = vector.broadcast %287 : vector<1x16xf32> to vector<16x16xf32>
    %289 = arith.mulf %278, %288 : vector<16x16xf32>
    %290 = vector.broadcast %269 : vector<1x16xf32> to vector<16x16xf32>
    %291 = arith.addf %289, %290 : vector<16x16xf32>
    %cst_190 = arith.constant 5.000000e-01 : f32
    %292 = vector.broadcast %cst_190 : f32 to vector<16x16xf32>
    %293 = arith.mulf %292, %291 : vector<16x16xf32>
    %294 = math.tanh %293 : vector<16x16xf32>
    %cst_191 = arith.constant 5.000000e-01 : f32
    %295 = vector.broadcast %cst_191 : f32 to vector<16x16xf32>
    %296 = arith.mulf %295, %294 : vector<16x16xf32>
    %cst_192 = arith.constant 5.000000e-01 : f32
    %297 = vector.broadcast %cst_192 : f32 to vector<16x16xf32>
    %298 = arith.addf %296, %297 : vector<16x16xf32>
    %299 = arith.mulf %291, %298 : vector<16x16xf32>
    %300 = arith.truncf %299 : vector<16x16xf32> to vector<16x16xbf16>
    %c0_193 = arith.constant 0 : index
    %c1024 = arith.constant 1024 : index
    %301 = vector.load %arg7[%c0_193, %c1024] : memref<16x1280xbf16, #tpu.memory_space<vmem>>, vector<16x16xbf16>
    tpu.vector_store %arg7[%c0_193, %c1024], %300 {strides = array<i32>} : memref<16x1280xbf16, #tpu.memory_space<vmem>>, vector<16x16xbf16>,
    %cst_194 = arith.constant 0.000000e+00 : bf16
    %302 = vector.broadcast %cst_194 : bf16 to vector<16x112xbf16>
    %c0_195 = arith.constant 0 : index
    %c1040 = arith.constant 1040 : index
    %303 = vector.load %arg7[%c0_195, %c1040] : memref<16x1280xbf16, #tpu.memory_space<vmem>>, vector<16x112xbf16>
    tpu.vector_store %arg7[%c0_195, %c1040], %302 {strides = array<i32>} : memref<16x1280xbf16, #tpu.memory_space<vmem>>, vector<16x112xbf16>,
    %c0_196 = arith.constant 0 : index
    %c0_197 = arith.constant 0 : index
    %304 = vector.load %arg7[%c0_196, %c0_197] : memref<16x1280xbf16, #tpu.memory_space<vmem>>, vector<16x1152xbf16>
    %c3968 = arith.constant 3968 : index
    %c0_198 = arith.constant 0 : index
    %305 = vector.load %arg2[%c3968, %c0_198] : memref<5120x16xbf16, #tpu.memory_space<vmem>>, vector<1152x16xbf16>
    %c7 = arith.constant 7 : index
    %c0_199 = arith.constant 0 : index
    %c0_200 = arith.constant 0 : index
    %c0_201 = arith.constant 0 : index
    %306 = vector.load %arg3[%c7, %c0_199, %c0_200, %c0_201] : memref<8x3x1x16xf32, #tpu.memory_space<vmem>>, vector<1x1x1x16xf32>
    %307 = vector.shape_cast %306 : vector<1x1x1x16xf32> to vector<1x16xf32>
    %c7_202 = arith.constant 7 : index
    %c1_203 = arith.constant 1 : index
    %c0_204 = arith.constant 0 : index
    %c0_205 = arith.constant 0 : index
    %308 = vector.load %arg3[%c7_202, %c1_203, %c0_204, %c0_205] : memref<8x3x1x16xf32, #tpu.memory_space<vmem>>, vector<1x1x1x16xf32>
    %309 = vector.shape_cast %308 : vector<1x1x1x16xf32> to vector<1x16xf32>
    %c7_206 = arith.constant 7 : index
    %c2_207 = arith.constant 2 : index
    %c0_208 = arith.constant 0 : index
    %c0_209 = arith.constant 0 : index
    %310 = vector.load %arg3[%c7_206, %c2_207, %c0_208, %c0_209] : memref<8x3x1x16xf32, #tpu.memory_space<vmem>>, vector<1x1x1x16xf32>
    %311 = vector.shape_cast %310 : vector<1x1x1x16xf32> to vector<1x16xf32>
    %cst_210 = arith.constant dense<0.000000e+00> : vector<16x16xf32>
    %312 = tpu.matmul %304, %305, %cst_210 {dimension_numbers = #tpu.dot_dimension_numbers<[1], [0], [0], [1], [0, 0, 1, 1], [], []>} : vector<16x1152xbf16>, vector<1152x16xbf16>, vector<16x16xf32> -> vector<16x16xf32>
    %313 = vector.broadcast %307 : vector<1x16xf32> to vector<16x16xf32>
    %314 = arith.addf %312, %313 : vector<16x16xf32>
    %cst_211 = arith.constant dense<0.000000e+00> : vector<16xf32>
    %315 = vector.multi_reduction <add>, %314, %cst_211 [0] : vector<16x16xf32> to vector<16xf32>
    %316 = vector.shape_cast %315 : vector<16xf32> to vector<1x16xf32>
    %cst_212 = arith.constant 1.600000e+01 : f32
    %317 = vector.broadcast %cst_212 : f32 to vector<1x16xf32>
    %318 = arith.divf %316, %317 : vector<1x16xf32>
    %319 = vector.broadcast %318 : vector<1x16xf32> to vector<16x16xf32>
    %320 = arith.subf %314, %319 : vector<16x16xf32>
    %321 = arith.mulf %320, %320 : vector<16x16xf32>
    %cst_213 = arith.constant dense<0.000000e+00> : vector<16xf32>
    %322 = vector.multi_reduction <add>, %321, %cst_213 [0] : vector<16x16xf32> to vector<16xf32>
    %323 = vector.shape_cast %322 : vector<16xf32> to vector<1x16xf32>
    %cst_214 = arith.constant 1.600000e+01 : f32
    %324 = vector.broadcast %cst_214 : f32 to vector<1x16xf32>
    %325 = arith.divf %323, %324 : vector<1x16xf32>
    %cst_215 = arith.constant 9.99999974E-6 : f32
    %326 = vector.broadcast %cst_215 : f32 to vector<1x16xf32>
    %327 = arith.addf %325, %326 : vector<1x16xf32>
    %328 = math.rsqrt %327 : vector<1x16xf32>
    %329 = arith.mulf %309, %328 : vector<1x16xf32>
    %330 = vector.broadcast %329 : vector<1x16xf32> to vector<16x16xf32>
    %331 = arith.mulf %320, %330 : vector<16x16xf32>
    %332 = vector.broadcast %311 : vector<1x16xf32> to vector<16x16xf32>
    %333 = arith.addf %331, %332 : vector<16x16xf32>
    %cst_216 = arith.constant 5.000000e-01 : f32
    %334 = vector.broadcast %cst_216 : f32 to vector<16x16xf32>
    %335 = arith.mulf %334, %333 : vector<16x16xf32>
    %336 = math.tanh %335 : vector<16x16xf32>
    %cst_217 = arith.constant 5.000000e-01 : f32
    %337 = vector.broadcast %cst_217 : f32 to vector<16x16xf32>
    %338 = arith.mulf %337, %336 : vector<16x16xf32>
    %cst_218 = arith.constant 5.000000e-01 : f32
    %339 = vector.broadcast %cst_218 : f32 to vector<16x16xf32>
    %340 = arith.addf %338, %339 : vector<16x16xf32>
    %341 = arith.mulf %333, %340 : vector<16x16xf32>
    %342 = arith.truncf %341 : vector<16x16xf32> to vector<16x16xbf16>
    %c0_219 = arith.constant 0 : index
    %c1152 = arith.constant 1152 : index
    %343 = vector.load %arg7[%c0_219, %c1152] : memref<16x1280xbf16, #tpu.memory_space<vmem>>, vector<16x16xbf16>
    tpu.vector_store %arg7[%c0_219, %c1152], %342 {strides = array<i32>} : memref<16x1280xbf16, #tpu.memory_space<vmem>>, vector<16x16xbf16>,
    %cst_220 = arith.constant 0.000000e+00 : bf16
    %344 = vector.broadcast %cst_220 : bf16 to vector<16x112xbf16>
    %c0_221 = arith.constant 0 : index
    %c1168 = arith.constant 1168 : index
    %345 = vector.load %arg7[%c0_221, %c1168] : memref<16x1280xbf16, #tpu.memory_space<vmem>>, vector<16x112xbf16>
    tpu.vector_store %arg7[%c0_221, %c1168], %344 {strides = array<i32>} : memref<16x1280xbf16, #tpu.memory_space<vmem>>, vector<16x112xbf16>,
    %c0_222 = arith.constant 0 : index
    %c0_223 = arith.constant 0 : index
    %346 = vector.load %arg7[%c0_222, %c0_223] : memref<16x1280xbf16, #tpu.memory_space<vmem>>, vector<16x1280xbf16>
    %c0_224 = arith.constant 0 : index
    %c0_225 = arith.constant 0 : index
    %347 = vector.load %arg4[%c0_224, %c0_225] : memref<1280x8xbf16, #tpu.memory_space<vmem>>, vector<1280x8xbf16>
    %cst_226 = arith.constant dense<0.000000e+00> : vector<16x8xf32>
    %348 = tpu.matmul %346, %347, %cst_226 {dimension_numbers = #tpu.dot_dimension_numbers<[1], [0], [0], [1], [0, 0, 1, 1], [], []>} : vector<16x1280xbf16>, vector<1280x8xbf16>, vector<16x8xf32> -> vector<16x8xf32>
    %c0_227 = arith.constant 0 : index
    %c0_228 = arith.constant 0 : index
    %349 = vector.load %arg5[%c0_227, %c0_228] : memref<1x8xf32, #tpu.memory_space<vmem>>, vector<1x8xf32>
    %350 = vector.broadcast %349 : vector<1x8xf32> to vector<16x8xf32>
    %351 = arith.addf %348, %350 : vector<16x8xf32>
    %c0_229 = arith.constant 0 : index
    %c0_230 = arith.constant 0 : index
    %352 = vector.load %arg6[%c0_229, %c0_230] : memref<16x8xf32, #tpu.memory_space<vmem>>, vector<16x8xf32>
    tpu.vector_store %arg6[%c0_229, %c0_230], %351 {strides = array<i32>} : memref<16x8xf32, #tpu.memory_space<vmem>>, vector<16x8xf32>,
    return
  }
}

</mosaic_0001>

<llo_original>
// kernel: ofenet_forward.1
$region0: #{ofenet_forward.1}
  #allocation0 [shape = 'u32[]', space=smem, size = 0x4, offset = 0x4, fixed_abs, tag = 'smem constant byte address 0x4 - core index']
  #allocation1 [shape = 'u32[72,128]{1,0:T(1,128)}', space=vmem, size = 0x9000, scoped, tag = 'internal scratch']
  #allocation2 [shape = 'bf16[16,1280]{1,0:T(8,128)(2,1)}', space=vmem, size = 0xa000, scoped, tag = 'scratch operand']
  %s0 = inlined_call_operand.vmem [shape: f32[16,8], index: 0, kind: input, shape index: {}]
  %s1 = inlined_call_operand.vmem [shape: f32[16,4], index: 1, kind: input, shape index: {}]
  %s2 = inlined_call_operand.vmem [shape: bf16[5120,16], index: 2, kind: input, shape index: {}]
  %s3 = inlined_call_operand.vmem [shape: f32[8,3,1,16], index: 3, kind: input, shape index: {}]
  %s4 = inlined_call_operand.vmem [shape: bf16[1280,8], index: 4, kind: input, shape index: {}]
  %s5 = inlined_call_operand.vmem [shape: f32[1,8], index: 5, kind: input, shape index: {}]
  %s6 = inlined_call_operand.vmem [shape: f32[16,8], index: 6, kind: output, shape index: {}]
  %s7 = sld [smem:[#allocation0]]
  $region34: #{ofenet_forward.1} parent=0
    _
  %s9 = ssub.s32 1, %s7
  %s10 = scalar_select 0, %s9, %s7
  // Predicated region
  $region2: #{ofenet_forward.1} parent=0 // pred_check
    _
  $region3: #{ofenet_forward.1} parent=0 // pred_check_branch
    %12 = sbr.rel (0) target = $region5
  $region4: #{ofenet_forward.1} parent=0 // pred_region
    _
  $region5: #{ofenet_forward.1} parent=0 // pred_fallthru
    _
  // Predicated region
  $region6: #{ofenet_forward.1} parent=0 // pred_check
    _
  $region7: #{ofenet_forward.1} parent=0 // pred_check_branch
    %14 = sbr.rel (0) target = $region9
  $region8: #{ofenet_forward.1} parent=0 // pred_region
    _
  $region9: #{ofenet_forward.1} parent=0 // pred_fallthru
    _
  // Predicated region
  $region10: #{ofenet_forward.1} parent=0 // pred_check
    _
  $region11: #{ofenet_forward.1} parent=0 // pred_check_branch
    %16 = sbr.rel (0) target = $region13
  $region12: #{ofenet_forward.1} parent=0 // pred_region
    _
  $region13: #{ofenet_forward.1} parent=0 // pred_fallthru
    _
  // Predicated region
  $region14: #{ofenet_forward.1} parent=0 // pred_check
    _
  $region15: #{ofenet_forward.1} parent=0 // pred_check_branch
    %18 = sbr.rel (0) target = $region17
  $region16: #{ofenet_forward.1} parent=0 // pred_region
    _
  $region17: #{ofenet_forward.1} parent=0 // pred_fallthru
    _
  // Predicated region
  $region18: #{ofenet_forward.1} parent=0 // pred_check
    _
  $region19: #{ofenet_forward.1} parent=0 // pred_check_branch
    %20 = sbr.rel (0) target = $region21
  $region20: #{ofenet_forward.1} parent=0 // pred_region
    _
  $region21: #{ofenet_forward.1} parent=0 // pred_fallthru
    _
  // Predicated region
  $region22: #{ofenet_forward.1} parent=0 // pred_check
    _
  $region23: #{ofenet_forward.1} parent=0 // pred_check_branch
    %22 = sbr.rel (0) target = $region25
  $region24: #{ofenet_forward.1} parent=0 // pred_region
    _
  $region25: #{ofenet_forward.1} parent=0 // pred_fallthru
    _
  %v24 = vld [vmem:[%s0] sm:$0xff]
  %v25 = vld [vmem:[%s0 + $0x8] sm:$0xff]
  %v26 = vpack.c.bf16 %v24, %v24
  %v27 = vpack.c.bf16 %v25, %v25
  %vm28 = vcmask 60416
  %29 = vst.msk [vmem:[#allocation2] sm:$0xf] %vm28, %v26
  %30 = vst.msk [vmem:[#allocation2 + $0x28] sm:$0xf] %vm28, %v27
  %vm31 = vcmask 1043520
  %32 = vst.msk [vmem:[#allocation2] sm:$0xf] %vm31, 0
  %33 = vst.msk [vmem:[#allocation2 + $0x28] sm:$0xf] %vm31, 0
  %v34 = vld [vmem:[%s1] sm:$0xff]
  %v35 = vld [vmem:[%s1 + $0x8] sm:$0xff]
  %v36 = vpack.c.bf16 %v34, %v34
  %v37 = vpack.c.bf16 %v35, %v35
  %vm38 = vcmask 27648
  %39 = vst.msk [vmem:[#allocation2 + $0x14] sm:$0xf] %vm38, %v36
  %40 = vst.msk [vmem:[#allocation2 + $0x3c] sm:$0xf] %vm38, %v37
  %vm41 = vcmask 1043488
  %42 = vst.msk [vmem:[#allocation2 + $0x14] sm:$0xf] %vm41, 0
  %43 = vst.msk [vmem:[#allocation2 + $0x3c] sm:$0xf] %vm41, 0
  %v44 = vld [vmem:[#allocation2] sm:$0xf]
  %v45 = vld [vmem:[#allocation2 + $0x28] sm:$0xf]
  %v46 = vld [vmem:[%s2] sm:$0xf]
  %v47 = vld [vmem:[%s2 + $0x4] sm:$0xf]
  %v48 = vld [vmem:[%s2 + $0x8] sm:$0xf]
  %v49 = vld [vmem:[%s2 + $0xc] sm:$0xf]
  %v50 = vld [vmem:[%s2 + $0x10] sm:$0xf]
  %v51 = vld [vmem:[%s2 + $0x14] sm:$0xf]
  %v52 = vld [vmem:[%s2 + $0x18] sm:$0xf]
  %v53 = vld [vmem:[%s2 + $0x1c] sm:$0xf]
  %v54 = vld [vmem:[%s2 + $0x20] sm:$0xf]
  %v55 = vld [vmem:[%s2 + $0x24] sm:$0xf]
  %v56 = vld [vmem:[%s2 + $0x28] sm:$0xf]
  %v57 = vld [vmem:[%s2 + $0x2c] sm:$0xf]
  %v58 = vld [vmem:[%s2 + $0x30] sm:$0xf]
  %v59 = vld [vmem:[%s2 + $0x34] sm:$0xf]
  %v60 = vld [vmem:[%s2 + $0x38] sm:$0xf]
  %v61 = vld [vmem:[%s2 + $0x3c] sm:$0xf]
  %v62 = vld [vmem:[%s3] sm:$0x1]
  %s63 = scalar_lea.vmem %s3, 1
  %v64 = vld [vmem:[%s63] sm:$0x1]
  %s65 = scalar_lea.vmem %s3, 2
  %v66 = vld [vmem:[%s65] sm:$0x1]
  %v68 = vperm.slane %v62, 0
  %v72 = vunpack.c.l.b16 %v44
  %v73 = vunpack.c.l.b16 %v45
  %v74 = vpack.c.b16 %v73, %v72
  %v92 = vunpack.c.l.b16 %v46
  %v93 = vunpack.c.l.b16 %v47
  %v94 = vunpack.c.l.b16 %v48
  %v95 = vunpack.c.l.b16 %v49
  %v96 = vunpack.c.l.b16 %v50
  %v97 = vunpack.c.l.b16 %v51
  %v98 = vunpack.c.l.b16 %v52
  %v99 = vunpack.c.l.b16 %v53
  %v100 = vunpack.c.l.b16 %v54
  %v101 = vunpack.c.l.b16 %v55
  %v102 = vunpack.c.l.b16 %v56
  %v103 = vunpack.c.l.b16 %v57
  %v104 = vunpack.c.l.b16 %v58
  %v105 = vunpack.c.l.b16 %v59
  %v106 = vunpack.c.l.b16 %v60
  %v107 = vunpack.c.l.b16 %v61
  %v108 = vpack.c.b16 %v93, %v92
  %v109 = vpack.c.b16 %v95, %v94
  %v110 = vpack.c.b16 %v97, %v96
  %v111 = vpack.c.b16 %v99, %v98
  %v112 = vpack.c.b16 %v101, %v100
  %v113 = vpack.c.b16 %v103, %v102
  %v114 = vpack.c.b16 %v105, %v104
  %v115 = vpack.c.b16 %v107, %v106
  %124 = vmatpush.bf16.msra.mxu0 %v115
  %125 = vmatpush.bf16.msra.mxu0 %v114
  %126 = vmatpush.bf16.msra.mxu0 %v113
  %127 = vmatpush.bf16.msra.mxu0 %v112
  %128 = vmatpush.bf16.msra.mxu0 %v111
  %129 = vmatpush.bf16.msra.mxu0 %v110
  %130 = vmatpush.bf16.msra.mxu0 %v109
  %131 = vmatpush.bf16.msra.mxu0 %v108
  %132 = vmatmul.bf16.gmra.mxu0 %v74
  %v133 = vpop.f32.mrf.mxu0
  %v134 = vadd.f32 %v68, %v133
  %v135 = vpop.f32.mrf.mxu0
  %v136 = vadd.f32 %v68, %v135
  %137 = vdwg.mxu0
  %vm138 = vcmask 130048
  %v139 = vsel %vm138, %v134, 0.0
  %v140 = vsel %vm138, %v136, 0.0
  %v141 = vadd.f32 %v139, %v140
  %v142 = vrot.slane %v141, 4
  %v143 = vadd.f32 %v141, %v142
  %v144 = vrot.slane %v143, 2
  %v145 = vadd.f32 %v143, %v144
  %v146 = vrot.slane %v145, 1
  %v147 = vadd.f32 %v145, %v146
  %v148 = vrcp.pop 16.0
  %v149 = vmul.f32 16.0, %v148
  %v150 = vsub.f32 1.0, %v149
  %v151 = vmul.f32 %v148, %v150
  %v152 = vadd.f32 %v148, %v151
  %vm153 = vweird.f32 %v148
  %v154 = vsel %vm153, %v148, %v152
  %v155 = vmul.f32 %v147, %v154
  %v156 = vsub.f32 %v134, %v155
  %v157 = vsub.f32 %v136, %v155
  %v158 = vmul.f32 %v156, %v156
  %v159 = vmul.f32 %v157, %v157
  %v160 = vsel %vm138, %v158, 0.0
  %v161 = vsel %vm138, %v159, 0.0
  %v162 = vadd.f32 %v160, %v161
  %v163 = vrot.slane %v162, 4
  %v164 = vadd.f32 %v162, %v163
  %v165 = vrot.slane %v164, 2
  %v166 = vadd.f32 %v164, %v165
  %v167 = vrot.slane %v166, 1
  %v168 = vadd.f32 %v166, %v167
  %v169 = vmul.f32 %v168, %v154
  %v170 = vadd.f32 %v169, 1e-05
  %v171 = vrsqrt.pop %v170
  %v172 = vmul.f32 %v171, %v170
  %v173 = vmul.f32 %v172, %v171
  %v174 = vmul.f32 0.5, %v173
  %v175 = vsub.f32 1.5, %v174
  %v176 = vmul.f32 %v171, %v175
  %vm177 = vweird.f32 %v170
  %vm178 = vweird.f32 %v171
  %vm179 = vmor %vm177, %vm178
  %v180 = vsel %vm179, %v171, %v176
  %v181 = vmul.f32 %v64, %v180
  %v183 = vperm.slane %v181, 0
  %v185 = vmul.f32 %v156, %v183
  %v186 = vmul.f32 %v157, %v183
  %v188 = vperm.slane %v66, 0
  %v190 = vadd.f32 %v185, %v188
  %v191 = vadd.f32 %v186, %v188
  %v192 = vmul.f32 %v190, 0.5
  %v193 = vmul.f32 %v191, 0.5
  %v194 = vtanh.pop %v192
  %v195 = vtanh.pop %v193
  %v196 = vmul.f32 %v194, 0.5
  %v197 = vmul.f32 %v195, 0.5
  %v198 = vadd.f32 %v196, 0.5
  %v199 = vadd.f32 %v197, 0.5
  %v200 = vmul.f32 %v190, %v198
  %v201 = vmul.f32 %v191, %v199
  %v202 = vpack.c.bf16 %v200, %v200
  %v203 = vpack.c.bf16 %v201, %v201
  %vm204 = vcmask 125952
  %205 = vst.msk [vmem:[#allocation2 + $0x4] sm:$0xf] %vm204, %v202
  %206 = vst.msk [vmem:[#allocation2 + $0x2c] sm:$0xf] %vm204, %v203
  %vm207 = vcmask 1043584
  %208 = vst.msk [vmem:[#allocation2 + $0x4] sm:$0xf] %vm207, 0
  %209 = vst.msk [vmem:[#allocation2 + $0x2c] sm:$0xf] %vm207, 0
  %v210 = vld [vmem:[#allocation2] sm:$0xff]
  %v211 = vld [vmem:[#allocation2 + $0x28] sm:$0xff]
  %v212 = vld [vmem:[%s2 + $0x40] sm:$0xf]
  %v213 = vld [vmem:[%s2 + $0x44] sm:$0xf]
  %v214 = vld [vmem:[%s2 + $0x48] sm:$0xf]
  %v215 = vld [vmem:[%s2 + $0x4c] sm:$0xf]
  %v216 = vld [vmem:[%s2 + $0x50] sm:$0xf]
  %v217 = vld [vmem:[%s2 + $0x54] sm:$0xf]
  %v218 = vld [vmem:[%s2 + $0x58] sm:$0xf]
  %v219 = vld [vmem:[%s2 + $0x5c] sm:$0xf]
  %v220 = vld [vmem:[%s2 + $0x60] sm:$0xf]
  %v221 = vld [vmem:[%s2 + $0x64] sm:$0xf]
  %v222 = vld [vmem:[%s2 + $0x68] sm:$0xf]
  %v223 = vld [vmem:[%s2 + $0x6c] sm:$0xf]
  %v224 = vld [vmem:[%s2 + $0x70] sm:$0xf]
  %v225 = vld [vmem:[%s2 + $0x74] sm:$0xf]
  %v226 = vld [vmem:[%s2 + $0x78] sm:$0xf]
  %v227 = vld [vmem:[%s2 + $0x7c] sm:$0xf]
  %v228 = vld [vmem:[%s2 + $0x80] sm:$0xf]
  %v229 = vld [vmem:[%s2 + $0x84] sm:$0xf]
  %v230 = vld [vmem:[%s2 + $0x88] sm:$0xf]
  %v231 = vld [vmem:[%s2 + $0x8c] sm:$0xf]
  %v232 = vld [vmem:[%s2 + $0x90] sm:$0xf]
  %v233 = vld [vmem:[%s2 + $0x94] sm:$0xf]
  %v234 = vld [vmem:[%s2 + $0x98] sm:$0xf]
  %v235 = vld [vmem:[%s2 + $0x9c] sm:$0xf]
  %v236 = vld [vmem:[%s2 + $0xa0] sm:$0xf]
  %v237 = vld [vmem:[%s2 + $0xa4] sm:$0xf]
  %v238 = vld [vmem:[%s2 + $0xa8] sm:$0xf]
  %v239 = vld [vmem:[%s2 + $0xac] sm:$0xf]
  %v240 = vld [vmem:[%s2 + $0xb0] sm:$0xf]
  %v241 = vld [vmem:[%s2 + $0xb4] sm:$0xf]
  %v242 = vld [vmem:[%s2 + $0xb8] sm:$0xf]
  %v243 = vld [vmem:[%s2 + $0xbc] sm:$0xf]
  %s244 = scalar_lea.vmem %s3, 3
  %v245 = vld [vmem:[%s244] sm:$0x1]
  %s246 = scalar_lea.vmem %s3, 4
  %v247 = vld [vmem:[%s246] sm:$0x1]
  %s248 = scalar_lea.vmem %s3, 5
  %v249 = vld [vmem:[%s248] sm:$0x1]
  %v251 = vperm.slane %v245, 0
  %v255 = vunpack.c.l.b16 %v210
  %v256 = vunpack.c.h.b16 %v210
  %v257 = vunpack.c.l.b16 %v211
  %v258 = vunpack.c.h.b16 %v211
  %v259 = vpack.c.b16 %v257, %v255
  %v260 = vpack.c.b16 %v258, %v256
  %v295 = vunpack.c.l.b16 %v212
  %v296 = vunpack.c.l.b16 %v213
  %v297 = vunpack.c.l.b16 %v214
  %v298 = vunpack.c.l.b16 %v215
  %v299 = vunpack.c.l.b16 %v216
  %v300 = vunpack.c.l.b16 %v217
  %v301 = vunpack.c.l.b16 %v218
  %v302 = vunpack.c.l.b16 %v219
  %v303 = vunpack.c.l.b16 %v220
  %v304 = vunpack.c.l.b16 %v221
  %v305 = vunpack.c.l.b16 %v222
  %v306 = vunpack.c.l.b16 %v223
  %v307 = vunpack.c.l.b16 %v224
  %v308 = vunpack.c.l.b16 %v225
  %v309 = vunpack.c.l.b16 %v226
  %v310 = vunpack.c.l.b16 %v227
  %v311 = vunpack.c.l.b16 %v228
  %v312 = vunpack.c.l.b16 %v229
  %v313 = vunpack.c.l.b16 %v230
  %v314 = vunpack.c.l.b16 %v231
  %v315 = vunpack.c.l.b16 %v232
  %v316 = vunpack.c.l.b16 %v233
  %v317 = vunpack.c.l.b16 %v234
  %v318 = vunpack.c.l.b16 %v235
  %v319 = vunpack.c.l.b16 %v236
  %v320 = vunpack.c.l.b16 %v237
  %v321 = vunpack.c.l.b16 %v238
  %v322 = vunpack.c.l.b16 %v239
  %v323 = vunpack.c.l.b16 %v240
  %v324 = vunpack.c.l.b16 %v241
  %v325 = vunpack.c.l.b16 %v242
  %v326 = vunpack.c.l.b16 %v243
  %v327 = vpack.c.b16 %v296, %v295
  %v328 = vpack.c.b16 %v298, %v297
  %v329 = vpack.c.b16 %v300, %v299
  %v330 = vpack.c.b16 %v302, %v301
  %v331 = vpack.c.b16 %v304, %v303
  %v332 = vpack.c.b16 %v306, %v305
  %v333 = vpack.c.b16 %v308, %v307
  %v334 = vpack.c.b16 %v310, %v309
  %v335 = vpack.c.b16 %v312, %v311
  %v336 = vpack.c.b16 %v314, %v313
  %v337 = vpack.c.b16 %v316, %v315
  %v338 = vpack.c.b16 %v318, %v317
  %v339 = vpack.c.b16 %v320, %v319
  %v340 = vpack.c.b16 %v322, %v321
  %v341 = vpack.c.b16 %v324, %v323
  %v342 = vpack.c.b16 %v326, %v325
  %359 = vmatpush.bf16.msra.mxu0 %v334
  %360 = vmatpush.bf16.msra.mxu0 %v333
  %361 = vmatpush.bf16.msra.mxu0 %v332
  %362 = vmatpush.bf16.msra.mxu0 %v331
  %363 = vmatpush.bf16.msra.mxu0 %v330
  %364 = vmatpush.bf16.msra.mxu0 %v329
  %365 = vmatpush.bf16.msra.mxu0 %v328
  %366 = vmatpush.bf16.msra.mxu0 %v327
  %367 = vmatmul.bf16.gmra.mxu0 %v259
  %v368 = vpop.f32.mrf.mxu0
  %v369 = vadd.f32 %v251, %v368
  %v370 = vpop.f32.mrf.mxu0
  %v371 = vadd.f32 %v251, %v370
  %372 = vdwg.mxu0
  %373 = vmatpush.bf16.msra.mxu0 %v342
  %374 = vmatpush.bf16.msra.mxu0 %v341
  %375 = vmatpush.bf16.msra.mxu0 %v340
  %376 = vmatpush.bf16.msra.mxu0 %v339
  %377 = vmatpush.bf16.msra.mxu0 %v338
  %378 = vmatpush.bf16.msra.mxu0 %v337
  %379 = vmatpush.bf16.msra.mxu0 %v336
  %380 = vmatpush.bf16.msra.mxu0 %v335
  %381 = vmatmul.bf16.gmra.mxu0 %v260
  %v382 = vpop.f32.mrf.mxu0
  %v383 = vadd.f32 %v369, %v382
  %v384 = vpop.f32.mrf.mxu0
  %v385 = vadd.f32 %v371, %v384
  %386 = vdwg.mxu0
  %v387 = vsel %vm138, %v383, 0.0
  %v388 = vsel %vm138, %v385, 0.0
  %v389 = vadd.f32 %v387, %v388
  %v390 = vrot.slane %v389, 4
  %v391 = vadd.f32 %v389, %v390
  %v392 = vrot.slane %v391, 2
  %v393 = vadd.f32 %v391, %v392
  %v394 = vrot.slane %v393, 1
  %v395 = vadd.f32 %v393, %v394
  %v396 = vmul.f32 %v395, %v154
  %v397 = vsub.f32 %v383, %v396
  %v398 = vsub.f32 %v385, %v396
  %v399 = vmul.f32 %v397, %v397
  %v400 = vmul.f32 %v398, %v398
  %v401 = vsel %vm138, %v399, 0.0
  %v402 = vsel %vm138, %v400, 0.0
  %v403 = vadd.f32 %v401, %v402
  %v404 = vrot.slane %v403, 4
  %v405 = vadd.f32 %v403, %v404
  %v406 = vrot.slane %v405, 2
  %v407 = vadd.f32 %v405, %v406
  %v408 = vrot.slane %v407, 1
  %v409 = vadd.f32 %v407, %v408
  %v410 = vmul.f32 %v409, %v154
  %v411 = vadd.f32 %v410, 1e-05
  %v412 = vrsqrt.pop %v411
  %v413 = vmul.f32 %v412, %v411
  %v414 = vmul.f32 %v413, %v412
  %v415 = vmul.f32 0.5, %v414
  %v416 = vsub.f32 1.5, %v415
  %v417 = vmul.f32 %v412, %v416
  %vm418 = vweird.f32 %v411
  %vm419 = vweird.f32 %v412
  %vm420 = vmor %vm418, %vm419
  %v421 = vsel %vm420, %v412, %v417
  %v422 = vmul.f32 %v247, %v421
  %v424 = vperm.slane %v422, 0
  %v426 = vmul.f32 %v397, %v424
  %v427 = vmul.f32 %v398, %v424
  %v429 = vperm.slane %v249, 0
  %v431 = vadd.f32 %v426, %v429
  %v432 = vadd.f32 %v427, %v429
  %v433 = vmul.f32 %v431, 0.5
  %v434 = vmul.f32 %v432, 0.5
  %v435 = vtanh.pop %v433
  %v436 = vtanh.pop %v434
  %v437 = vmul.f32 %v435, 0.5
  %v438 = vmul.f32 %v436, 0.5
  %v439 = vadd.f32 %v437, 0.5
  %v440 = vadd.f32 %v438, 0.5
  %v441 = vmul.f32 %v431, %v439
  %v442 = vmul.f32 %v432, %v440
  %v443 = vpack.c.bf16 %v441, %v441
  %v444 = vpack.c.bf16 %v442, %v442
  %445 = vst.msk [vmem:[#allocation2 + $0x8] sm:$0xf] %vm204, %v443
  %446 = vst.msk [vmem:[#allocation2 + $0x30] sm:$0xf] %vm204, %v444
  %447 = vst.msk [vmem:[#allocation2 + $0x8] sm:$0xf] %vm207, 0
  %448 = vst.msk [vmem:[#allocation2 + $0x30] sm:$0xf] %vm207, 0
  %v449 = vld [vmem:[#allocation2] sm:$0xff]
  %v450 = vld [vmem:[#allocation2 + $0x8] sm:$0xf]
  %v451 = vld [vmem:[#allocation2 + $0x28] sm:$0xff]
  %v452 = vld [vmem:[#allocation2 + $0x30] sm:$0xf]
  %v453 = vld [vmem:[%s2 + $0xc0] sm:$0xf]
  %v454 = vld [vmem:[%s2 + $0xc4] sm:$0xf]
  %v455 = vld [vmem:[%s2 + $0xc8] sm:$0xf]
  %v456 = vld [vmem:[%s2 + $0xcc] sm:$0xf]
  %v457 = vld [vmem:[%s2 + $0xd0] sm:$0xf]
  %v458 = vld [vmem:[%s2 + $0xd4] sm:$0xf]
  %v459 = vld [vmem:[%s2 + $0xd8] sm:$0xf]
  %v460 = vld [vmem:[%s2 + $0xdc] sm:$0xf]
  %v461 = vld [vmem:[%s2 + $0xe0] sm:$0xf]
  %v462 = vld [vmem:[%s2 + $0xe4] sm:$0xf]
  %v463 = vld [vmem:[%s2 + $0xe8] sm:$0xf]
  %v464 = vld [vmem:[%s2 + $0xec] sm:$0xf]
  %v465 = vld [vmem:[%s2 + $0xf0] sm:$0xf]
  %v466 = vld [vmem:[%s2 + $0xf4] sm:$0xf]
  %v467 = vld [vmem:[%s2 + $0xf8] sm:$0xf]
  %v468 = vld [vmem:[%s2 + $0xfc] sm:$0xf]
  %v469 = vld [vmem:[%s2 + $0x100] sm:$0xf]
  %v470 = vld [vmem:[%s2 + $0x104] sm:$0xf]
  %v471 = vld [vmem:[%s2 + $0x108] sm:$0xf]
  %v472 = vld [vmem:[%s2 + $0x10c] sm:$0xf]
  %v473 = vld [vmem:[%s2 + $0x110] sm:$0xf]
  %v474 = vld [vmem:[%s2 + $0x114] sm:$0xf]
  %v475 = vld [vmem:[%s2 + $0x118] sm:$0xf]
  %v476 = vld [vmem:[%s2 + $0x11c] sm:$0xf]
  %v477 = vld [vmem:[%s2 + $0x120] sm:$0xf]
  %v478 = vld [vmem:[%s2 + $0x124] sm:$0xf]
  %v479 = vld [vmem:[%s2 + $0x128] sm:$0xf]
  %v480 = vld [vmem:[%s2 + $0x12c] sm:$0xf]
  %v481 = vld [vmem:[%s2 + $0x130] sm:$0xf]
  %v482 = vld [vmem:[%s2 + $0x134] sm:$0xf]
  %v483 = vld [vmem:[%s2 + $0x138] sm:$0xf]
  %v484 = vld [vmem:[%s2 + $0x13c] sm:$0xf]
  %v485 = vld [vmem:[%s2 + $0x140] sm:$0xf]
  %v486 = vld [vmem:[%s2 + $0x144] sm:$0xf]
  %v487 = vld [vmem:[%s2 + $0x148] sm:$0xf]
  %v488 = vld [vmem:[%s2 + $0x14c] sm:$0xf]
  %v489 = vld [vmem:[%s2 + $0x150] sm:$0xf]
  %v490 = vld [vmem:[%s2 + $0x154] sm:$0xf]
  %v491 = vld [vmem:[%s2 + $0x158] sm:$0xf]
  %v492 = vld [vmem:[%s2 + $0x15c] sm:$0xf]
  %v493 = vld [vmem:[%s2 + $0x160] sm:$0xf]
  %v494 = vld [vmem:[%s2 + $0x164] sm:$0xf]
  %v495 = vld [vmem:[%s2 + $0x168] sm:$0xf]
  %v496 = vld [vmem:[%s2 + $0x16c] sm:$0xf]
  %v497 = vld [vmem:[%s2 + $0x170] sm:$0xf]
  %v498 = vld [vmem:[%s2 + $0x174] sm:$0xf]
  %v499 = vld [vmem:[%s2 + $0x178] sm:$0xf]
  %v500 = vld [vmem:[%s2 + $0x17c] sm:$0xf]
  %s501 = scalar_lea.vmem %s3, 6
  %v502 = vld [vmem:[%s501] sm:$0x1]
  %s503 = scalar_lea.vmem %s3, 7
  %v504 = vld [vmem:[%s503] sm:$0x1]
  %s505 = scalar_lea.vmem %s3, 8
  %v506 = vld [vmem:[%s505] sm:$0x1]
  %v508 = vperm.slane %v502, 0
  %v514 = vunpack.c.l.b16 %v449
  %v515 = vunpack.c.h.b16 %v449
  %v516 = vunpack.c.l.b16 %v450
  %v517 = vunpack.c.l.b16 %v451
  %v518 = vunpack.c.h.b16 %v451
  %v519 = vunpack.c.l.b16 %v452
  %v520 = vpack.c.b16 %v517, %v514
  %v521 = vpack.c.b16 %v518, %v515
  %v522 = vpack.c.b16 %v519, %v516
  %v574 = vunpack.c.l.b16 %v453
  %v575 = vunpack.c.l.b16 %v454
  %v576 = vunpack.c.l.b16 %v455
  %v577 = vunpack.c.l.b16 %v456
  %v578 = vunpack.c.l.b16 %v457
  %v579 = vunpack.c.l.b16 %v458
  %v580 = vunpack.c.l.b16 %v459
  %v581 = vunpack.c.l.b16 %v460
  %v582 = vunpack.c.l.b16 %v461
  %v583 = vunpack.c.l.b16 %v462
  %v584 = vunpack.c.l.b16 %v463
  %v585 = vunpack.c.l.b16 %v464
  %v586 = vunpack.c.l.b16 %v465
  %v587 = vunpack.c.l.b16 %v466
  %v588 = vunpack.c.l.b16 %v467
  %v589 = vunpack.c.l.b16 %v468
  %v590 = vunpack.c.l.b16 %v469
  %v591 = vunpack.c.l.b16 %v470
  %v592 = vunpack.c.l.b16 %v471
  %v593 = vunpack.c.l.b16 %v472
  %v594 = vunpack.c.l.b16 %v473
  %v595 = vunpack.c.l.b16 %v474
  %v596 = vunpack.c.l.b16 %v475
  %v597 = vunpack.c.l.b16 %v476
  %v598 = vunpack.c.l.b16 %v477
  %v599 = vunpack.c.l.b16 %v478
  %v600 = vunpack.c.l.b16 %v479
  %v601 = vunpack.c.l.b16 %v480
  %v602 = vunpack.c.l.b16 %v481
  %v603 = vunpack.c.l.b16 %v482
  %v604 = vunpack.c.l.b16 %v483
  %v605 = vunpack.c.l.b16 %v484
  %v606 = vunpack.c.l.b16 %v485
  %v607 = vunpack.c.l.b16 %v486
  %v608 = vunpack.c.l.b16 %v487
  %v609 = vunpack.c.l.b16 %v488
  %v610 = vunpack.c.l.b16 %v489
  %v611 = vunpack.c.l.b16 %v490
  %v612 = vunpack.c.l.b16 %v491
  %v613 = vunpack.c.l.b16 %v492
  %v614 = vunpack.c.l.b16 %v493
  %v615 = vunpack.c.l.b16 %v494
  %v616 = vunpack.c.l.b16 %v495
  %v617 = vunpack.c.l.b16 %v496
  %v618 = vunpack.c.l.b16 %v497
  %v619 = vunpack.c.l.b16 %v498
  %v620 = vunpack.c.l.b16 %v499
  %v621 = vunpack.c.l.b16 %v500
  %v622 = vpack.c.b16 %v575, %v574
  %v623 = vpack.c.b16 %v577, %v576
  %v624 = vpack.c.b16 %v579, %v578
  %v625 = vpack.c.b16 %v581, %v580
  %v626 = vpack.c.b16 %v583, %v582
  %v627 = vpack.c.b16 %v585, %v584
  %v628 = vpack.c.b16 %v587, %v586
  %v629 = vpack.c.b16 %v589, %v588
  %v630 = vpack.c.b16 %v591, %v590
  %v631 = vpack.c.b16 %v593, %v592
  %v632 = vpack.c.b16 %v595, %v594
  %v633 = vpack.c.b16 %v597, %v596
  %v634 = vpack.c.b16 %v599, %v598
  %v635 = vpack.c.b16 %v601, %v600
  %v636 = vpack.c.b16 %v603, %v602
  %v637 = vpack.c.b16 %v605, %v604
  %v638 = vpack.c.b16 %v607, %v606
  %v639 = vpack.c.b16 %v609, %v608
  %v640 = vpack.c.b16 %v611, %v610
  %v641 = vpack.c.b16 %v613, %v612
  %v642 = vpack.c.b16 %v615, %v614
  %v643 = vpack.c.b16 %v617, %v616
  %v644 = vpack.c.b16 %v619, %v618
  %v645 = vpack.c.b16 %v621, %v620
  %670 = vmatpush.bf16.msra.mxu0 %v629
  %671 = vmatpush.bf16.msra.mxu0 %v628
  %672 = vmatpush.bf16.msra.mxu0 %v627
  %673 = vmatpush.bf16.msra.mxu0 %v626
  %674 = vmatpush.bf16.msra.mxu0 %v625
  %675 = vmatpush.bf16.msra.mxu0 %v624
  %676 = vmatpush.bf16.msra.mxu0 %v623
  %677 = vmatpush.bf16.msra.mxu0 %v622
  %678 = vmatmul.bf16.gmra.mxu0 %v520
  %v679 = vpop.f32.mrf.mxu0
  %v680 = vadd.f32 %v508, %v679
  %v681 = vpop.f32.mrf.mxu0
  %v682 = vadd.f32 %v508, %v681
  %683 = vdwg.mxu0
  %684 = vmatpush.bf16.msra.mxu0 %v637
  %685 = vmatpush.bf16.msra.mxu0 %v636
  %686 = vmatpush.bf16.msra.mxu0 %v635
  %687 = vmatpush.bf16.msra.mxu0 %v634
  %688 = vmatpush.bf16.msra.mxu0 %v633
  %689 = vmatpush.bf16.msra.mxu0 %v632
  %690 = vmatpush.bf16.msra.mxu0 %v631
  %691 = vmatpush.bf16.msra.mxu0 %v630
  %692 = vmatmul.bf16.gmra.mxu0 %v521
  %v693 = vpop.f32.mrf.mxu0
  %v694 = vadd.f32 %v680, %v693
  %v695 = vpop.f32.mrf.mxu0
  %v696 = vadd.f32 %v682, %v695
  %697 = vdwg.mxu0
  %698 = vmatpush.bf16.msra.mxu0 %v645
  %699 = vmatpush.bf16.msra.mxu0 %v644
  %700 = vmatpush.bf16.msra.mxu0 %v643
  %701 = vmatpush.bf16.msra.mxu0 %v642
  %702 = vmatpush.bf16.msra.mxu0 %v641
  %703 = vmatpush.bf16.msra.mxu0 %v640
  %704 = vmatpush.bf16.msra.mxu0 %v639
  %705 = vmatpush.bf16.msra.mxu0 %v638
  %706 = vmatmul.bf16.gmra.mxu0 %v522
  %v707 = vpop.f32.mrf.mxu0
  %v708 = vadd.f32 %v694, %v707
  %v709 = vpop.f32.mrf.mxu0
  %v710 = vadd.f32 %v696, %v709
  %711 = vdwg.mxu0
  %v712 = vsel %vm138, %v708, 0.0
  %v713 = vsel %vm138, %v710, 0.0
  %v714 = vadd.f32 %v712, %v713
  %v715 = vrot.slane %v714, 4
  %v716 = vadd.f32 %v714, %v715
  %v717 = vrot.slane %v716, 2
  %v718 = vadd.f32 %v716, %v717
  %v719 = vrot.slane %v718, 1
  %v720 = vadd.f32 %v718, %v719
  %v721 = vmul.f32 %v720, %v154
  %v722 = vsub.f32 %v708, %v721
  %v723 = vsub.f32 %v710, %v721
  %v724 = vmul.f32 %v722, %v722
  %v725 = vmul.f32 %v723, %v723
  %v726 = vsel %vm138, %v724, 0.0
  %v727 = vsel %vm138, %v725, 0.0
  %v728 = vadd.f32 %v726, %v727
  %v729 = vrot.slane %v728, 4
  %v730 = vadd.f32 %v728, %v729
  %v731 = vrot.slane %v730, 2
  %v732 = vadd.f32 %v730, %v731
  %v733 = vrot.slane %v732, 1
  %v734 = vadd.f32 %v732, %v733
  %v735 = vmul.f32 %v734, %v154
  %v736 = vadd.f32 %v735, 1e-05
  %v737 = vrsqrt.pop %v736
  %v738 = vmul.f32 %v737, %v736
  %v739 = vmul.f32 %v738, %v737
  %v740 = vmul.f32 0.5, %v739
  %v741 = vsub.f32 1.5, %v740
  %v742 = vmul.f32 %v737, %v741
  %vm743 = vweird.f32 %v736
  %vm744 = vweird.f32 %v737
  %vm745 = vmor %vm743, %vm744
  %v746 = vsel %vm745, %v737, %v742
  %v747 = vmul.f32 %v504, %v746
  %v749 = vperm.slane %v747, 0
  %v751 = vmul.f32 %v722, %v749
  %v752 = vmul.f32 %v723, %v749
  %v754 = vperm.slane %v506, 0
  %v756 = vadd.f32 %v751, %v754
  %v757 = vadd.f32 %v752, %v754
  %v758 = vmul.f32 %v756, 0.5
  %v759 = vmul.f32 %v757, 0.5
  %v760 = vtanh.pop %v758
  %v761 = vtanh.pop %v759
  %v762 = vmul.f32 %v760, 0.5
  %v763 = vmul.f32 %v761, 0.5
  %v764 = vadd.f32 %v762, 0.5
  %v765 = vadd.f32 %v763, 0.5
  %v766 = vmul.f32 %v756, %v764
  %v767 = vmul.f32 %v757, %v765
  %v768 = vpack.c.bf16 %v766, %v766
  %v769 = vpack.c.bf16 %v767, %v767
  %770 = vst.msk [vmem:[#allocation2 + $0xc] sm:$0xf] %vm204, %v768
  %771 = vst.msk [vmem:[#allocation2 + $0x34] sm:$0xf] %vm204, %v769
  %772 = vst.msk [vmem:[#allocation2 + $0xc] sm:$0xf] %vm207, 0
  %773 = vst.msk [vmem:[#allocation2 + $0x34] sm:$0xf] %vm207, 0
  %v774 = vld [vmem:[#allocation2] sm:$0xff]
  %v775 = vld [vmem:[#allocation2 + $0x8] sm:$0xff]
  %v776 = vld [vmem:[#allocation2 + $0x28] sm:$0xff]
  %v777 = vld [vmem:[#allocation2 + $0x30] sm:$0xff]
  %v778 = vld [vmem:[%s2 + $0x180] sm:$0xf]
  %v779 = vld [vmem:[%s2 + $0x184] sm:$0xf]
  %v780 = vld [vmem:[%s2 + $0x188] sm:$0xf]
  %v781 = vld [vmem:[%s2 + $0x18c] sm:$0xf]
  %v782 = vld [vmem:[%s2 + $0x190] sm:$0xf]
  %v783 = vld [vmem:[%s2 + $0x194] sm:$0xf]
  %v784 = vld [vmem:[%s2 + $0x198] sm:$0xf]
  %v785 = vld [vmem:[%s2 + $0x19c] sm:$0xf]
  %v786 = vld [vmem:[%s2 + $0x1a0] sm:$0xf]
  %v787 = vld [vmem:[%s2 + $0x1a4] sm:$0xf]
  %v788 = vld [vmem:[%s2 + $0x1a8] sm:$0xf]
  %v789 = vld [vmem:[%s2 + $0x1ac] sm:$0xf]
  %v790 = vld [vmem:[%s2 + $0x1b0] sm:$0xf]
  %v791 = vld [vmem:[%s2 + $0x1b4] sm:$0xf]
  %v792 = vld [vmem:[%s2 + $0x1b8] sm:$0xf]
  %v793 = vld [vmem:[%s2 + $0x1bc] sm:$0xf]
  %v794 = vld [vmem:[%s2 + $0x1c0] sm:$0xf]
  %v795 = vld [vmem:[%s2 + $0x1c4] sm:$0xf]
  %v796 = vld [vmem:[%s2 + $0x1c8] sm:$0xf]
  %v797 = vld [vmem:[%s2 + $0x1cc] sm:$0xf]
  %v798 = vld [vmem:[%s2 + $0x1d0] sm:$0xf]
  %v799 = vld [vmem:[%s2 + $0x1d4] sm:$0xf]
  %v800 = vld [vmem:[%s2 + $0x1d8] sm:$0xf]
  %v801 = vld [vmem:[%s2 + $0x1dc] sm:$0xf]
  %v802 = vld [vmem:[%s2 + $0x1e0] sm:$0xf]
  %v803 = vld [vmem:[%s2 + $0x1e4] sm:$0xf]
  %v804 = vld [vmem:[%s2 + $0x1e8] sm:$0xf]
  %v805 = vld [vmem:[%s2 + $0x1ec] sm:$0xf]
  %v806 = vld [vmem:[%s2 + $0x1f0] sm:$0xf]
  %v807 = vld [vmem:[%s2 + $0x1f4] sm:$0xf]
  %v808 = vld [vmem:[%s2 + $0x1f8] sm:$0xf]
  %v809 = vld [vmem:[%s2 + $0x1fc] sm:$0xf]
  %v810 = vld [vmem:[%s2 + $0x200] sm:$0xf]
  %v811 = vld [vmem:[%s2 + $0x204] sm:$0xf]
  %v812 = vld [vmem:[%s2 + $0x208] sm:$0xf]
  %v813 = vld [vmem:[%s2 + $0x20c] sm:$0xf]
  %v814 = vld [vmem:[%s2 + $0x210] sm:$0xf]
  %v815 = vld [vmem:[%s2 + $0x214] sm:$0xf]
  %v816 = vld [vmem:[%s2 + $0x218] sm:$0xf]
  %v817 = vld [vmem:[%s2 + $0x21c] sm:$0xf]
  %v818 = vld [vmem:[%s2 + $0x220] sm:$0xf]
  %v819 = vld [vmem:[%s2 + $0x224] sm:$0xf]
  %v820 = vld [vmem:[%s2 + $0x228] sm:$0xf]
  %v821 = vld [vmem:[%s2 + $0x22c] sm:$0xf]
  %v822 = vld [vmem:[%s2 + $0x230] sm:$0xf]
  %v823 = vld [vmem:[%s2 + $0x234] sm:$0xf]
  %v824 = vld [vmem:[%s2 + $0x238] sm:$0xf]
  %v825 = vld [vmem:[%s2 + $0x23c] sm:$0xf]
  %v826 = vld [vmem:[%s2 + $0x240] sm:$0xf]
  %v827 = vld [vmem:[%s2 + $0x244] sm:$0xf]
  %v828 = vld [vmem:[%s2 + $0x248] sm:$0xf]
  %v829 = vld [vmem:[%s2 + $0x24c] sm:$0xf]
  %v830 = vld [vmem:[%s2 + $0x250] sm:$0xf]
  %v831 = vld [vmem:[%s2 + $0x254] sm:$0xf]
  %v832 = vld [vmem:[%s2 + $0x258] sm:$0xf]
  %v833 = vld [vmem:[%s2 + $0x25c] sm:$0xf]
  %v834 = vld [vmem:[%s2 + $0x260] sm:$0xf]
  %v835 = vld [vmem:[%s2 + $0x264] sm:$0xf]
  %v836 = vld [vmem:[%s2 + $0x268] sm:$0xf]
  %v837 = vld [vmem:[%s2 + $0x26c] sm:$0xf]
  %v838 = vld [vmem:[%s2 + $0x270] sm:$0xf]
  %v839 = vld [vmem:[%s2 + $0x274] sm:$0xf]
  %v840 = vld [vmem:[%s2 + $0x278] sm:$0xf]
  %v841 = vld [vmem:[%s2 + $0x27c] sm:$0xf]
  %s842 = scalar_lea.vmem %s3, 9
  %v843 = vld [vmem:[%s842] sm:$0x1]
  %s844 = scalar_lea.vmem %s3, 10
  %v845 = vld [vmem:[%s844] sm:$0x1]
  %s846 = scalar_lea.vmem %s3, 11
  %v847 = vld [vmem:[%s846] sm:$0x1]
  %v849 = vperm.slane %v843, 0
  %v855 = vunpack.c.l.b16 %v774
  %v856 = vunpack.c.h.b16 %v774
  %v857 = vunpack.c.l.b16 %v775
  %v858 = vunpack.c.h.b16 %v775
  %v859 = vunpack.c.l.b16 %v776
  %v860 = vunpack.c.h.b16 %v776
  %v861 = vunpack.c.l.b16 %v777
  %v862 = vunpack.c.h.b16 %v777
  %v863 = vpack.c.b16 %v859, %v855
  %v864 = vpack.c.b16 %v860, %v856
  %v865 = vpack.c.b16 %v861, %v857
  %v866 = vpack.c.b16 %v862, %v858
  %v935 = vunpack.c.l.b16 %v778
  %v936 = vunpack.c.l.b16 %v779
  %v937 = vunpack.c.l.b16 %v780
  %v938 = vunpack.c.l.b16 %v781
  %v939 = vunpack.c.l.b16 %v782
  %v940 = vunpack.c.l.b16 %v783
  %v941 = vunpack.c.l.b16 %v784
  %v942 = vunpack.c.l.b16 %v785
  %v943 = vunpack.c.l.b16 %v786
  %v944 = vunpack.c.l.b16 %v787
  %v945 = vunpack.c.l.b16 %v788
  %v946 = vunpack.c.l.b16 %v789
  %v947 = vunpack.c.l.b16 %v790
  %v948 = vunpack.c.l.b16 %v791
  %v949 = vunpack.c.l.b16 %v792
  %v950 = vunpack.c.l.b16 %v793
  %v951 = vunpack.c.l.b16 %v794
  %v952 = vunpack.c.l.b16 %v795
  %v953 = vunpack.c.l.b16 %v796
  %v954 = vunpack.c.l.b16 %v797
  %v955 = vunpack.c.l.b16 %v798
  %v956 = vunpack.c.l.b16 %v799
  %v957 = vunpack.c.l.b16 %v800
  %v958 = vunpack.c.l.b16 %v801
  %v959 = vunpack.c.l.b16 %v802
  %v960 = vunpack.c.l.b16 %v803
  %v961 = vunpack.c.l.b16 %v804
  %v962 = vunpack.c.l.b16 %v805
  %v963 = vunpack.c.l.b16 %v806
  %v964 = vunpack.c.l.b16 %v807
  %v965 = vunpack.c.l.b16 %v808
  %v966 = vunpack.c.l.b16 %v809
  %v967 = vunpack.c.l.b16 %v810
  %v968 = vunpack.c.l.b16 %v811
  %v969 = vunpack.c.l.b16 %v812
  %v970 = vunpack.c.l.b16 %v813
  %v971 = vunpack.c.l.b16 %v814
  %v972 = vunpack.c.l.b16 %v815
  %v973 = vunpack.c.l.b16 %v816
  %v974 = vunpack.c.l.b16 %v817
  %v975 = vunpack.c.l.b16 %v818
  %v976 = vunpack.c.l.b16 %v819
  %v977 = vunpack.c.l.b16 %v820
  %v978 = vunpack.c.l.b16 %v821
  %v979 = vunpack.c.l.b16 %v822
  %v980 = vunpack.c.l.b16 %v823
  %v981 = vunpack.c.l.b16 %v824
  %v982 = vunpack.c.l.b16 %v825
  %v983 = vunpack.c.l.b16 %v826
  %v984 = vunpack.c.l.b16 %v827
  %v985 = vunpack.c.l.b16 %v828
  %v986 = vunpack.c.l.b16 %v829
  %v987 = vunpack.c.l.b16 %v830
  %v988 = vunpack.c.l.b16 %v831
  %v989 = vunpack.c.l.b16 %v832
  %v990 = vunpack.c.l.b16 %v833
  %v991 = vunpack.c.l.b16 %v834
  %v992 = vunpack.c.l.b16 %v835
  %v993 = vunpack.c.l.b16 %v836
  %v994 = vunpack.c.l.b16 %v837
  %v995 = vunpack.c.l.b16 %v838
  %v996 = vunpack.c.l.b16 %v839
  %v997 = vunpack.c.l.b16 %v840
  %v998 = vunpack.c.l.b16 %v841
  %v999 = vpack.c.b16 %v936, %v935
  %v1000 = vpack.c.b16 %v938, %v937
  %v1001 = vpack.c.b16 %v940, %v939
  %v1002 = vpack.c.b16 %v942, %v941
  %v1003 = vpack.c.b16 %v944, %v943
  %v1004 = vpack.c.b16 %v946, %v945
  %v1005 = vpack.c.b16 %v948, %v947
  %v1006 = vpack.c.b16 %v950, %v949
  %v1007 = vpack.c.b16 %v952, %v951
  %v1008 = vpack.c.b16 %v954, %v953
  %v1009 = vpack.c.b16 %v956, %v955
  %v1010 = vpack.c.b16 %v958, %v957
  %v1011 = vpack.c.b16 %v960, %v959
  %v1012 = vpack.c.b16 %v962, %v961
  %v1013 = vpack.c.b16 %v964, %v963
  %v1014 = vpack.c.b16 %v966, %v965
  %v1015 = vpack.c.b16 %v968, %v967
  %v1016 = vpack.c.b16 %v970, %v969
  %v1017 = vpack.c.b16 %v972, %v971
  %v1018 = vpack.c.b16 %v974, %v973
  %v1019 = vpack.c.b16 %v976, %v975
  %v1020 = vpack.c.b16 %v978, %v977
  %v1021 = vpack.c.b16 %v980, %v979
  %v1022 = vpack.c.b16 %v982, %v981
  %v1023 = vpack.c.b16 %v984, %v983
  %v1024 = vpack.c.b16 %v986, %v985
  %v1025 = vpack.c.b16 %v988, %v987
  %v1026 = vpack.c.b16 %v990, %v989
  %v1027 = vpack.c.b16 %v992, %v991
  %v1028 = vpack.c.b16 %v994, %v993
  %v1029 = vpack.c.b16 %v996, %v995
  %v1030 = vpack.c.b16 %v998, %v997
  %1063 = vmatpush.bf16.msra.mxu0 %v1006
  %1064 = vmatpush.bf16.msra.mxu0 %v1005
  %1065 = vmatpush.bf16.msra.mxu0 %v1004
  %1066 = vmatpush.bf16.msra.mxu0 %v1003
  %1067 = vmatpush.bf16.msra.mxu0 %v1002
  %1068 = vmatpush.bf16.msra.mxu0 %v1001
  %1069 = vmatpush.bf16.msra.mxu0 %v1000
  %1070 = vmatpush.bf16.msra.mxu0 %v999
  %1071 = vmatmul.bf16.gmra.mxu0 %v863
  %v1072 = vpop.f32.mrf.mxu0
  %v1073 = vadd.f32 %v849, %v1072
  %v1074 = vpop.f32.mrf.mxu0
  %v1075 = vadd.f32 %v849, %v1074
  %1076 = vdwg.mxu0
  %1077 = vmatpush.bf16.msra.mxu0 %v1014
  %1078 = vmatpush.bf16.msra.mxu0 %v1013
  %1079 = vmatpush.bf16.msra.mxu0 %v1012
  %1080 = vmatpush.bf16.msra.mxu0 %v1011
  %1081 = vmatpush.bf16.msra.mxu0 %v1010
  %1082 = vmatpush.bf16.msra.mxu0 %v1009
  %1083 = vmatpush.bf16.msra.mxu0 %v1008
  %1084 = vmatpush.bf16.msra.mxu0 %v1007
  %1085 = vmatmul.bf16.gmra.mxu0 %v864
  %v1086 = vpop.f32.mrf.mxu0
  %v1087 = vadd.f32 %v1073, %v1086
  %v1088 = vpop.f32.mrf.mxu0
  %v1089 = vadd.f32 %v1075, %v1088
  %1090 = vdwg.mxu0
  %1091 = vmatpush.bf16.msra.mxu0 %v1022
  %1092 = vmatpush.bf16.msra.mxu0 %v1021
  %1093 = vmatpush.bf16.msra.mxu0 %v1020
  %1094 = vmatpush.bf16.msra.mxu0 %v1019
  %1095 = vmatpush.bf16.msra.mxu0 %v1018
  %1096 = vmatpush.bf16.msra.mxu0 %v1017
  %1097 = vmatpush.bf16.msra.mxu0 %v1016
  %1098 = vmatpush.bf16.msra.mxu0 %v1015
  %1099 = vmatmul.bf16.gmra.mxu0 %v865
  %v1100 = vpop.f32.mrf.mxu0
  %v1101 = vadd.f32 %v1087, %v1100
  %v1102 = vpop.f32.mrf.mxu0
  %v1103 = vadd.f32 %v1089, %v1102
  %1104 = vdwg.mxu0
  %1105 = vmatpush.bf16.msra.mxu0 %v1030
  %1106 = vmatpush.bf16.msra.mxu0 %v1029
  %1107 = vmatpush.bf16.msra.mxu0 %v1028
  %1108 = vmatpush.bf16.msra.mxu0 %v1027
  %1109 = vmatpush.bf16.msra.mxu0 %v1026
  %1110 = vmatpush.bf16.msra.mxu0 %v1025
  %1111 = vmatpush.bf16.msra.mxu0 %v1024
  %1112 = vmatpush.bf16.msra.mxu0 %v1023
  %1113 = vmatmul.bf16.gmra.mxu0 %v866
  %v1114 = vpop.f32.mrf.mxu0
  %v1115 = vadd.f32 %v1101, %v1114
  %v1116 = vpop.f32.mrf.mxu0
  %v1117 = vadd.f32 %v1103, %v1116
  %1118 = vdwg.mxu0
  %v1119 = vsel %vm138, %v1115, 0.0
  %v1120 = vsel %vm138, %v1117, 0.0
  %v1121 = vadd.f32 %v1119, %v1120
  %v1122 = vrot.slane %v1121, 4
  %v1123 = vadd.f32 %v1121, %v1122
  %v1124 = vrot.slane %v1123, 2
  %v1125 = vadd.f32 %v1123, %v1124
  %v1126 = vrot.slane %v1125, 1
  %v1127 = vadd.f32 %v1125, %v1126
  %v1128 = vmul.f32 %v1127, %v154
  %v1129 = vsub.f32 %v1115, %v1128
  %v1130 = vsub.f32 %v1117, %v1128
  %v1131 = vmul.f32 %v1129, %v1129
  %v1132 = vmul.f32 %v1130, %v1130
  %v1133 = vsel %vm138, %v1131, 0.0
  %v1134 = vsel %vm138, %v1132, 0.0
  %v1135 = vadd.f32 %v1133, %v1134
  %v1136 = vrot.slane %v1135, 4
  %v1137 = vadd.f32 %v1135, %v1136
  %v1138 = vrot.slane %v1137, 2
  %v1139 = vadd.f32 %v1137, %v1138
  %v1140 = vrot.slane %v1139, 1
  %v1141 = vadd.f32 %v1139, %v1140
  %v1142 = vmul.f32 %v1141, %v154
  %v1143 = vadd.f32 %v1142, 1e-05
  %v1144 = vrsqrt.pop %v1143
  %v1145 = vmul.f32 %v1144, %v1143
  %v1146 = vmul.f32 %v1145, %v1144
  %v1147 = vmul.f32 0.5, %v1146
  %v1148 = vsub.f32 1.5, %v1147
  %v1149 = vmul.f32 %v1144, %v1148
  %vm1150 = vweird.f32 %v1143
  %vm1151 = vweird.f32 %v1144
  %vm1152 = vmor %vm1150, %vm1151
  %v1153 = vsel %vm1152, %v1144, %v1149
  %v1154 = vmul.f32 %v845, %v1153
  %v1156 = vperm.slane %v1154, 0
  %v1158 = vmul.f32 %v1129, %v1156
  %v1159 = vmul.f32 %v1130, %v1156
  %v1161 = vperm.slane %v847, 0
  %v1163 = vadd.f32 %v1158, %v1161
  %v1164 = vadd.f32 %v1159, %v1161
  %v1165 = vmul.f32 %v1163, 0.5
  %v1166 = vmul.f32 %v1164, 0.5
  %v1167 = vtanh.pop %v1165
  %v1168 = vtanh.pop %v1166
  %v1169 = vmul.f32 %v1167, 0.5
  %v1170 = vmul.f32 %v1168, 0.5
  %v1171 = vadd.f32 %v1169, 0.5
  %v1172 = vadd.f32 %v1170, 0.5
  %v1173 = vmul.f32 %v1163, %v1171
  %v1174 = vmul.f32 %v1164, %v1172
  %v1175 = vpack.c.bf16 %v1173, %v1173
  %v1176 = vpack.c.bf16 %v1174, %v1174
  %1177 = vst.msk [vmem:[#allocation2 + $0x10] sm:$0xf] %vm204, %v1175
  %1178 = vst.msk [vmem:[#allocation2 + $0x38] sm:$0xf] %vm204, %v1176
  %1179 = vst.msk [vmem:[#allocation2 + $0x10] sm:$0xf] %vm207, 0
  %1180 = vst.msk [vmem:[#allocation2 + $0x38] sm:$0xf] %vm207, 0
  %v1181 = vld [vmem:[#allocation2] sm:$0xff]
  %v1182 = vld [vmem:[#allocation2 + $0x8] sm:$0xff]
  %v1183 = vld [vmem:[#allocation2 + $0x10] sm:$0xff]
  %v1184 = vld [vmem:[#allocation2 + $0x28] sm:$0xff]
  %v1185 = vld [vmem:[#allocation2 + $0x30] sm:$0xff]
  %v1186 = vld [vmem:[#allocation2 + $0x38] sm:$0xff]
  %v1187 = vld [vmem:[%s2 + $0x280] sm:$0xf]
  %v1188 = vld [vmem:[%s2 + $0x284] sm:$0xf]
  %v1189 = vld [vmem:[%s2 + $0x288] sm:$0xf]
  %v1190 = vld [vmem:[%s2 + $0x28c] sm:$0xf]
  %v1191 = vld [vmem:[%s2 + $0x290] sm:$0xf]
  %v1192 = vld [vmem:[%s2 + $0x294] sm:$0xf]
  %v1193 = vld [vmem:[%s2 + $0x298] sm:$0xf]
  %v1194 = vld [vmem:[%s2 + $0x29c] sm:$0xf]
  %v1195 = vld [vmem:[%s2 + $0x2a0] sm:$0xf]
  %v1196 = vld [vmem:[%s2 + $0x2a4] sm:$0xf]
  %v1197 = vld [vmem:[%s2 + $0x2a8] sm:$0xf]
  %v1198 = vld [vmem:[%s2 + $0x2ac] sm:$0xf]
  %v1199 = vld [vmem:[%s2 + $0x2b0] sm:$0xf]
  %v1200 = vld [vmem:[%s2 + $0x2b4] sm:$0xf]
  %v1201 = vld [vmem:[%s2 + $0x2b8] sm:$0xf]
  %v1202 = vld [vmem:[%s2 + $0x2bc] sm:$0xf]
  %v1203 = vld [vmem:[%s2 + $0x2c0] sm:$0xf]
  %v1204 = vld [vmem:[%s2 + $0x2c4] sm:$0xf]
  %v1205 = vld [vmem:[%s2 + $0x2c8] sm:$0xf]
  %v1206 = vld [vmem:[%s2 + $0x2cc] sm:$0xf]
  %v1207 = vld [vmem:[%s2 + $0x2d0] sm:$0xf]
  %v1208 = vld [vmem:[%s2 + $0x2d4] sm:$0xf]
  %v1209 = vld [vmem:[%s2 + $0x2d8] sm:$0xf]
  %v1210 = vld [vmem:[%s2 + $0x2dc] sm:$0xf]
  %v1211 = vld [vmem:[%s2 + $0x2e0] sm:$0xf]
  %v1212 = vld [vmem:[%s2 + $0x2e4] sm:$0xf]
  %v1213 = vld [vmem:[%s2 + $0x2e8] sm:$0xf]
  %v1214 = vld [vmem:[%s2 + $0x2ec] sm:$0xf]
  %v1215 = vld [vmem:[%s2 + $0x2f0] sm:$0xf]
  %v1216 = vld [vmem:[%s2 + $0x2f4] sm:$0xf]
  %v1217 = vld [vmem:[%s2 + $0x2f8] sm:$0xf]
  %v1218 = vld [vmem:[%s2 + $0x2fc] sm:$0xf]
  %v1219 = vld [vmem:[%s2 + $0x300] sm:$0xf]
  %v1220 = vld [vmem:[%s2 + $0x304] sm:$0xf]
  %v1221 = vld [vmem:[%s2 + $0x308] sm:$0xf]
  %v1222 = vld [vmem:[%s2 + $0x30c] sm:$0xf]
  %v1223 = vld [vmem:[%s2 + $0x310] sm:$0xf]
  %v1224 = vld [vmem:[%s2 + $0x314] sm:$0xf]
  %v1225 = vld [vmem:[%s2 + $0x318] sm:$0xf]
  %v1226 = vld [vmem:[%s2 + $0x31c] sm:$0xf]
  %v1227 = vld [vmem:[%s2 + $0x320] sm:$0xf]
  %v1228 = vld [vmem:[%s2 + $0x324] sm:$0xf]
  %v1229 = vld [vmem:[%s2 + $0x328] sm:$0xf]
  %v1230 = vld [vmem:[%s2 + $0x32c] sm:$0xf]
  %v1231 = vld [vmem:[%s2 + $0x330] sm:$0xf]
  %v1232 = vld [vmem:[%s2 + $0x334] sm:$0xf]
  %v1233 = vld [vmem:[%s2 + $0x338] sm:$0xf]
  %v1234 = vld [vmem:[%s2 + $0x33c] sm:$0xf]
  %v1235 = vld [vmem:[%s2 + $0x340] sm:$0xf]
  %v1236 = vld [vmem:[%s2 + $0x344] sm:$0xf]
  %v1237 = vld [vmem:[%s2 + $0x348] sm:$0xf]
  %v1238 = vld [vmem:[%s2 + $0x34c] sm:$0xf]
  %v1239 = vld [vmem:[%s2 + $0x350] sm:$0xf]
  %v1240 = vld [vmem:[%s2 + $0x354] sm:$0xf]
  %v1241 = vld [vmem:[%s2 + $0x358] sm:$0xf]
  %v1242 = vld [vmem:[%s2 + $0x35c] sm:$0xf]
  %v1243 = vld [vmem:[%s2 + $0x360] sm:$0xf]
  %v1244 = vld [vmem:[%s2 + $0x364] sm:$0xf]
  %v1245 = vld [vmem:[%s2 + $0x368] sm:$0xf]
  %v1246 = vld [vmem:[%s2 + $0x36c] sm:$0xf]
  %v1247 = vld [vmem:[%s2 + $0x370] sm:$0xf]
  %v1248 = vld [vmem:[%s2 + $0x374] sm:$0xf]
  %v1249 = vld [vmem:[%s2 + $0x378] sm:$0xf]
  %v1250 = vld [vmem:[%s2 + $0x37c] sm:$0xf]
  %v1251 = vld [vmem:[%s2 + $0x380] sm:$0xf]
  %v1252 = vld [vmem:[%s2 + $0x384] sm:$0xf]
  %v1253 = vld [vmem:[%s2 + $0x388] sm:$0xf]
  %v1254 = vld [vmem:[%s2 + $0x38c] sm:$0xf]
  %v1255 = vld [vmem:[%s2 + $0x390] sm:$0xf]
  %v1256 = vld [vmem:[%s2 + $0x394] sm:$0xf]
  %v1257 = vld [vmem:[%s2 + $0x398] sm:$0xf]
  %v1258 = vld [vmem:[%s2 + $0x39c] sm:$0xf]
  %v1259 = vld [vmem:[%s2 + $0x3a0] sm:$0xf]
  %v1260 = vld [vmem:[%s2 + $0x3a4] sm:$0xf]
  %v1261 = vld [vmem:[%s2 + $0x3a8] sm:$0xf]
  %v1262 = vld [vmem:[%s2 + $0x3ac] sm:$0xf]
  %v1263 = vld [vmem:[%s2 + $0x3b0] sm:$0xf]
  %v1264 = vld [vmem:[%s2 + $0x3b4] sm:$0xf]
  %v1265 = vld [vmem:[%s2 + $0x3b8] sm:$0xf]
  %v1266 = vld [vmem:[%s2 + $0x3bc] sm:$0xf]
  %v1267 = vld [vmem:[%s2 + $0x3c0] sm:$0xf]
  %v1268 = vld [vmem:[%s2 + $0x3c4] sm:$0xf]
  %v1269 = vld [vmem:[%s2 + $0x3c8] sm:$0xf]
  %v1270 = vld [vmem:[%s2 + $0x3cc] sm:$0xf]
  %v1271 = vld [vmem:[%s2 + $0x3d0] sm:$0xf]
  %v1272 = vld [vmem:[%s2 + $0x3d4] sm:$0xf]
  %v1273 = vld [vmem:[%s2 + $0x3d8] sm:$0xf]
  %v1274 = vld [vmem:[%s2 + $0x3dc] sm:$0xf]
  %v1275 = vld [vmem:[%s2 + $0x3e0] sm:$0xf]
  %v1276 = vld [vmem:[%s2 + $0x3e4] sm:$0xf]
  %v1277 = vld [vmem:[%s2 + $0x3e8] sm:$0xf]
  %v1278 = vld [vmem:[%s2 + $0x3ec] sm:$0xf]
  %v1279 = vld [vmem:[%s2 + $0x3f0] sm:$0xf]
  %v1280 = vld [vmem:[%s2 + $0x3f4] sm:$0xf]
  %v1281 = vld [vmem:[%s2 + $0x3f8] sm:$0xf]
  %v1282 = vld [vmem:[%s2 + $0x3fc] sm:$0xf]
  %s1283 = scalar_lea.vmem %s3, 12
  %v1284 = vld [vmem:[%s1283] sm:$0x1]
  %s1285 = scalar_lea.vmem %s3, 13
  %v1286 = vld [vmem:[%s1285] sm:$0x1]
  %s1287 = scalar_lea.vmem %s3, 14
  %v1288 = vld [vmem:[%s1287] sm:$0x1]
  %v1290 = vperm.slane %v1284, 0
  %v1298 = vunpack.c.l.b16 %v1181
  %v1299 = vunpack.c.h.b16 %v1181
  %v1300 = vunpack.c.l.b16 %v1182
  %v1301 = vunpack.c.h.b16 %v1182
  %v1302 = vunpack.c.l.b16 %v1183
  %v1303 = vunpack.c.h.b16 %v1183
  %v1304 = vunpack.c.l.b16 %v1184
  %v1305 = vunpack.c.h.b16 %v1184
  %v1306 = vunpack.c.l.b16 %v1185
  %v1307 = vunpack.c.h.b16 %v1185
  %v1308 = vunpack.c.l.b16 %v1186
  %v1309 = vunpack.c.h.b16 %v1186
  %v1310 = vpack.c.b16 %v1304, %v1298
  %v1311 = vpack.c.b16 %v1305, %v1299
  %v1312 = vpack.c.b16 %v1306, %v1300
  %v1313 = vpack.c.b16 %v1307, %v1301
  %v1314 = vpack.c.b16 %v1308, %v1302
  %v1315 = vpack.c.b16 %v1309, %v1303
  %v1418 = vunpack.c.l.b16 %v1187
  %v1419 = vunpack.c.l.b16 %v1188
  %v1420 = vunpack.c.l.b16 %v1189
  %v1421 = vunpack.c.l.b16 %v1190
  %v1422 = vunpack.c.l.b16 %v1191
  %v1423 = vunpack.c.l.b16 %v1192
  %v1424 = vunpack.c.l.b16 %v1193
  %v1425 = vunpack.c.l.b16 %v1194
  %v1426 = vunpack.c.l.b16 %v1195
  %v1427 = vunpack.c.l.b16 %v1196
  %v1428 = vunpack.c.l.b16 %v1197
  %v1429 = vunpack.c.l.b16 %v1198
  %v1430 = vunpack.c.l.b16 %v1199
  %v1431 = vunpack.c.l.b16 %v1200
  %v1432 = vunpack.c.l.b16 %v1201
  %v1433 = vunpack.c.l.b16 %v1202
  %v1434 = vunpack.c.l.b16 %v1203
  %v1435 = vunpack.c.l.b16 %v1204
  %v1436 = vunpack.c.l.b16 %v1205
  %v1437 = vunpack.c.l.b16 %v1206
  %v1438 = vunpack.c.l.b16 %v1207
  %v1439 = vunpack.c.l.b16 %v1208
  %v1440 = vunpack.c.l.b16 %v1209
  %v1441 = vunpack.c.l.b16 %v1210
  %v1442 = vunpack.c.l.b16 %v1211
  %v1443 = vunpack.c.l.b16 %v1212
  %v1444 = vunpack.c.l.b16 %v1213
  %v1445 = vunpack.c.l.b16 %v1214
  %v1446 = vunpack.c.l.b16 %v1215
  %v1447 = vunpack.c.l.b16 %v1216
  %v1448 = vunpack.c.l.b16 %v1217
  %v1449 = vunpack.c.l.b16 %v1218
  %v1450 = vunpack.c.l.b16 %v1219
  %v1451 = vunpack.c.l.b16 %v1220
  %v1452 = vunpack.c.l.b16 %v1221
  %v1453 = vunpack.c.l.b16 %v1222
  %v1454 = vunpack.c.l.b16 %v1223
  %v1455 = vunpack.c.l.b16 %v1224
  %v1456 = vunpack.c.l.b16 %v1225
  %v1457 = vunpack.c.l.b16 %v1226
  %v1458 = vunpack.c.l.b16 %v1227
  %v1459 = vunpack.c.l.b16 %v1228
  %v1460 = vunpack.c.l.b16 %v1229
  %v1461 = vunpack.c.l.b16 %v1230
  %v1462 = vunpack.c.l.b16 %v1231
  %v1463 = vunpack.c.l.b16 %v1232
  %v1464 = vunpack.c.l.b16 %v1233
  %v1465 = vunpack.c.l.b16 %v1234
  %v1466 = vunpack.c.l.b16 %v1235
  %v1467 = vunpack.c.l.b16 %v1236
  %v1468 = vunpack.c.l.b16 %v1237
  %v1469 = vunpack.c.l.b16 %v1238
  %v1470 = vunpack.c.l.b16 %v1239
  %v1471 = vunpack.c.l.b16 %v1240
  %v1472 = vunpack.c.l.b16 %v1241
  %v1473 = vunpack.c.l.b16 %v1242
  %v1474 = vunpack.c.l.b16 %v1243
  %v1475 = vunpack.c.l.b16 %v1244
  %v1476 = vunpack.c.l.b16 %v1245
  %v1477 = vunpack.c.l.b16 %v1246
  %v1478 = vunpack.c.l.b16 %v1247
  %v1479 = vunpack.c.l.b16 %v1248
  %v1480 = vunpack.c.l.b16 %v1249
  %v1481 = vunpack.c.l.b16 %v1250
  %v1482 = vunpack.c.l.b16 %v1251
  %v1483 = vunpack.c.l.b16 %v1252
  %v1484 = vunpack.c.l.b16 %v1253
  %v1485 = vunpack.c.l.b16 %v1254
  %v1486 = vunpack.c.l.b16 %v1255
  %v1487 = vunpack.c.l.b16 %v1256
  %v1488 = vunpack.c.l.b16 %v1257
  %v1489 = vunpack.c.l.b16 %v1258
  %v1490 = vunpack.c.l.b16 %v1259
  %v1491 = vunpack.c.l.b16 %v1260
  %v1492 = vunpack.c.l.b16 %v1261
  %v1493 = vunpack.c.l.b16 %v1262
  %v1494 = vunpack.c.l.b16 %v1263
  %v1495 = vunpack.c.l.b16 %v1264
  %v1496 = vunpack.c.l.b16 %v1265
  %v1497 = vunpack.c.l.b16 %v1266
  %v1498 = vunpack.c.l.b16 %v1267
  %v1499 = vunpack.c.l.b16 %v1268
  %v1500 = vunpack.c.l.b16 %v1269
  %v1501 = vunpack.c.l.b16 %v1270
  %v1502 = vunpack.c.l.b16 %v1271
  %v1503 = vunpack.c.l.b16 %v1272
  %v1504 = vunpack.c.l.b16 %v1273
  %v1505 = vunpack.c.l.b16 %v1274
  %v1506 = vunpack.c.l.b16 %v1275
  %v1507 = vunpack.c.l.b16 %v1276
  %v1508 = vunpack.c.l.b16 %v1277
  %v1509 = vunpack.c.l.b16 %v1278
  %v1510 = vunpack.c.l.b16 %v1279
  %v1511 = vunpack.c.l.b16 %v1280
  %v1512 = vunpack.c.l.b16 %v1281
  %v1513 = vunpack.c.l.b16 %v1282
  %v1514 = vpack.c.b16 %v1419, %v1418
  %v1515 = vpack.c.b16 %v1421, %v1420
  %v1516 = vpack.c.b16 %v1423, %v1422
  %v1517 = vpack.c.b16 %v1425, %v1424
  %v1518 = vpack.c.b16 %v1427, %v1426
  %v1519 = vpack.c.b16 %v1429, %v1428
  %v1520 = vpack.c.b16 %v1431, %v1430
  %v1521 = vpack.c.b16 %v1433, %v1432
  %v1522 = vpack.c.b16 %v1435, %v1434
  %v1523 = vpack.c.b16 %v1437, %v1436
  %v1524 = vpack.c.b16 %v1439, %v1438
  %v1525 = vpack.c.b16 %v1441, %v1440
  %v1526 = vpack.c.b16 %v1443, %v1442
  %v1527 = vpack.c.b16 %v1445, %v1444
  %v1528 = vpack.c.b16 %v1447, %v1446
  %v1529 = vpack.c.b16 %v1449, %v1448
  %v1530 = vpack.c.b16 %v1451, %v1450
  %v1531 = vpack.c.b16 %v1453, %v1452
  %v1532 = vpack.c.b16 %v1455, %v1454
  %v1533 = vpack.c.b16 %v1457, %v1456
  %v1534 = vpack.c.b16 %v1459, %v1458
  %v1535 = vpack.c.b16 %v1461, %v1460
  %v1536 = vpack.c.b16 %v1463, %v1462
  %v1537 = vpack.c.b16 %v1465, %v1464
  %v1538 = vpack.c.b16 %v1467, %v1466
  %v1539 = vpack.c.b16 %v1469, %v1468
  %v1540 = vpack.c.b16 %v1471, %v1470
  %v1541 = vpack.c.b16 %v1473, %v1472
  %v1542 = vpack.c.b16 %v1475, %v1474
  %v1543 = vpack.c.b16 %v1477, %v1476
  %v1544 = vpack.c.b16 %v1479, %v1478
  %v1545 = vpack.c.b16 %v1481, %v1480
  %v1546 = vpack.c.b16 %v1483, %v1482
  %v1547 = vpack.c.b16 %v1485, %v1484
  %v1548 = vpack.c.b16 %v1487, %v1486
  %v1549 = vpack.c.b16 %v1489, %v1488
  %v1550 = vpack.c.b16 %v1491, %v1490
  %v1551 = vpack.c.b16 %v1493, %v1492
  %v1552 = vpack.c.b16 %v1495, %v1494
  %v1553 = vpack.c.b16 %v1497, %v1496
  %v1554 = vpack.c.b16 %v1499, %v1498
  %v1555 = vpack.c.b16 %v1501, %v1500
  %v1556 = vpack.c.b16 %v1503, %v1502
  %v1557 = vpack.c.b16 %v1505, %v1504
  %v1558 = vpack.c.b16 %v1507, %v1506
  %v1559 = vpack.c.b16 %v1509, %v1508
  %v1560 = vpack.c.b16 %v1511, %v1510
  %v1561 = vpack.c.b16 %v1513, %v1512
  %1610 = vmatpush.bf16.msra.mxu0 %v1521
  %1611 = vmatpush.bf16.msra.mxu0 %v1520
  %1612 = vmatpush.bf16.msra.mxu0 %v1519
  %1613 = vmatpush.bf16.msra.mxu0 %v1518
  %1614 = vmatpush.bf16.msra.mxu0 %v1517
  %1615 = vmatpush.bf16.msra.mxu0 %v1516
  %1616 = vmatpush.bf16.msra.mxu0 %v1515
  %1617 = vmatpush.bf16.msra.mxu0 %v1514
  %1618 = vmatmul.bf16.gmra.mxu0 %v1310
  %v1619 = vpop.f32.mrf.mxu0
  %v1620 = vadd.f32 %v1290, %v1619
  %v1621 = vpop.f32.mrf.mxu0
  %v1622 = vadd.f32 %v1290, %v1621
  %1623 = vdwg.mxu0
  %1624 = vmatpush.bf16.msra.mxu0 %v1529
  %1625 = vmatpush.bf16.msra.mxu0 %v1528
  %1626 = vmatpush.bf16.msra.mxu0 %v1527
  %1627 = vmatpush.bf16.msra.mxu0 %v1526
  %1628 = vmatpush.bf16.msra.mxu0 %v1525
  %1629 = vmatpush.bf16.msra.mxu0 %v1524
  %1630 = vmatpush.bf16.msra.mxu0 %v1523
  %1631 = vmatpush.bf16.msra.mxu0 %v1522
  %1632 = vmatmul.bf16.gmra.mxu0 %v1311
  %v1633 = vpop.f32.mrf.mxu0
  %v1634 = vadd.f32 %v1620, %v1633
  %v1635 = vpop.f32.mrf.mxu0
  %v1636 = vadd.f32 %v1622, %v1635
  %1637 = vdwg.mxu0
  %1638 = vmatpush.bf16.msra.mxu0 %v1537
  %1639 = vmatpush.bf16.msra.mxu0 %v1536
  %1640 = vmatpush.bf16.msra.mxu0 %v1535
  %1641 = vmatpush.bf16.msra.mxu0 %v1534
  %1642 = vmatpush.bf16.msra.mxu0 %v1533
  %1643 = vmatpush.bf16.msra.mxu0 %v1532
  %1644 = vmatpush.bf16.msra.mxu0 %v1531
  %1645 = vmatpush.bf16.msra.mxu0 %v1530
  %1646 = vmatmul.bf16.gmra.mxu0 %v1312
  %v1647 = vpop.f32.mrf.mxu0
  %v1648 = vadd.f32 %v1634, %v1647
  %v1649 = vpop.f32.mrf.mxu0
  %v1650 = vadd.f32 %v1636, %v1649
  %1651 = vdwg.mxu0
  %1652 = vmatpush.bf16.msra.mxu0 %v1545
  %1653 = vmatpush.bf16.msra.mxu0 %v1544
  %1654 = vmatpush.bf16.msra.mxu0 %v1543
  %1655 = vmatpush.bf16.msra.mxu0 %v1542
  %1656 = vmatpush.bf16.msra.mxu0 %v1541
  %1657 = vmatpush.bf16.msra.mxu0 %v1540
  %1658 = vmatpush.bf16.msra.mxu0 %v1539
  %1659 = vmatpush.bf16.msra.mxu0 %v1538
  %1660 = vmatmul.bf16.gmra.mxu0 %v1313
  %v1661 = vpop.f32.mrf.mxu0
  %v1662 = vadd.f32 %v1648, %v1661
  %v1663 = vpop.f32.mrf.mxu0
  %v1664 = vadd.f32 %v1650, %v1663
  %1665 = vdwg.mxu0
  %1666 = vmatpush.bf16.msra.mxu0 %v1553
  %1667 = vmatpush.bf16.msra.mxu0 %v1552
  %1668 = vmatpush.bf16.msra.mxu0 %v1551
  %1669 = vmatpush.bf16.msra.mxu0 %v1550
  %1670 = vmatpush.bf16.msra.mxu0 %v1549
  %1671 = vmatpush.bf16.msra.mxu0 %v1548
  %1672 = vmatpush.bf16.msra.mxu0 %v1547
  %1673 = vmatpush.bf16.msra.mxu0 %v1546
  %1674 = vmatmul.bf16.gmra.mxu0 %v1314
  %v1675 = vpop.f32.mrf.mxu0
  %v1676 = vadd.f32 %v1662, %v1675
  %v1677 = vpop.f32.mrf.mxu0
  %v1678 = vadd.f32 %v1664, %v1677
  %1679 = vdwg.mxu0
  %1680 = vmatpush.bf16.msra.mxu0 %v1561
  %1681 = vmatpush.bf16.msra.mxu0 %v1560
  %1682 = vmatpush.bf16.msra.mxu0 %v1559
  %1683 = vmatpush.bf16.msra.mxu0 %v1558
  %1684 = vmatpush.bf16.msra.mxu0 %v1557
  %1685 = vmatpush.bf16.msra.mxu0 %v1556
  %1686 = vmatpush.bf16.msra.mxu0 %v1555
  %1687 = vmatpush.bf16.msra.mxu0 %v1554
  %1688 = vmatmul.bf16.gmra.mxu0 %v1315
  %v1689 = vpop.f32.mrf.mxu0
  %v1690 = vadd.f32 %v1676, %v1689
  %v1691 = vpop.f32.mrf.mxu0
  %v1692 = vadd.f32 %v1678, %v1691
  %1693 = vdwg.mxu0
  %v1694 = vsel %vm138, %v1690, 0.0
  %v1695 = vsel %vm138, %v1692, 0.0
  %v1696 = vadd.f32 %v1694, %v1695
  %v1697 = vrot.slane %v1696, 4
  %v1698 = vadd.f32 %v1696, %v1697
  %v1699 = vrot.slane %v1698, 2
  %v1700 = vadd.f32 %v1698, %v1699
  %v1701 = vrot.slane %v1700, 1
  %v1702 = vadd.f32 %v1700, %v1701
  %v1703 = vmul.f32 %v1702, %v154
  %v1704 = vsub.f32 %v1690, %v1703
  %v1705 = vsub.f32 %v1692, %v1703
  %v1706 = vmul.f32 %v1704, %v1704
  %v1707 = vmul.f32 %v1705, %v1705
  %v1708 = vsel %vm138, %v1706, 0.0
  %v1709 = vsel %vm138, %v1707, 0.0
  %v1710 = vadd.f32 %v1708, %v1709
  %v1711 = vrot.slane %v1710, 4
  %v1712 = vadd.f32 %v1710, %v1711
  %v1713 = vrot.slane %v1712, 2
  %v1714 = vadd.f32 %v1712, %v1713
  %v1715 = vrot.slane %v1714, 1
  %v1716 = vadd.f32 %v1714, %v1715
  %v1717 = vmul.f32 %v1716, %v154
  %v1718 = vadd.f32 %v1717, 1e-05
  %v1719 = vrsqrt.pop %v1718
  %v1720 = vmul.f32 %v1719, %v1718
  %v1721 = vmul.f32 %v1720, %v1719
  %v1722 = vmul.f32 0.5, %v1721
  %v1723 = vsub.f32 1.5, %v1722
  %v1724 = vmul.f32 %v1719, %v1723
  %vm1725 = vweird.f32 %v1718
  %vm1726 = vweird.f32 %v1719
  %vm1727 = vmor %vm1725, %vm1726
  %v1728 = vsel %vm1727, %v1719, %v1724
  %v1729 = vmul.f32 %v1286, %v1728
  %v1731 = vperm.slane %v1729, 0
  %v1733 = vmul.f32 %v1704, %v1731
  %v1734 = vmul.f32 %v1705, %v1731
  %v1736 = vperm.slane %v1288, 0
  %v1738 = vadd.f32 %v1733, %v1736
  %v1739 = vadd.f32 %v1734, %v1736
  %v1740 = vmul.f32 %v1738, 0.5
  %v1741 = vmul.f32 %v1739, 0.5
  %v1742 = vtanh.pop %v1740
  %v1743 = vtanh.pop %v1741
  %v1744 = vmul.f32 %v1742, 0.5
  %v1745 = vmul.f32 %v1743, 0.5
  %v1746 = vadd.f32 %v1744, 0.5
  %v1747 = vadd.f32 %v1745, 0.5
  %v1748 = vmul.f32 %v1738, %v1746
  %v1749 = vmul.f32 %v1739, %v1747
  %v1750 = vpack.c.bf16 %v1748, %v1748
  %v1751 = vpack.c.bf16 %v1749, %v1749
  %1752 = vst.msk [vmem:[#allocation2 + $0x18] sm:$0xf] %vm204, %v1750
  %1753 = vst.msk [vmem:[#allocation2 + $0x40] sm:$0xf] %vm204, %v1751
  %1754 = vst.msk [vmem:[#allocation2 + $0x18] sm:$0xf] %vm207, 0
  %1755 = vst.msk [vmem:[#allocation2 + $0x40] sm:$0xf] %vm207, 0
  %v1756 = vld [vmem:[#allocation2] sm:$0xff]
  %v1757 = vld [vmem:[#allocation2 + $0x8] sm:$0xff]
  %v1758 = vld [vmem:[#allocation2 + $0x10] sm:$0xff]
  %v1759 = vld [vmem:[#allocation2 + $0x18] sm:$0xf]
  %v1760 = vld [vmem:[#allocation2 + $0x28] sm:$0xff]
  %v1761 = vld [vmem:[#allocation2 + $0x30] sm:$0xff]
  %v1762 = vld [vmem:[#allocation2 + $0x38] sm:$0xff]
  %v1763 = vld [vmem:[#allocation2 + $0x40] sm:$0xf]
  %v1764 = vld [vmem:[%s2 + $0x400] sm:$0xf]
  %v1765 = vld [vmem:[%s2 + $0x404] sm:$0xf]
  %v1766 = vld [vmem:[%s2 + $0x408] sm:$0xf]
  %v1767 = vld [vmem:[%s2 + $0x40c] sm:$0xf]
  %v1768 = vld [vmem:[%s2 + $0x410] sm:$0xf]
  %v1769 = vld [vmem:[%s2 + $0x414] sm:$0xf]
  %v1770 = vld [vmem:[%s2 + $0x418] sm:$0xf]
  %v1771 = vld [vmem:[%s2 + $0x41c] sm:$0xf]
  %v1772 = vld [vmem:[%s2 + $0x420] sm:$0xf]
  %v1773 = vld [vmem:[%s2 + $0x424] sm:$0xf]
  %v1774 = vld [vmem:[%s2 + $0x428] sm:$0xf]
  %v1775 = vld [vmem:[%s2 + $0x42c] sm:$0xf]
  %v1776 = vld [vmem:[%s2 + $0x430] sm:$0xf]
  %v1777 = vld [vmem:[%s2 + $0x434] sm:$0xf]
  %v1778 = vld [vmem:[%s2 + $0x438] sm:$0xf]
  %v1779 = vld [vmem:[%s2 + $0x43c] sm:$0xf]
  %v1780 = vld [vmem:[%s2 + $0x440] sm:$0xf]
  %v1781 = vld [vmem:[%s2 + $0x444] sm:$0xf]
  %v1782 = vld [vmem:[%s2 + $0x448] sm:$0xf]
  %v1783 = vld [vmem:[%s2 + $0x44c] sm:$0xf]
  %v1784 = vld [vmem:[%s2 + $0x450] sm:$0xf]
  %v1785 = vld [vmem:[%s2 + $0x454] sm:$0xf]
  %v1786 = vld [vmem:[%s2 + $0x458] sm:$0xf]
  %v1787 = vld [vmem:[%s2 + $0x45c] sm:$0xf]
  %v1788 = vld [vmem:[%s2 + $0x460] sm:$0xf]
  %v1789 = vld [vmem:[%s2 + $0x464] sm:$0xf]
  %v1790 = vld [vmem:[%s2 + $0x468] sm:$0xf]
  %v1791 = vld [vmem:[%s2 + $0x46c] sm:$0xf]
  %v1792 = vld [vmem:[%s2 + $0x470] sm:$0xf]
  %v1793 = vld [vmem:[%s2 + $0x474] sm:$0xf]
  %v1794 = vld [vmem:[%s2 + $0x478] sm:$0xf]
  %v1795 = vld [vmem:[%s2 + $0x47c] sm:$0xf]
  %v1796 = vld [vmem:[%s2 + $0x480] sm:$0xf]
  %v1797 = vld [vmem:[%s2 + $0x484] sm:$0xf]
  %v1798 = vld [vmem:[%s2 + $0x488] sm:$0xf]
  %v1799 = vld [vmem:[%s2 + $0x48c] sm:$0xf]
  %v1800 = vld [vmem:[%s2 + $0x490] sm:$0xf]
  %v1801 = vld [vmem:[%s2 + $0x494] sm:$0xf]
  %v1802 = vld [vmem:[%s2 + $0x498] sm:$0xf]
  %v1803 = vld [vmem:[%s2 + $0x49c] sm:$0xf]
  %v1804 = vld [vmem:[%s2 + $0x4a0] sm:$0xf]
  %v1805 = vld [vmem:[%s2 + $0x4a4] sm:$0xf]
  %v1806 = vld [vmem:[%s2 + $0x4a8] sm:$0xf]
  %v1807 = vld [vmem:[%s2 + $0x4ac] sm:$0xf]
  %v1808 = vld [vmem:[%s2 + $0x4b0] sm:$0xf]
  %v1809 = vld [vmem:[%s2 + $0x4b4] sm:$0xf]
  %v1810 = vld [vmem:[%s2 + $0x4b8] sm:$0xf]
  %v1811 = vld [vmem:[%s2 + $0x4bc] sm:$0xf]
  %v1812 = vld [vmem:[%s2 + $0x4c0] sm:$0xf]
  %v1813 = vld [vmem:[%s2 + $0x4c4] sm:$0xf]
  %v1814 = vld [vmem:[%s2 + $0x4c8] sm:$0xf]
  %v1815 = vld [vmem:[%s2 + $0x4cc] sm:$0xf]
  %v1816 = vld [vmem:[%s2 + $0x4d0] sm:$0xf]
  %v1817 = vld [vmem:[%s2 + $0x4d4] sm:$0xf]
  %v1818 = vld [vmem:[%s2 + $0x4d8] sm:$0xf]
  %v1819 = vld [vmem:[%s2 + $0x4dc] sm:$0xf]
  %v1820 = vld [vmem:[%s2 + $0x4e0] sm:$0xf]
  %v1821 = vld [vmem:[%s2 + $0x4e4] sm:$0xf]
  %v1822 = vld [vmem:[%s2 + $0x4e8] sm:$0xf]
  %v1823 = vld [vmem:[%s2 + $0x4ec] sm:$0xf]
  %v1824 = vld [vmem:[%s2 + $0x4f0] sm:$0xf]
  %v1825 = vld [vmem:[%s2 + $0x4f4] sm:$0xf]
  %v1826 = vld [vmem:[%s2 + $0x4f8] sm:$0xf]
  %v1827 = vld [vmem:[%s2 + $0x4fc] sm:$0xf]
  %v1828 = vld [vmem:[%s2 + $0x500] sm:$0xf]
  %v1829 = vld [vmem:[%s2 + $0x504] sm:$0xf]
  %v1830 = vld [vmem:[%s2 + $0x508] sm:$0xf]
  %v1831 = vld [vmem:[%s2 + $0x50c] sm:$0xf]
  %v1832 = vld [vmem:[%s2 + $0x510] sm:$0xf]
  %v1833 = vld [vmem:[%s2 + $0x514] sm:$0xf]
  %v1834 = vld [vmem:[%s2 + $0x518] sm:$0xf]
  %v1835 = vld [vmem:[%s2 + $0x51c] sm:$0xf]
  %v1836 = vld [vmem:[%s2 + $0x520] sm:$0xf]
  %v1837 = vld [vmem:[%s2 + $0x524] sm:$0xf]
  %v1838 = vld [vmem:[%s2 + $0x528] sm:$0xf]
  %v1839 = vld [vmem:[%s2 + $0x52c] sm:$0xf]
  %v1840 = vld [vmem:[%s2 + $0x530] sm:$0xf]
  %v1841 = vld [vmem:[%s2 + $0x534] sm:$0xf]
  %v1842 = vld [vmem:[%s2 + $0x538] sm:$0xf]
  %v1843 = vld [vmem:[%s2 + $0x53c] sm:$0xf]
  %v1844 = vld [vmem:[%s2 + $0x540] sm:$0xf]
  %v1845 = vld [vmem:[%s2 + $0x544] sm:$0xf]
  %v1846 = vld [vmem:[%s2 + $0x548] sm:$0xf]
  %v1847 = vld [vmem:[%s2 + $0x54c] sm:$0xf]
  %v1848 = vld [vmem:[%s2 + $0x550] sm:$0xf]
  %v1849 = vld [vmem:[%s2 + $0x554] sm:$0xf]
  %v1850 = vld [vmem:[%s2 + $0x558] sm:$0xf]
  %v1851 = vld [vmem:[%s2 + $0x55c] sm:$0xf]
  %v1852 = vld [vmem:[%s2 + $0x560] sm:$0xf]
  %v1853 = vld [vmem:[%s2 + $0x564] sm:$0xf]
  %v1854 = vld [vmem:[%s2 + $0x568] sm:$0xf]
  %v1855 = vld [vmem:[%s2 + $0x56c] sm:$0xf]
  %v1856 = vld [vmem:[%s2 + $0x570] sm:$0xf]
  %v1857 = vld [vmem:[%s2 + $0x574] sm:$0xf]
  %v1858 = vld [vmem:[%s2 + $0x578] sm:$0xf]
  %v1859 = vld [vmem:[%s2 + $0x57c] sm:$0xf]
  %v1860 = vld [vmem:[%s2 + $0x580] sm:$0xf]
  %v1861 = vld [vmem:[%s2 + $0x584] sm:$0xf]
  %v1862 = vld [vmem:[%s2 + $0x588] sm:$0xf]
  %v1863 = vld [vmem:[%s2 + $0x58c] sm:$0xf]
  %v1864 = vld [vmem:[%s2 + $0x590] sm:$0xf]
  %v1865 = vld [vmem:[%s2 + $0x594] sm:$0xf]
  %v1866 = vld [vmem:[%s2 + $0x598] sm:$0xf]
  %v1867 = vld [vmem:[%s2 + $0x59c] sm:$0xf]
  %v1868 = vld [vmem:[%s2 + $0x5a0] sm:$0xf]
  %v1869 = vld [vmem:[%s2 + $0x5a4] sm:$0xf]
  %v1870 = vld [vmem:[%s2 + $0x5a8] sm:$0xf]
  %v1871 = vld [vmem:[%s2 + $0x5ac] sm:$0xf]
  %v1872 = vld [vmem:[%s2 + $0x5b0] sm:$0xf]
  %v1873 = vld [vmem:[%s2 + $0x5b4] sm:$0xf]
  %v1874 = vld [vmem:[%s2 + $0x5b8] sm:$0xf]
  %v1875 = vld [vmem:[%s2 + $0x5bc] sm:$0xf]
  %s1876 = scalar_lea.vmem %s3, 15
  %v1877 = vld [vmem:[%s1876] sm:$0x1]
  %s1878 = scalar_lea.vmem %s3, 16
  %v1879 = vld [vmem:[%s1878] sm:$0x1]
  %s1880 = scalar_lea.vmem %s3, 17
  %v1881 = vld [vmem:[%s1880] sm:$0x1]
  %v1883 = vperm.slane %v1877, 0
  %v1893 = vunpack.c.l.b16 %v1756
  %v1894 = vunpack.c.h.b16 %v1756
  %v1895 = vunpack.c.l.b16 %v1757
  %v1896 = vunpack.c.h.b16 %v1757
  %v1897 = vunpack.c.l.b16 %v1758
  %v1898 = vunpack.c.h.b16 %v1758
  %v1899 = vunpack.c.l.b16 %v1759
  %v1900 = vunpack.c.l.b16 %v1760
  %v1901 = vunpack.c.h.b16 %v1760
  %v1902 = vunpack.c.l.b16 %v1761
  %v1903 = vunpack.c.h.b16 %v1761
  %v1904 = vunpack.c.l.b16 %v1762
  %v1905 = vunpack.c.h.b16 %v1762
  %v1906 = vunpack.c.l.b16 %v1763
  %v1907 = vpack.c.b16 %v1900, %v1893
  %v1908 = vpack.c.b16 %v1901, %v1894
  %v1909 = vpack.c.b16 %v1902, %v1895
  %v1910 = vpack.c.b16 %v1903, %v1896
  %v1911 = vpack.c.b16 %v1904, %v1897
  %v1912 = vpack.c.b16 %v1905, %v1898
  %v1913 = vpack.c.b16 %v1906, %v1899
  %v2033 = vunpack.c.l.b16 %v1764
  %v2034 = vunpack.c.l.b16 %v1765
  %v2035 = vunpack.c.l.b16 %v1766
  %v2036 = vunpack.c.l.b16 %v1767
  %v2037 = vunpack.c.l.b16 %v1768
  %v2038 = vunpack.c.l.b16 %v1769
  %v2039 = vunpack.c.l.b16 %v1770
  %v2040 = vunpack.c.l.b16 %v1771
  %v2041 = vunpack.c.l.b16 %v1772
  %v2042 = vunpack.c.l.b16 %v1773
  %v2043 = vunpack.c.l.b16 %v1774
  %v2044 = vunpack.c.l.b16 %v1775
  %v2045 = vunpack.c.l.b16 %v1776
  %v2046 = vunpack.c.l.b16 %v1777
  %v2047 = vunpack.c.l.b16 %v1778
  %v2048 = vunpack.c.l.b16 %v1779
  %v2049 = vunpack.c.l.b16 %v1780
  %v2050 = vunpack.c.l.b16 %v1781
  %v2051 = vunpack.c.l.b16 %v1782
  %v2052 = vunpack.c.l.b16 %v1783
  %v2053 = vunpack.c.l.b16 %v1784
  %v2054 = vunpack.c.l.b16 %v1785
  %v2055 = vunpack.c.l.b16 %v1786
  %v2056 = vunpack.c.l.b16 %v1787
  %v2057 = vunpack.c.l.b16 %v1788
  %v2058 = vunpack.c.l.b16 %v1789
  %v2059 = vunpack.c.l.b16 %v1790
  %v2060 = vunpack.c.l.b16 %v1791
  %v2061 = vunpack.c.l.b16 %v1792
  %v2062 = vunpack.c.l.b16 %v1793
  %v2063 = vunpack.c.l.b16 %v1794
  %v2064 = vunpack.c.l.b16 %v1795
  %v2065 = vunpack.c.l.b16 %v1796
  %v2066 = vunpack.c.l.b16 %v1797
  %v2067 = vunpack.c.l.b16 %v1798
  %v2068 = vunpack.c.l.b16 %v1799
  %v2069 = vunpack.c.l.b16 %v1800
  %v2070 = vunpack.c.l.b16 %v1801
  %v2071 = vunpack.c.l.b16 %v1802
  %v2072 = vunpack.c.l.b16 %v1803
  %v2073 = vunpack.c.l.b16 %v1804
  %v2074 = vunpack.c.l.b16 %v1805
  %v2075 = vunpack.c.l.b16 %v1806
  %v2076 = vunpack.c.l.b16 %v1807
  %v2077 = vunpack.c.l.b16 %v1808
  %v2078 = vunpack.c.l.b16 %v1809
  %v2079 = vunpack.c.l.b16 %v1810
  %v2080 = vunpack.c.l.b16 %v1811
  %v2081 = vunpack.c.l.b16 %v1812
  %v2082 = vunpack.c.l.b16 %v1813
  %v2083 = vunpack.c.l.b16 %v1814
  %v2084 = vunpack.c.l.b16 %v1815
  %v2085 = vunpack.c.l.b16 %v1816
  %v2086 = vunpack.c.l.b16 %v1817
  %v2087 = vunpack.c.l.b16 %v1818
  %v2088 = vunpack.c.l.b16 %v1819
  %v2089 = vunpack.c.l.b16 %v1820
  %v2090 = vunpack.c.l.b16 %v1821
  %v2091 = vunpack.c.l.b16 %v1822
  %v2092 = vunpack.c.l.b16 %v1823
  %v2093 = vunpack.c.l.b16 %v1824
  %v2094 = vunpack.c.l.b16 %v1825
  %v2095 = vunpack.c.l.b16 %v1826
  %v2096 = vunpack.c.l.b16 %v1827
  %v2097 = vunpack.c.l.b16 %v1828
  %v2098 = vunpack.c.l.b16 %v1829
  %v2099 = vunpack.c.l.b16 %v1830
  %v2100 = vunpack.c.l.b16 %v1831
  %v2101 = vunpack.c.l.b16 %v1832
  %v2102 = vunpack.c.l.b16 %v1833
  %v2103 = vunpack.c.l.b16 %v1834
  %v2104 = vunpack.c.l.b16 %v1835
  %v2105 = vunpack.c.l.b16 %v1836
  %v2106 = vunpack.c.l.b16 %v1837
  %v2107 = vunpack.c.l.b16 %v1838
  %v2108 = vunpack.c.l.b16 %v1839
  %v2109 = vunpack.c.l.b16 %v1840
  %v2110 = vunpack.c.l.b16 %v1841
  %v2111 = vunpack.c.l.b16 %v1842
  %v2112 = vunpack.c.l.b16 %v1843
  %v2113 = vunpack.c.l.b16 %v1844
  %v2114 = vunpack.c.l.b16 %v1845
  %v2115 = vunpack.c.l.b16 %v1846
  %v2116 = vunpack.c.l.b16 %v1847
  %v2117 = vunpack.c.l.b16 %v1848
  %v2118 = vunpack.c.l.b16 %v1849
  %v2119 = vunpack.c.l.b16 %v1850
  %v2120 = vunpack.c.l.b16 %v1851
  %v2121 = vunpack.c.l.b16 %v1852
  %v2122 = vunpack.c.l.b16 %v1853
  %v2123 = vunpack.c.l.b16 %v1854
  %v2124 = vunpack.c.l.b16 %v1855
  %v2125 = vunpack.c.l.b16 %v1856
  %v2126 = vunpack.c.l.b16 %v1857
  %v2127 = vunpack.c.l.b16 %v1858
  %v2128 = vunpack.c.l.b16 %v1859
  %v2129 = vunpack.c.l.b16 %v1860
  %v2130 = vunpack.c.l.b16 %v1861
  %v2131 = vunpack.c.l.b16 %v1862
  %v2132 = vunpack.c.l.b16 %v1863
  %v2133 = vunpack.c.l.b16 %v1864
  %v2134 = vunpack.c.l.b16 %v1865
  %v2135 = vunpack.c.l.b16 %v1866
  %v2136 = vunpack.c.l.b16 %v1867
  %v2137 = vunpack.c.l.b16 %v1868
  %v2138 = vunpack.c.l.b16 %v1869
  %v2139 = vunpack.c.l.b16 %v1870
  %v2140 = vunpack.c.l.b16 %v1871
  %v2141 = vunpack.c.l.b16 %v1872
  %v2142 = vunpack.c.l.b16 %v1873
  %v2143 = vunpack.c.l.b16 %v1874
  %v2144 = vunpack.c.l.b16 %v1875
  %v2145 = vpack.c.b16 %v2034, %v2033
  %v2146 = vpack.c.b16 %v2036, %v2035
  %v2147 = vpack.c.b16 %v2038, %v2037
  %v2148 = vpack.c.b16 %v2040, %v2039
  %v2149 = vpack.c.b16 %v2042, %v2041
  %v2150 = vpack.c.b16 %v2044, %v2043
  %v2151 = vpack.c.b16 %v2046, %v2045
  %v2152 = vpack.c.b16 %v2048, %v2047
  %v2153 = vpack.c.b16 %v2050, %v2049
  %v2154 = vpack.c.b16 %v2052, %v2051
  %v2155 = vpack.c.b16 %v2054, %v2053
  %v2156 = vpack.c.b16 %v2056, %v2055
  %v2157 = vpack.c.b16 %v2058, %v2057
  %v2158 = vpack.c.b16 %v2060, %v2059
  %v2159 = vpack.c.b16 %v2062, %v2061
  %v2160 = vpack.c.b16 %v2064, %v2063
  %v2161 = vpack.c.b16 %v2066, %v2065
  %v2162 = vpack.c.b16 %v2068, %v2067
  %v2163 = vpack.c.b16 %v2070, %v2069
  %v2164 = vpack.c.b16 %v2072, %v2071
  %v2165 = vpack.c.b16 %v2074, %v2073
  %v2166 = vpack.c.b16 %v2076, %v2075
  %v2167 = vpack.c.b16 %v2078, %v2077
  %v2168 = vpack.c.b16 %v2080, %v2079
  %v2169 = vpack.c.b16 %v2082, %v2081
  %v2170 = vpack.c.b16 %v2084, %v2083
  %v2171 = vpack.c.b16 %v2086, %v2085
  %v2172 = vpack.c.b16 %v2088, %v2087
  %v2173 = vpack.c.b16 %v2090, %v2089
  %v2174 = vpack.c.b16 %v2092, %v2091
  %v2175 = vpack.c.b16 %v2094, %v2093
  %v2176 = vpack.c.b16 %v2096, %v2095
  %v2177 = vpack.c.b16 %v2098, %v2097
  %v2178 = vpack.c.b16 %v2100, %v2099
  %v2179 = vpack.c.b16 %v2102, %v2101
  %v2180 = vpack.c.b16 %v2104, %v2103
  %v2181 = vpack.c.b16 %v2106, %v2105
  %v2182 = vpack.c.b16 %v2108, %v2107
  %v2183 = vpack.c.b16 %v2110, %v2109
  %v2184 = vpack.c.b16 %v2112, %v2111
  %v2185 = vpack.c.b16 %v2114, %v2113
  %v2186 = vpack.c.b16 %v2116, %v2115
  %v2187 = vpack.c.b16 %v2118, %v2117
  %v2188 = vpack.c.b16 %v2120, %v2119
  %v2189 = vpack.c.b16 %v2122, %v2121
  %v2190 = vpack.c.b16 %v2124, %v2123
  %v2191 = vpack.c.b16 %v2126, %v2125
  %v2192 = vpack.c.b16 %v2128, %v2127
  %v2193 = vpack.c.b16 %v2130, %v2129
  %v2194 = vpack.c.b16 %v2132, %v2131
  %v2195 = vpack.c.b16 %v2134, %v2133
  %v2196 = vpack.c.b16 %v2136, %v2135
  %v2197 = vpack.c.b16 %v2138, %v2137
  %v2198 = vpack.c.b16 %v2140, %v2139
  %v2199 = vpack.c.b16 %v2142, %v2141
  %v2200 = vpack.c.b16 %v2144, %v2143
  %2257 = vmatpush.bf16.msra.mxu0 %v2152
  %2258 = vmatpush.bf16.msra.mxu0 %v2151
  %2259 = vmatpush.bf16.msra.mxu0 %v2150
  %2260 = vmatpush.bf16.msra.mxu0 %v2149
  %2261 = vmatpush.bf16.msra.mxu0 %v2148
  %2262 = vmatpush.bf16.msra.mxu0 %v2147
  %2263 = vmatpush.bf16.msra.mxu0 %v2146
  %2264 = vmatpush.bf16.msra.mxu0 %v2145
  %2265 = vmatmul.bf16.gmra.mxu0 %v1907
  %v2266 = vpop.f32.mrf.mxu0
  %v2267 = vadd.f32 %v1883, %v2266
  %v2268 = vpop.f32.mrf.mxu0
  %v2269 = vadd.f32 %v1883, %v2268
  %2270 = vdwg.mxu0
  %2271 = vmatpush.bf16.msra.mxu0 %v2160
  %2272 = vmatpush.bf16.msra.mxu0 %v2159
  %2273 = vmatpush.bf16.msra.mxu0 %v2158
  %2274 = vmatpush.bf16.msra.mxu0 %v2157
  %2275 = vmatpush.bf16.msra.mxu0 %v2156
  %2276 = vmatpush.bf16.msra.mxu0 %v2155
  %2277 = vmatpush.bf16.msra.mxu0 %v2154
  %2278 = vmatpush.bf16.msra.mxu0 %v2153
  %2279 = vmatmul.bf16.gmra.mxu0 %v1908
  %v2280 = vpop.f32.mrf.mxu0
  %v2281 = vadd.f32 %v2267, %v2280
  %v2282 = vpop.f32.mrf.mxu0
  %v2283 = vadd.f32 %v2269, %v2282
  %2284 = vdwg.mxu0
  %2285 = vmatpush.bf16.msra.mxu0 %v2168
  %2286 = vmatpush.bf16.msra.mxu0 %v2167
  %2287 = vmatpush.bf16.msra.mxu0 %v2166
  %2288 = vmatpush.bf16.msra.mxu0 %v2165
  %2289 = vmatpush.bf16.msra.mxu0 %v2164
  %2290 = vmatpush.bf16.msra.mxu0 %v2163
  %2291 = vmatpush.bf16.msra.mxu0 %v2162
  %2292 = vmatpush.bf16.msra.mxu0 %v2161
  %2293 = vmatmul.bf16.gmra.mxu0 %v1909
  %v2294 = vpop.f32.mrf.mxu0
  %v2295 = vadd.f32 %v2281, %v2294
  %v2296 = vpop.f32.mrf.mxu0
  %v2297 = vadd.f32 %v2283, %v2296
  %2298 = vdwg.mxu0
  %2299 = vmatpush.bf16.msra.mxu0 %v2176
  %2300 = vmatpush.bf16.msra.mxu0 %v2175
  %2301 = vmatpush.bf16.msra.mxu0 %v2174
  %2302 = vmatpush.bf16.msra.mxu0 %v2173
  %2303 = vmatpush.bf16.msra.mxu0 %v2172
  %2304 = vmatpush.bf16.msra.mxu0 %v2171
  %2305 = vmatpush.bf16.msra.mxu0 %v2170
  %2306 = vmatpush.bf16.msra.mxu0 %v2169
  %2307 = vmatmul.bf16.gmra.mxu0 %v1910
  %v2308 = vpop.f32.mrf.mxu0
  %v2309 = vadd.f32 %v2295, %v2308
  %v2310 = vpop.f32.mrf.mxu0
  %v2311 = vadd.f32 %v2297, %v2310
  %2312 = vdwg.mxu0
  %2313 = vmatpush.bf16.msra.mxu0 %v2184
  %2314 = vmatpush.bf16.msra.mxu0 %v2183
  %2315 = vmatpush.bf16.msra.mxu0 %v2182
  %2316 = vmatpush.bf16.msra.mxu0 %v2181
  %2317 = vmatpush.bf16.msra.mxu0 %v2180
  %2318 = vmatpush.bf16.msra.mxu0 %v2179
  %2319 = vmatpush.bf16.msra.mxu0 %v2178
  %2320 = vmatpush.bf16.msra.mxu0 %v2177
  %2321 = vmatmul.bf16.gmra.mxu0 %v1911
  %v2322 = vpop.f32.mrf.mxu0
  %v2323 = vadd.f32 %v2309, %v2322
  %v2324 = vpop.f32.mrf.mxu0
  %v2325 = vadd.f32 %v2311, %v2324
  %2326 = vdwg.mxu0
  %2327 = vmatpush.bf16.msra.mxu0 %v2192
  %2328 = vmatpush.bf16.msra.mxu0 %v2191
  %2329 = vmatpush.bf16.msra.mxu0 %v2190
  %2330 = vmatpush.bf16.msra.mxu0 %v2189
  %2331 = vmatpush.bf16.msra.mxu0 %v2188
  %2332 = vmatpush.bf16.msra.mxu0 %v2187
  %2333 = vmatpush.bf16.msra.mxu0 %v2186
  %2334 = vmatpush.bf16.msra.mxu0 %v2185
  %2335 = vmatmul.bf16.gmra.mxu0 %v1912
  %v2336 = vpop.f32.mrf.mxu0
  %v2337 = vadd.f32 %v2323, %v2336
  %v2338 = vpop.f32.mrf.mxu0
  %v2339 = vadd.f32 %v2325, %v2338
  %2340 = vdwg.mxu0
  %2341 = vmatpush.bf16.msra.mxu0 %v2200
  %2342 = vmatpush.bf16.msra.mxu0 %v2199
  %2343 = vmatpush.bf16.msra.mxu0 %v2198
  %2344 = vmatpush.bf16.msra.mxu0 %v2197
  %2345 = vmatpush.bf16.msra.mxu0 %v2196
  %2346 = vmatpush.bf16.msra.mxu0 %v2195
  %2347 = vmatpush.bf16.msra.mxu0 %v2194
  %2348 = vmatpush.bf16.msra.mxu0 %v2193
  %2349 = vmatmul.bf16.gmra.mxu0 %v1913
  %v2350 = vpop.f32.mrf.mxu0
  %v2351 = vadd.f32 %v2337, %v2350
  %v2352 = vpop.f32.mrf.mxu0
  %v2353 = vadd.f32 %v2339, %v2352
  %2354 = vdwg.mxu0
  %v2355 = vsel %vm138, %v2351, 0.0
  %v2356 = vsel %vm138, %v2353, 0.0
  %v2357 = vadd.f32 %v2355, %v2356
  %v2358 = vrot.slane %v2357, 4
  %v2359 = vadd.f32 %v2357, %v2358
  %v2360 = vrot.slane %v2359, 2
  %v2361 = vadd.f32 %v2359, %v2360
  %v2362 = vrot.slane %v2361, 1
  %v2363 = vadd.f32 %v2361, %v2362
  %v2364 = vmul.f32 %v2363, %v154
  %v2365 = vsub.f32 %v2351, %v2364
  %v2366 = vsub.f32 %v2353, %v2364
  %v2367 = vmul.f32 %v2365, %v2365
  %v2368 = vmul.f32 %v2366, %v2366
  %v2369 = vsel %vm138, %v2367, 0.0
  %v2370 = vsel %vm138, %v2368, 0.0
  %v2371 = vadd.f32 %v2369, %v2370
  %v2372 = vrot.slane %v2371, 4
  %v2373 = vadd.f32 %v2371, %v2372
  %v2374 = vrot.slane %v2373, 2
  %v2375 = vadd.f32 %v2373, %v2374
  %v2376 = vrot.slane %v2375, 1
  %v2377 = vadd.f32 %v2375, %v2376
  %v2378 = vmul.f32 %v2377, %v154
  %v2379 = vadd.f32 %v2378, 1e-05
  %v2380 = vrsqrt.pop %v2379
  %v2381 = vmul.f32 %v2380, %v2379
  %v2382 = vmul.f32 %v2381, %v2380
  %v2383 = vmul.f32 0.5, %v2382
  %v2384 = vsub.f32 1.5, %v2383
  %v2385 = vmul.f32 %v2380, %v2384
  %vm2386 = vweird.f32 %v2379
  %vm2387 = vweird.f32 %v2380
  %vm2388 = vmor %vm2386, %vm2387
  %v2389 = vsel %vm2388, %v2380, %v2385
  %v2390 = vmul.f32 %v1879, %v2389
  %v2392 = vperm.slane %v2390, 0
  %v2394 = vmul.f32 %v2365, %v2392
  %v2395 = vmul.f32 %v2366, %v2392
  %v2397 = vperm.slane %v1881, 0
  %v2399 = vadd.f32 %v2394, %v2397
  %v2400 = vadd.f32 %v2395, %v2397
  %v2401 = vmul.f32 %v2399, 0.5
  %v2402 = vmul.f32 %v2400, 0.5
  %v2403 = vtanh.pop %v2401
  %v2404 = vtanh.pop %v2402
  %v2405 = vmul.f32 %v2403, 0.5
  %v2406 = vmul.f32 %v2404, 0.5
  %v2407 = vadd.f32 %v2405, 0.5
  %v2408 = vadd.f32 %v2406, 0.5
  %v2409 = vmul.f32 %v2399, %v2407
  %v2410 = vmul.f32 %v2400, %v2408
  %v2411 = vpack.c.bf16 %v2409, %v2409
  %v2412 = vpack.c.bf16 %v2410, %v2410
  %2413 = vst.msk [vmem:[#allocation2 + $0x1c] sm:$0xf] %vm204, %v2411
  %2414 = vst.msk [vmem:[#allocation2 + $0x44] sm:$0xf] %vm204, %v2412
  %2415 = vst.msk [vmem:[#allocation2 + $0x1c] sm:$0xf] %vm207, 0
  %2416 = vst.msk [vmem:[#allocation2 + $0x44] sm:$0xf] %vm207, 0
  %v2417 = vld [vmem:[#allocation2] sm:$0xff]
  %v2418 = vld [vmem:[#allocation2 + $0x8] sm:$0xff]
  %v2419 = vld [vmem:[#allocation2 + $0x10] sm:$0xff]
  %v2420 = vld [vmem:[#allocation2 + $0x18] sm:$0xff]
  %v2421 = vld [vmem:[#allocation2 + $0x28] sm:$0xff]
  %v2422 = vld [vmem:[#allocation2 + $0x30] sm:$0xff]
  %v2423 = vld [vmem:[#allocation2 + $0x38] sm:$0xff]
  %v2424 = vld [vmem:[#allocation2 + $0x40] sm:$0xff]
  %v2425 = vld [vmem:[%s2 + $0x5c0] sm:$0xf]
  %v2426 = vld [vmem:[%s2 + $0x5c4] sm:$0xf]
  %v2427 = vld [vmem:[%s2 + $0x5c8] sm:$0xf]
  %v2428 = vld [vmem:[%s2 + $0x5cc] sm:$0xf]
  %v2429 = vld [vmem:[%s2 + $0x5d0] sm:$0xf]
  %v2430 = vld [vmem:[%s2 + $0x5d4] sm:$0xf]
  %v2431 = vld [vmem:[%s2 + $0x5d8] sm:$0xf]
  %v2432 = vld [vmem:[%s2 + $0x5dc] sm:$0xf]
  %v2433 = vld [vmem:[%s2 + $0x5e0] sm:$0xf]
  %v2434 = vld [vmem:[%s2 + $0x5e4] sm:$0xf]
  %v2435 = vld [vmem:[%s2 + $0x5e8] sm:$0xf]
  %v2436 = vld [vmem:[%s2 + $0x5ec] sm:$0xf]
  %v2437 = vld [vmem:[%s2 + $0x5f0] sm:$0xf]
  %v2438 = vld [vmem:[%s2 + $0x5f4] sm:$0xf]
  %v2439 = vld [vmem:[%s2 + $0x5f8] sm:$0xf]
  %v2440 = vld [vmem:[%s2 + $0x5fc] sm:$0xf]
  %v2441 = vld [vmem:[%s2 + $0x600] sm:$0xf]
  %v2442 = vld [vmem:[%s2 + $0x604] sm:$0xf]
  %v2443 = vld [vmem:[%s2 + $0x608] sm:$0xf]
  %v2444 = vld [vmem:[%s2 + $0x60c] sm:$0xf]
  %v2445 = vld [vmem:[%s2 + $0x610] sm:$0xf]
  %v2446 = vld [vmem:[%s2 + $0x614] sm:$0xf]
  %v2447 = vld [vmem:[%s2 + $0x618] sm:$0xf]
  %v2448 = vld [vmem:[%s2 + $0x61c] sm:$0xf]
  %v2449 = vld [vmem:[%s2 + $0x620] sm:$0xf]
  %v2450 = vld [vmem:[%s2 + $0x624] sm:$0xf]
  %v2451 = vld [vmem:[%s2 + $0x628] sm:$0xf]
  %v2452 = vld [vmem:[%s2 + $0x62c] sm:$0xf]
  %v2453 = vld [vmem:[%s2 + $0x630] sm:$0xf]
  %v2454 = vld [vmem:[%s2 + $0x634] sm:$0xf]
  %v2455 = vld [vmem:[%s2 + $0x638] sm:$0xf]
  %v2456 = vld [vmem:[%s2 + $0x63c] sm:$0xf]
  %v2457 = vld [vmem:[%s2 + $0x640] sm:$0xf]
  %v2458 = vld [vmem:[%s2 + $0x644] sm:$0xf]
  %v2459 = vld [vmem:[%s2 + $0x648] sm:$0xf]
  %v2460 = vld [vmem:[%s2 + $0x64c] sm:$0xf]
  %v2461 = vld [vmem:[%s2 + $0x650] sm:$0xf]
  %v2462 = vld [vmem:[%s2 + $0x654] sm:$0xf]
  %v2463 = vld [vmem:[%s2 + $0x658] sm:$0xf]
  %v2464 = vld [vmem:[%s2 + $0x65c] sm:$0xf]
  %v2465 = vld [vmem:[%s2 + $0x660] sm:$0xf]
  %v2466 = vld [vmem:[%s2 + $0x664] sm:$0xf]
  %v2467 = vld [vmem:[%s2 + $0x668] sm:$0xf]
  %v2468 = vld [vmem:[%s2 + $0x66c] sm:$0xf]
  %v2469 = vld [vmem:[%s2 + $0x670] sm:$0xf]
  %v2470 = vld [vmem:[%s2 + $0x674] sm:$0xf]
  %v2471 = vld [vmem:[%s2 + $0x678] sm:$0xf]
  %v2472 = vld [vmem:[%s2 + $0x67c] sm:$0xf]
  %v2473 = vld [vmem:[%s2 + $0x680] sm:$0xf]
  %v2474 = vld [vmem:[%s2 + $0x684] sm:$0xf]
  %v2475 = vld [vmem:[%s2 + $0x688] sm:$0xf]
  %v2476 = vld [vmem:[%s2 + $0x68c] sm:$0xf]
  %v2477 = vld [vmem:[%s2 + $0x690] sm:$0xf]
  %v2478 = vld [vmem:[%s2 + $0x694] sm:$0xf]
  %v2479 = vld [vmem:[%s2 + $0x698] sm:$0xf]
  %v2480 = vld [vmem:[%s2 + $0x69c] sm:$0xf]
  %v2481 = vld [vmem:[%s2 + $0x6a0] sm:$0xf]
  %v2482 = vld [vmem:[%s2 + $0x6a4] sm:$0xf]
  %v2483 = vld [vmem:[%s2 + $0x6a8] sm:$0xf]
  %v2484 = vld [vmem:[%s2 + $0x6ac] sm:$0xf]
  %v2485 = vld [vmem:[%s2 + $0x6b0] sm:$0xf]
  %v2486 = vld [vmem:[%s2 + $0x6b4] sm:$0xf]
  %v2487 = vld [vmem:[%s2 + $0x6b8] sm:$0xf]
  %v2488 = vld [vmem:[%s2 + $0x6bc] sm:$0xf]
  %v2489 = vld [vmem:[%s2 + $0x6c0] sm:$0xf]
  %v2490 = vld [vmem:[%s2 + $0x6c4] sm:$0xf]
  %v2491 = vld [vmem:[%s2 + $0x6c8] sm:$0xf]
  %v2492 = vld [vmem:[%s2 + $0x6cc] sm:$0xf]
  %v2493 = vld [vmem:[%s2 + $0x6d0] sm:$0xf]
  %v2494 = vld [vmem:[%s2 + $0x6d4] sm:$0xf]
  %v2495 = vld [vmem:[%s2 + $0x6d8] sm:$0xf]
  %v2496 = vld [vmem:[%s2 + $0x6dc] sm:$0xf]
  %v2497 = vld [vmem:[%s2 + $0x6e0] sm:$0xf]
  %v2498 = vld [vmem:[%s2 + $0x6e4] sm:$0xf]
  %v2499 = vld [vmem:[%s2 + $0x6e8] sm:$0xf]
  %v2500 = vld [vmem:[%s2 + $0x6ec] sm:$0xf]
  %v2501 = vld [vmem:[%s2 + $0x6f0] sm:$0xf]
  %v2502 = vld [vmem:[%s2 + $0x6f4] sm:$0xf]
  %v2503 = vld [vmem:[%s2 + $0x6f8] sm:$0xf]
  %v2504 = vld [vmem:[%s2 + $0x6fc] sm:$0xf]
  %v2505 = vld [vmem:[%s2 + $0x700] sm:$0xf]
  %v2506 = vld [vmem:[%s2 + $0x704] sm:$0xf]
  %v2507 = vld [vmem:[%s2 + $0x708] sm:$0xf]
  %v2508 = vld [vmem:[%s2 + $0x70c] sm:$0xf]
  %v2509 = vld [vmem:[%s2 + $0x710] sm:$0xf]
  %v2510 = vld [vmem:[%s2 + $0x714] sm:$0xf]
  %v2511 = vld [vmem:[%s2 + $0x718] sm:$0xf]
  %v2512 = vld [vmem:[%s2 + $0x71c] sm:$0xf]
  %v2513 = vld [vmem:[%s2 + $0x720] sm:$0xf]
  %v2514 = vld [vmem:[%s2 + $0x724] sm:$0xf]
  %v2515 = vld [vmem:[%s2 + $0x728] sm:$0xf]
  %v2516 = vld [vmem:[%s2 + $0x72c] sm:$0xf]
  %v2517 = vld [vmem:[%s2 + $0x730] sm:$0xf]
  %v2518 = vld [vmem:[%s2 + $0x734] sm:$0xf]
  %v2519 = vld [vmem:[%s2 + $0x738] sm:$0xf]
  %v2520 = vld [vmem:[%s2 + $0x73c] sm:$0xf]
  %v2521 = vld [vmem:[%s2 + $0x740] sm:$0xf]
  %v2522 = vld [vmem:[%s2 + $0x744] sm:$0xf]
  %v2523 = vld [vmem:[%s2 + $0x748] sm:$0xf]
  %v2524 = vld [vmem:[%s2 + $0x74c] sm:$0xf]
  %v2525 = vld [vmem:[%s2 + $0x750] sm:$0xf]
  %v2526 = vld [vmem:[%s2 + $0x754] sm:$0xf]
  %v2527 = vld [vmem:[%s2 + $0x758] sm:$0xf]
  %v2528 = vld [vmem:[%s2 + $0x75c] sm:$0xf]
  %v2529 = vld [vmem:[%s2 + $0x760] sm:$0xf]
  %v2530 = vld [vmem:[%s2 + $0x764] sm:$0xf]
  %v2531 = vld [vmem:[%s2 + $0x768] sm:$0xf]
  %v2532 = vld [vmem:[%s2 + $0x76c] sm:$0xf]
  %v2533 = vld [vmem:[%s2 + $0x770] sm:$0xf]
  %v2534 = vld [vmem:[%s2 + $0x774] sm:$0xf]
  %v2535 = vld [vmem:[%s2 + $0x778] sm:$0xf]
  %v2536 = vld [vmem:[%s2 + $0x77c] sm:$0xf]
  %v2537 = vld [vmem:[%s2 + $0x780] sm:$0xf]
  %v2538 = vld [vmem:[%s2 + $0x784] sm:$0xf]
  %v2539 = vld [vmem:[%s2 + $0x788] sm:$0xf]
  %v2540 = vld [vmem:[%s2 + $0x78c] sm:$0xf]
  %v2541 = vld [vmem:[%s2 + $0x790] sm:$0xf]
  %v2542 = vld [vmem:[%s2 + $0x794] sm:$0xf]
  %v2543 = vld [vmem:[%s2 + $0x798] sm:$0xf]
  %v2544 = vld [vmem:[%s2 + $0x79c] sm:$0xf]
  %v2545 = vld [vmem:[%s2 + $0x7a0] sm:$0xf]
  %v2546 = vld [vmem:[%s2 + $0x7a4] sm:$0xf]
  %v2547 = vld [vmem:[%s2 + $0x7a8] sm:$0xf]
  %v2548 = vld [vmem:[%s2 + $0x7ac] sm:$0xf]
  %v2549 = vld [vmem:[%s2 + $0x7b0] sm:$0xf]
  %v2550 = vld [vmem:[%s2 + $0x7b4] sm:$0xf]
  %v2551 = vld [vmem:[%s2 + $0x7b8] sm:$0xf]
  %v2552 = vld [vmem:[%s2 + $0x7bc] sm:$0xf]
  %s2553 = scalar_lea.vmem %s3, 18
  %v2554 = vld [vmem:[%s2553] sm:$0x1]
  %s2555 = scalar_lea.vmem %s3, 19
  %v2556 = vld [vmem:[%s2555] sm:$0x1]
  %s2557 = scalar_lea.vmem %s3, 20
  %v2558 = vld [vmem:[%s2557] sm:$0x1]
  %v2560 = vperm.slane %v2554, 0
  %v2570 = vunpack.c.l.b16 %v2417
  %v2571 = vunpack.c.h.b16 %v2417
  %v2572 = vunpack.c.l.b16 %v2418
  %v2573 = vunpack.c.h.b16 %v2418
  %v2574 = vunpack.c.l.b16 %v2419
  %v2575 = vunpack.c.h.b16 %v2419
  %v2576 = vunpack.c.l.b16 %v2420
  %v2577 = vunpack.c.h.b16 %v2420
  %v2578 = vunpack.c.l.b16 %v2421
  %v2579 = vunpack.c.h.b16 %v2421
  %v2580 = vunpack.c.l.b16 %v2422
  %v2581 = vunpack.c.h.b16 %v2422
  %v2582 = vunpack.c.l.b16 %v2423
  %v2583 = vunpack.c.h.b16 %v2423
  %v2584 = vunpack.c.l.b16 %v2424
  %v2585 = vunpack.c.h.b16 %v2424
  %v2586 = vpack.c.b16 %v2578, %v2570
  %v2587 = vpack.c.b16 %v2579, %v2571
  %v2588 = vpack.c.b16 %v2580, %v2572
  %v2589 = vpack.c.b16 %v2581, %v2573
  %v2590 = vpack.c.b16 %v2582, %v2574
  %v2591 = vpack.c.b16 %v2583, %v2575
  %v2592 = vpack.c.b16 %v2584, %v2576
  %v2593 = vpack.c.b16 %v2585, %v2577
  %v2730 = vunpack.c.l.b16 %v2425
  %v2731 = vunpack.c.l.b16 %v2426
  %v2732 = vunpack.c.l.b16 %v2427
  %v2733 = vunpack.c.l.b16 %v2428
  %v2734 = vunpack.c.l.b16 %v2429
  %v2735 = vunpack.c.l.b16 %v2430
  %v2736 = vunpack.c.l.b16 %v2431
  %v2737 = vunpack.c.l.b16 %v2432
  %v2738 = vunpack.c.l.b16 %v2433
  %v2739 = vunpack.c.l.b16 %v2434
  %v2740 = vunpack.c.l.b16 %v2435
  %v2741 = vunpack.c.l.b16 %v2436
  %v2742 = vunpack.c.l.b16 %v2437
  %v2743 = vunpack.c.l.b16 %v2438
  %v2744 = vunpack.c.l.b16 %v2439
  %v2745 = vunpack.c.l.b16 %v2440
  %v2746 = vunpack.c.l.b16 %v2441
  %v2747 = vunpack.c.l.b16 %v2442
  %v2748 = vunpack.c.l.b16 %v2443
  %v2749 = vunpack.c.l.b16 %v2444
  %v2750 = vunpack.c.l.b16 %v2445
  %v2751 = vunpack.c.l.b16 %v2446
  %v2752 = vunpack.c.l.b16 %v2447
  %v2753 = vunpack.c.l.b16 %v2448
  %v2754 = vunpack.c.l.b16 %v2449
  %v2755 = vunpack.c.l.b16 %v2450
  %v2756 = vunpack.c.l.b16 %v2451
  %v2757 = vunpack.c.l.b16 %v2452
  %v2758 = vunpack.c.l.b16 %v2453
  %v2759 = vunpack.c.l.b16 %v2454
  %v2760 = vunpack.c.l.b16 %v2455
  %v2761 = vunpack.c.l.b16 %v2456
  %v2762 = vunpack.c.l.b16 %v2457
  %v2763 = vunpack.c.l.b16 %v2458
  %v2764 = vunpack.c.l.b16 %v2459
  %v2765 = vunpack.c.l.b16 %v2460
  %v2766 = vunpack.c.l.b16 %v2461
  %v2767 = vunpack.c.l.b16 %v2462
  %v2768 = vunpack.c.l.b16 %v2463
  %v2769 = vunpack.c.l.b16 %v2464
  %v2770 = vunpack.c.l.b16 %v2465
  %v2771 = vunpack.c.l.b16 %v2466
  %v2772 = vunpack.c.l.b16 %v2467
  %v2773 = vunpack.c.l.b16 %v2468
  %v2774 = vunpack.c.l.b16 %v2469
  %v2775 = vunpack.c.l.b16 %v2470
  %v2776 = vunpack.c.l.b16 %v2471
  %v2777 = vunpack.c.l.b16 %v2472
  %v2778 = vunpack.c.l.b16 %v2473
  %v2779 = vunpack.c.l.b16 %v2474
  %v2780 = vunpack.c.l.b16 %v2475
  %v2781 = vunpack.c.l.b16 %v2476
  %v2782 = vunpack.c.l.b16 %v2477
  %v2783 = vunpack.c.l.b16 %v2478
  %v2784 = vunpack.c.l.b16 %v2479
  %v2785 = vunpack.c.l.b16 %v2480
  %v2786 = vunpack.c.l.b16 %v2481
  %v2787 = vunpack.c.l.b16 %v2482
  %v2788 = vunpack.c.l.b16 %v2483
  %v2789 = vunpack.c.l.b16 %v2484
  %v2790 = vunpack.c.l.b16 %v2485
  %v2791 = vunpack.c.l.b16 %v2486
  %v2792 = vunpack.c.l.b16 %v2487
  %v2793 = vunpack.c.l.b16 %v2488
  %v2794 = vunpack.c.l.b16 %v2489
  %v2795 = vunpack.c.l.b16 %v2490
  %v2796 = vunpack.c.l.b16 %v2491
  %v2797 = vunpack.c.l.b16 %v2492
  %v2798 = vunpack.c.l.b16 %v2493
  %v2799 = vunpack.c.l.b16 %v2494
  %v2800 = vunpack.c.l.b16 %v2495
  %v2801 = vunpack.c.l.b16 %v2496
  %v2802 = vunpack.c.l.b16 %v2497
  %v2803 = vunpack.c.l.b16 %v2498
  %v2804 = vunpack.c.l.b16 %v2499
  %v2805 = vunpack.c.l.b16 %v2500
  %v2806 = vunpack.c.l.b16 %v2501
  %v2807 = vunpack.c.l.b16 %v2502
  %v2808 = vunpack.c.l.b16 %v2503
  %v2809 = vunpack.c.l.b16 %v2504
  %v2810 = vunpack.c.l.b16 %v2505
  %v2811 = vunpack.c.l.b16 %v2506
  %v2812 = vunpack.c.l.b16 %v2507
  %v2813 = vunpack.c.l.b16 %v2508
  %v2814 = vunpack.c.l.b16 %v2509
  %v2815 = vunpack.c.l.b16 %v2510
  %v2816 = vunpack.c.l.b16 %v2511
  %v2817 = vunpack.c.l.b16 %v2512
  %v2818 = vunpack.c.l.b16 %v2513
  %v2819 = vunpack.c.l.b16 %v2514
  %v2820 = vunpack.c.l.b16 %v2515
  %v2821 = vunpack.c.l.b16 %v2516
  %v2822 = vunpack.c.l.b16 %v2517
  %v2823 = vunpack.c.l.b16 %v2518
  %v2824 = vunpack.c.l.b16 %v2519
  %v2825 = vunpack.c.l.b16 %v2520
  %v2826 = vunpack.c.l.b16 %v2521
  %v2827 = vunpack.c.l.b16 %v2522
  %v2828 = vunpack.c.l.b16 %v2523
  %v2829 = vunpack.c.l.b16 %v2524
  %v2830 = vunpack.c.l.b16 %v2525
  %v2831 = vunpack.c.l.b16 %v2526
  %v2832 = vunpack.c.l.b16 %v2527
  %v2833 = vunpack.c.l.b16 %v2528
  %v2834 = vunpack.c.l.b16 %v2529
  %v2835 = vunpack.c.l.b16 %v2530
  %v2836 = vunpack.c.l.b16 %v2531
  %v2837 = vunpack.c.l.b16 %v2532
  %v2838 = vunpack.c.l.b16 %v2533
  %v2839 = vunpack.c.l.b16 %v2534
  %v2840 = vunpack.c.l.b16 %v2535
  %v2841 = vunpack.c.l.b16 %v2536
  %v2842 = vunpack.c.l.b16 %v2537
  %v2843 = vunpack.c.l.b16 %v2538
  %v2844 = vunpack.c.l.b16 %v2539
  %v2845 = vunpack.c.l.b16 %v2540
  %v2846 = vunpack.c.l.b16 %v2541
  %v2847 = vunpack.c.l.b16 %v2542
  %v2848 = vunpack.c.l.b16 %v2543
  %v2849 = vunpack.c.l.b16 %v2544
  %v2850 = vunpack.c.l.b16 %v2545
  %v2851 = vunpack.c.l.b16 %v2546
  %v2852 = vunpack.c.l.b16 %v2547
  %v2853 = vunpack.c.l.b16 %v2548
  %v2854 = vunpack.c.l.b16 %v2549
  %v2855 = vunpack.c.l.b16 %v2550
  %v2856 = vunpack.c.l.b16 %v2551
  %v2857 = vunpack.c.l.b16 %v2552
  %v2858 = vpack.c.b16 %v2731, %v2730
  %v2859 = vpack.c.b16 %v2733, %v2732
  %v2860 = vpack.c.b16 %v2735, %v2734
  %v2861 = vpack.c.b16 %v2737, %v2736
  %v2862 = vpack.c.b16 %v2739, %v2738
  %v2863 = vpack.c.b16 %v2741, %v2740
  %v2864 = vpack.c.b16 %v2743, %v2742
  %v2865 = vpack.c.b16 %v2745, %v2744
  %v2866 = vpack.c.b16 %v2747, %v2746
  %v2867 = vpack.c.b16 %v2749, %v2748
  %v2868 = vpack.c.b16 %v2751, %v2750
  %v2869 = vpack.c.b16 %v2753, %v2752
  %v2870 = vpack.c.b16 %v2755, %v2754
  %v2871 = vpack.c.b16 %v2757, %v2756
  %v2872 = vpack.c.b16 %v2759, %v2758
  %v2873 = vpack.c.b16 %v2761, %v2760
  %v2874 = vpack.c.b16 %v2763, %v2762
  %v2875 = vpack.c.b16 %v2765, %v2764
  %v2876 = vpack.c.b16 %v2767, %v2766
  %v2877 = vpack.c.b16 %v2769, %v2768
  %v2878 = vpack.c.b16 %v2771, %v2770
  %v2879 = vpack.c.b16 %v2773, %v2772
  %v2880 = vpack.c.b16 %v2775, %v2774
  %v2881 = vpack.c.b16 %v2777, %v2776
  %v2882 = vpack.c.b16 %v2779, %v2778
  %v2883 = vpack.c.b16 %v2781, %v2780
  %v2884 = vpack.c.b16 %v2783, %v2782
  %v2885 = vpack.c.b16 %v2785, %v2784
  %v2886 = vpack.c.b16 %v2787, %v2786
  %v2887 = vpack.c.b16 %v2789, %v2788
  %v2888 = vpack.c.b16 %v2791, %v2790
  %v2889 = vpack.c.b16 %v2793, %v2792
  %v2890 = vpack.c.b16 %v2795, %v2794
  %v2891 = vpack.c.b16 %v2797, %v2796
  %v2892 = vpack.c.b16 %v2799, %v2798
  %v2893 = vpack.c.b16 %v2801, %v2800
  %v2894 = vpack.c.b16 %v2803, %v2802
  %v2895 = vpack.c.b16 %v2805, %v2804
  %v2896 = vpack.c.b16 %v2807, %v2806
  %v2897 = vpack.c.b16 %v2809, %v2808
  %v2898 = vpack.c.b16 %v2811, %v2810
  %v2899 = vpack.c.b16 %v2813, %v2812
  %v2900 = vpack.c.b16 %v2815, %v2814
  %v2901 = vpack.c.b16 %v2817, %v2816
  %v2902 = vpack.c.b16 %v2819, %v2818
  %v2903 = vpack.c.b16 %v2821, %v2820
  %v2904 = vpack.c.b16 %v2823, %v2822
  %v2905 = vpack.c.b16 %v2825, %v2824
  %v2906 = vpack.c.b16 %v2827, %v2826
  %v2907 = vpack.c.b16 %v2829, %v2828
  %v2908 = vpack.c.b16 %v2831, %v2830
  %v2909 = vpack.c.b16 %v2833, %v2832
  %v2910 = vpack.c.b16 %v2835, %v2834
  %v2911 = vpack.c.b16 %v2837, %v2836
  %v2912 = vpack.c.b16 %v2839, %v2838
  %v2913 = vpack.c.b16 %v2841, %v2840
  %v2914 = vpack.c.b16 %v2843, %v2842
  %v2915 = vpack.c.b16 %v2845, %v2844
  %v2916 = vpack.c.b16 %v2847, %v2846
  %v2917 = vpack.c.b16 %v2849, %v2848
  %v2918 = vpack.c.b16 %v2851, %v2850
  %v2919 = vpack.c.b16 %v2853, %v2852
  %v2920 = vpack.c.b16 %v2855, %v2854
  %v2921 = vpack.c.b16 %v2857, %v2856
  %2986 = vmatpush.bf16.msra.mxu0 %v2865
  %2987 = vmatpush.bf16.msra.mxu0 %v2864
  %2988 = vmatpush.bf16.msra.mxu0 %v2863
  %2989 = vmatpush.bf16.msra.mxu0 %v2862
  %2990 = vmatpush.bf16.msra.mxu0 %v2861
  %2991 = vmatpush.bf16.msra.mxu0 %v2860
  %2992 = vmatpush.bf16.msra.mxu0 %v2859
  %2993 = vmatpush.bf16.msra.mxu0 %v2858
  %2994 = vmatmul.bf16.gmra.mxu0 %v2586
  %v2995 = vpop.f32.mrf.mxu0
  %v2996 = vadd.f32 %v2560, %v2995
  %v2997 = vpop.f32.mrf.mxu0
  %v2998 = vadd.f32 %v2560, %v2997
  %2999 = vdwg.mxu0
  %3000 = vmatpush.bf16.msra.mxu0 %v2873
  %3001 = vmatpush.bf16.msra.mxu0 %v2872
  %3002 = vmatpush.bf16.msra.mxu0 %v2871
  %3003 = vmatpush.bf16.msra.mxu0 %v2870
  %3004 = vmatpush.bf16.msra.mxu0 %v2869
  %3005 = vmatpush.bf16.msra.mxu0 %v2868
  %3006 = vmatpush.bf16.msra.mxu0 %v2867
  %3007 = vmatpush.bf16.msra.mxu0 %v2866
  %3008 = vmatmul.bf16.gmra.mxu0 %v2587
  %v3009 = vpop.f32.mrf.mxu0
  %v3010 = vadd.f32 %v2996, %v3009
  %v3011 = vpop.f32.mrf.mxu0
  %v3012 = vadd.f32 %v2998, %v3011
  %3013 = vdwg.mxu0
  %3014 = vmatpush.bf16.msra.mxu0 %v2881
  %3015 = vmatpush.bf16.msra.mxu0 %v2880
  %3016 = vmatpush.bf16.msra.mxu0 %v2879
  %3017 = vmatpush.bf16.msra.mxu0 %v2878
  %3018 = vmatpush.bf16.msra.mxu0 %v2877
  %3019 = vmatpush.bf16.msra.mxu0 %v2876
  %3020 = vmatpush.bf16.msra.mxu0 %v2875
  %3021 = vmatpush.bf16.msra.mxu0 %v2874
  %3022 = vmatmul.bf16.gmra.mxu0 %v2588
  %v3023 = vpop.f32.mrf.mxu0
  %v3024 = vadd.f32 %v3010, %v3023
  %v3025 = vpop.f32.mrf.mxu0
  %v3026 = vadd.f32 %v3012, %v3025
  %3027 = vdwg.mxu0
  %3028 = vmatpush.bf16.msra.mxu0 %v2889
  %3029 = vmatpush.bf16.msra.mxu0 %v2888
  %3030 = vmatpush.bf16.msra.mxu0 %v2887
  %3031 = vmatpush.bf16.msra.mxu0 %v2886
  %3032 = vmatpush.bf16.msra.mxu0 %v2885
  %3033 = vmatpush.bf16.msra.mxu0 %v2884
  %3034 = vmatpush.bf16.msra.mxu0 %v2883
  %3035 = vmatpush.bf16.msra.mxu0 %v2882
  %3036 = vmatmul.bf16.gmra.mxu0 %v2589
  %v3037 = vpop.f32.mrf.mxu0
  %v3038 = vadd.f32 %v3024, %v3037
  %v3039 = vpop.f32.mrf.mxu0
  %v3040 = vadd.f32 %v3026, %v3039
  %3041 = vdwg.mxu0
  %3042 = vmatpush.bf16.msra.mxu0 %v2897
  %3043 = vmatpush.bf16.msra.mxu0 %v2896
  %3044 = vmatpush.bf16.msra.mxu0 %v2895
  %3045 = vmatpush.bf16.msra.mxu0 %v2894
  %3046 = vmatpush.bf16.msra.mxu0 %v2893
  %3047 = vmatpush.bf16.msra.mxu0 %v2892
  %3048 = vmatpush.bf16.msra.mxu0 %v2891
  %3049 = vmatpush.bf16.msra.mxu0 %v2890
  %3050 = vmatmul.bf16.gmra.mxu0 %v2590
  %v3051 = vpop.f32.mrf.mxu0
  %v3052 = vadd.f32 %v3038, %v3051
  %v3053 = vpop.f32.mrf.mxu0
  %v3054 = vadd.f32 %v3040, %v3053
  %3055 = vdwg.mxu0
  %3056 = vmatpush.bf16.msra.mxu0 %v2905
  %3057 = vmatpush.bf16.msra.mxu0 %v2904
  %3058 = vmatpush.bf16.msra.mxu0 %v2903
  %3059 = vmatpush.bf16.msra.mxu0 %v2902
  %3060 = vmatpush.bf16.msra.mxu0 %v2901
  %3061 = vmatpush.bf16.msra.mxu0 %v2900
  %3062 = vmatpush.bf16.msra.mxu0 %v2899
  %3063 = vmatpush.bf16.msra.mxu0 %v2898
  %3064 = vmatmul.bf16.gmra.mxu0 %v2591
  %v3065 = vpop.f32.mrf.mxu0
  %v3066 = vadd.f32 %v3052, %v3065
  %v3067 = vpop.f32.mrf.mxu0
  %v3068 = vadd.f32 %v3054, %v3067
  %3069 = vdwg.mxu0
  %3070 = vmatpush.bf16.msra.mxu0 %v2913
  %3071 = vmatpush.bf16.msra.mxu0 %v2912
  %3072 = vmatpush.bf16.msra.mxu0 %v2911
  %3073 = vmatpush.bf16.msra.mxu0 %v2910
  %3074 = vmatpush.bf16.msra.mxu0 %v2909
  %3075 = vmatpush.bf16.msra.mxu0 %v2908
  %3076 = vmatpush.bf16.msra.mxu0 %v2907
  %3077 = vmatpush.bf16.msra.mxu0 %v2906
  %3078 = vmatmul.bf16.gmra.mxu0 %v2592
  %v3079 = vpop.f32.mrf.mxu0
  %v3080 = vadd.f32 %v3066, %v3079
  %v3081 = vpop.f32.mrf.mxu0
  %v3082 = vadd.f32 %v3068, %v3081
  %3083 = vdwg.mxu0
  %3084 = vmatpush.bf16.msra.mxu0 %v2921
  %3085 = vmatpush.bf16.msra.mxu0 %v2920
  %3086 = vmatpush.bf16.msra.mxu0 %v2919
  %3087 = vmatpush.bf16.msra.mxu0 %v2918
  %3088 = vmatpush.bf16.msra.mxu0 %v2917
  %3089 = vmatpush.bf16.msra.mxu0 %v2916
  %3090 = vmatpush.bf16.msra.mxu0 %v2915
  %3091 = vmatpush.bf16.msra.mxu0 %v2914
  %3092 = vmatmul.bf16.gmra.mxu0 %v2593
  %v3093 = vpop.f32.mrf.mxu0
  %v3094 = vadd.f32 %v3080, %v3093
  %v3095 = vpop.f32.mrf.mxu0
  %v3096 = vadd.f32 %v3082, %v3095
  %3097 = vdwg.mxu0
  %v3098 = vsel %vm138, %v3094, 0.0
  %v3099 = vsel %vm138, %v3096, 0.0
  %v3100 = vadd.f32 %v3098, %v3099
  %v3101 = vrot.slane %v3100, 4
  %v3102 = vadd.f32 %v3100, %v3101
  %v3103 = vrot.slane %v3102, 2
  %v3104 = vadd.f32 %v3102, %v3103
  %v3105 = vrot.slane %v3104, 1
  %v3106 = vadd.f32 %v3104, %v3105
  %v3107 = vmul.f32 %v3106, %v154
  %v3108 = vsub.f32 %v3094, %v3107
  %v3109 = vsub.f32 %v3096, %v3107
  %v3110 = vmul.f32 %v3108, %v3108
  %v3111 = vmul.f32 %v3109, %v3109
  %v3112 = vsel %vm138, %v3110, 0.0
  %v3113 = vsel %vm138, %v3111, 0.0
  %v3114 = vadd.f32 %v3112, %v3113
  %v3115 = vrot.slane %v3114, 4
  %v3116 = vadd.f32 %v3114, %v3115
  %v3117 = vrot.slane %v3116, 2
  %v3118 = vadd.f32 %v3116, %v3117
  %v3119 = vrot.slane %v3118, 1
  %v3120 = vadd.f32 %v3118, %v3119
  %v3121 = vmul.f32 %v3120, %v154
  %v3122 = vadd.f32 %v3121, 1e-05
  %v3123 = vrsqrt.pop %v3122
  %v3124 = vmul.f32 %v3123, %v3122
  %v3125 = vmul.f32 %v3124, %v3123
  %v3126 = vmul.f32 0.5, %v3125
  %v3127 = vsub.f32 1.5, %v3126
  %v3128 = vmul.f32 %v3123, %v3127
  %vm3129 = vweird.f32 %v3122
  %vm3130 = vweird.f32 %v3123
  %vm3131 = vmor %vm3129, %vm3130
  %v3132 = vsel %vm3131, %v3123, %v3128
  %v3133 = vmul.f32 %v2556, %v3132
  %v3135 = vperm.slane %v3133, 0
  %v3137 = vmul.f32 %v3108, %v3135
  %v3138 = vmul.f32 %v3109, %v3135
  %v3140 = vperm.slane %v2558, 0
  %v3142 = vadd.f32 %v3137, %v3140
  %v3143 = vadd.f32 %v3138, %v3140
  %v3144 = vmul.f32 %v3142, 0.5
  %v3145 = vmul.f32 %v3143, 0.5
  %v3146 = vtanh.pop %v3144
  %v3147 = vtanh.pop %v3145
  %v3148 = vmul.f32 %v3146, 0.5
  %v3149 = vmul.f32 %v3147, 0.5
  %v3150 = vadd.f32 %v3148, 0.5
  %v3151 = vadd.f32 %v3149, 0.5
  %v3152 = vmul.f32 %v3142, %v3150
  %v3153 = vmul.f32 %v3143, %v3151
  %v3154 = vpack.c.bf16 %v3152, %v3152
  %v3155 = vpack.c.bf16 %v3153, %v3153
  %3156 = vst.msk [vmem:[#allocation2 + $0x20] sm:$0xf] %vm204, %v3154
  %3157 = vst.msk [vmem:[#allocation2 + $0x48] sm:$0xf] %vm204, %v3155
  %3158 = vst.msk [vmem:[#allocation2 + $0x20] sm:$0xf] %vm207, 0
  %3159 = vst.msk [vmem:[#allocation2 + $0x48] sm:$0xf] %vm207, 0
  %v3160 = vld [vmem:[#allocation2] sm:$0xff]
  %v3161 = vld [vmem:[#allocation2 + $0x8] sm:$0xff]
  %v3162 = vld [vmem:[#allocation2 + $0x10] sm:$0xff]
  %v3163 = vld [vmem:[#allocation2 + $0x18] sm:$0xff]
  %v3164 = vld [vmem:[#allocation2 + $0x20] sm:$0xf]
  %v3165 = vld [vmem:[#allocation2 + $0x28] sm:$0xff]
  %v3166 = vld [vmem:[#allocation2 + $0x30] sm:$0xff]
  %v3167 = vld [vmem:[#allocation2 + $0x38] sm:$0xff]
  %v3168 = vld [vmem:[#allocation2 + $0x40] sm:$0xff]
  %v3169 = vld [vmem:[#allocation2 + $0x48] sm:$0xf]
  %v3170 = vld [vmem:[%s2 + $0x7c0] sm:$0xf]
  %v3171 = vld [vmem:[%s2 + $0x7c4] sm:$0xf]
  %v3172 = vld [vmem:[%s2 + $0x7c8] sm:$0xf]
  %v3173 = vld [vmem:[%s2 + $0x7cc] sm:$0xf]
  %v3174 = vld [vmem:[%s2 + $0x7d0] sm:$0xf]
  %v3175 = vld [vmem:[%s2 + $0x7d4] sm:$0xf]
  %v3176 = vld [vmem:[%s2 + $0x7d8] sm:$0xf]
  %v3177 = vld [vmem:[%s2 + $0x7dc] sm:$0xf]
  %v3178 = vld [vmem:[%s2 + $0x7e0] sm:$0xf]
  %v3179 = vld [vmem:[%s2 + $0x7e4] sm:$0xf]
  %v3180 = vld [vmem:[%s2 + $0x7e8] sm:$0xf]
  %v3181 = vld [vmem:[%s2 + $0x7ec] sm:$0xf]
  %v3182 = vld [vmem:[%s2 + $0x7f0] sm:$0xf]
  %v3183 = vld [vmem:[%s2 + $0x7f4] sm:$0xf]
  %v3184 = vld [vmem:[%s2 + $0x7f8] sm:$0xf]
  %v3185 = vld [vmem:[%s2 + $0x7fc] sm:$0xf]
  %v3186 = vld [vmem:[%s2 + $0x800] sm:$0xf]
  %v3187 = vld [vmem:[%s2 + $0x804] sm:$0xf]
  %v3188 = vld [vmem:[%s2 + $0x808] sm:$0xf]
  %v3189 = vld [vmem:[%s2 + $0x80c] sm:$0xf]
  %v3190 = vld [vmem:[%s2 + $0x810] sm:$0xf]
  %v3191 = vld [vmem:[%s2 + $0x814] sm:$0xf]
  %v3192 = vld [vmem:[%s2 + $0x818] sm:$0xf]
  %v3193 = vld [vmem:[%s2 + $0x81c] sm:$0xf]
  %v3194 = vld [vmem:[%s2 + $0x820] sm:$0xf]
  %v3195 = vld [vmem:[%s2 + $0x824] sm:$0xf]
  %v3196 = vld [vmem:[%s2 + $0x828] sm:$0xf]
  %v3197 = vld [vmem:[%s2 + $0x82c] sm:$0xf]
  %v3198 = vld [vmem:[%s2 + $0x830] sm:$0xf]
  %v3199 = vld [vmem:[%s2 + $0x834] sm:$0xf]
  %v3200 = vld [vmem:[%s2 + $0x838] sm:$0xf]
  %v3201 = vld [vmem:[%s2 + $0x83c] sm:$0xf]
  %v3202 = vld [vmem:[%s2 + $0x840] sm:$0xf]
  %v3203 = vld [vmem:[%s2 + $0x844] sm:$0xf]
  %v3204 = vld [vmem:[%s2 + $0x848] sm:$0xf]
  %v3205 = vld [vmem:[%s2 + $0x84c] sm:$0xf]
  %v3206 = vld [vmem:[%s2 + $0x850] sm:$0xf]
  %v3207 = vld [vmem:[%s2 + $0x854] sm:$0xf]
  %v3208 = vld [vmem:[%s2 + $0x858] sm:$0xf]
  %v3209 = vld [vmem:[%s2 + $0x85c] sm:$0xf]
  %v3210 = vld [vmem:[%s2 + $0x860] sm:$0xf]
  %v3211 = vld [vmem:[%s2 + $0x864] sm:$0xf]
  %v3212 = vld [vmem:[%s2 + $0x868] sm:$0xf]
  %v3213 = vld [vmem:[%s2 + $0x86c] sm:$0xf]
  %v3214 = vld [vmem:[%s2 + $0x870] sm:$0xf]
  %v3215 = vld [vmem:[%s2 + $0x874] sm:$0xf]
  %v3216 = vld [vmem:[%s2 + $0x878] sm:$0xf]
  %v3217 = vld [vmem:[%s2 + $0x87c] sm:$0xf]
  %v3218 = vld [vmem:[%s2 + $0x880] sm:$0xf]
  %v3219 = vld [vmem:[%s2 + $0x884] sm:$0xf]
  %v3220 = vld [vmem:[%s2 + $0x888] sm:$0xf]
  %v3221 = vld [vmem:[%s2 + $0x88c] sm:$0xf]
  %v3222 = vld [vmem:[%s2 + $0x890] sm:$0xf]
  %v3223 = vld [vmem:[%s2 + $0x894] sm:$0xf]
  %v3224 = vld [vmem:[%s2 + $0x898] sm:$0xf]
  %v3225 = vld [vmem:[%s2 + $0x89c] sm:$0xf]
  %v3226 = vld [vmem:[%s2 + $0x8a0] sm:$0xf]
  %v3227 = vld [vmem:[%s2 + $0x8a4] sm:$0xf]
  %v3228 = vld [vmem:[%s2 + $0x8a8] sm:$0xf]
  %v3229 = vld [vmem:[%s2 + $0x8ac] sm:$0xf]
  %v3230 = vld [vmem:[%s2 + $0x8b0] sm:$0xf]
  %v3231 = vld [vmem:[%s2 + $0x8b4] sm:$0xf]
  %v3232 = vld [vmem:[%s2 + $0x8b8] sm:$0xf]
  %v3233 = vld [vmem:[%s2 + $0x8bc] sm:$0xf]
  %v3234 = vld [vmem:[%s2 + $0x8c0] sm:$0xf]
  %v3235 = vld [vmem:[%s2 + $0x8c4] sm:$0xf]
  %v3236 = vld [vmem:[%s2 + $0x8c8] sm:$0xf]
  %v3237 = vld [vmem:[%s2 + $0x8cc] sm:$0xf]
  %v3238 = vld [vmem:[%s2 + $0x8d0] sm:$0xf]
  %v3239 = vld [vmem:[%s2 + $0x8d4] sm:$0xf]
  %v3240 = vld [vmem:[%s2 + $0x8d8] sm:$0xf]
  %v3241 = vld [vmem:[%s2 + $0x8dc] sm:$0xf]
  %v3242 = vld [vmem:[%s2 + $0x8e0] sm:$0xf]
  %v3243 = vld [vmem:[%s2 + $0x8e4] sm:$0xf]
  %v3244 = vld [vmem:[%s2 + $0x8e8] sm:$0xf]
  %v3245 = vld [vmem:[%s2 + $0x8ec] sm:$0xf]
  %v3246 = vld [vmem:[%s2 + $0x8f0] sm:$0xf]
  %v3247 = vld [vmem:[%s2 + $0x8f4] sm:$0xf]
  %v3248 = vld [vmem:[%s2 + $0x8f8] sm:$0xf]
  %v3249 = vld [vmem:[%s2 + $0x8fc] sm:$0xf]
  %v3250 = vld [vmem:[%s2 + $0x900] sm:$0xf]
  %v3251 = vld [vmem:[%s2 + $0x904] sm:$0xf]
  %v3252 = vld [vmem:[%s2 + $0x908] sm:$0xf]
  %v3253 = vld [vmem:[%s2 + $0x90c] sm:$0xf]
  %v3254 = vld [vmem:[%s2 + $0x910] sm:$0xf]
  %v3255 = vld [vmem:[%s2 + $0x914] sm:$0xf]
  %v3256 = vld [vmem:[%s2 + $0x918] sm:$0xf]
  %v3257 = vld [vmem:[%s2 + $0x91c] sm:$0xf]
  %v3258 = vld [vmem:[%s2 + $0x920] sm:$0xf]
  %v3259 = vld [vmem:[%s2 + $0x924] sm:$0xf]
  %v3260 = vld [vmem:[%s2 + $0x928] sm:$0xf]
  %v3261 = vld [vmem:[%s2 + $0x92c] sm:$0xf]
  %v3262 = vld [vmem:[%s2 + $0x930] sm:$0xf]
  %v3263 = vld [vmem:[%s2 + $0x934] sm:$0xf]
  %v3264 = vld [vmem:[%s2 + $0x938] sm:$0xf]
  %v3265 = vld [vmem:[%s2 + $0x93c] sm:$0xf]
  %v3266 = vld [vmem:[%s2 + $0x940] sm:$0xf]
  %v3267 = vld [vmem:[%s2 + $0x944] sm:$0xf]
  %v3268 = vld [vmem:[%s2 + $0x948] sm:$0xf]
  %v3269 = vld [vmem:[%s2 + $0x94c] sm:$0xf]
  %v3270 = vld [vmem:[%s2 + $0x950] sm:$0xf]
  %v3271 = vld [vmem:[%s2 + $0x954] sm:$0xf]
  %v3272 = vld [vmem:[%s2 + $0x958] sm:$0xf]
  %v3273 = vld [vmem:[%s2 + $0x95c] sm:$0xf]
  %v3274 = vld [vmem:[%s2 + $0x960] sm:$0xf]
  %v3275 = vld [vmem:[%s2 + $0x964] sm:$0xf]
  %v3276 = vld [vmem:[%s2 + $0x968] sm:$0xf]
  %v3277 = vld [vmem:[%s2 + $0x96c] sm:$0xf]
  %v3278 = vld [vmem:[%s2 + $0x970] sm:$0xf]
  %v3279 = vld [vmem:[%s2 + $0x974] sm:$0xf]
  %v3280 = vld [vmem:[%s2 + $0x978] sm:$0xf]
  %v3281 = vld [vmem:[%s2 + $0x97c] sm:$0xf]
  %v3282 = vld [vmem:[%s2 + $0x980] sm:$0xf]
  %v3283 = vld [vmem:[%s2 + $0x984] sm:$0xf]
  %v3284 = vld [vmem:[%s2 + $0x988] sm:$0xf]
  %v3285 = vld [vmem:[%s2 + $0x98c] sm:$0xf]
  %v3286 = vld [vmem:[%s2 + $0x990] sm:$0xf]
  %v3287 = vld [vmem:[%s2 + $0x994] sm:$0xf]
  %v3288 = vld [vmem:[%s2 + $0x998] sm:$0xf]
  %v3289 = vld [vmem:[%s2 + $0x99c] sm:$0xf]
  %v3290 = vld [vmem:[%s2 + $0x9a0] sm:$0xf]
  %v3291 = vld [vmem:[%s2 + $0x9a4] sm:$0xf]
  %v3292 = vld [vmem:[%s2 + $0x9a8] sm:$0xf]
  %v3293 = vld [vmem:[%s2 + $0x9ac] sm:$0xf]
  %v3294 = vld [vmem:[%s2 + $0x9b0] sm:$0xf]
  %v3295 = vld [vmem:[%s2 + $0x9b4] sm:$0xf]
  %v3296 = vld [vmem:[%s2 + $0x9b8] sm:$0xf]
  %v3297 = vld [vmem:[%s2 + $0x9bc] sm:$0xf]
  %v3298 = vld [vmem:[%s2 + $0x9c0] sm:$0xf]
  %v3299 = vld [vmem:[%s2 + $0x9c4] sm:$0xf]
  %v3300 = vld [vmem:[%s2 + $0x9c8] sm:$0xf]
  %v3301 = vld [vmem:[%s2 + $0x9cc] sm:$0xf]
  %v3302 = vld [vmem:[%s2 + $0x9d0] sm:$0xf]
  %v3303 = vld [vmem:[%s2 + $0x9d4] sm:$0xf]
  %v3304 = vld [vmem:[%s2 + $0x9d8] sm:$0xf]
  %v3305 = vld [vmem:[%s2 + $0x9dc] sm:$0xf]
  %v3306 = vld [vmem:[%s2 + $0x9e0] sm:$0xf]
  %v3307 = vld [vmem:[%s2 + $0x9e4] sm:$0xf]
  %v3308 = vld [vmem:[%s2 + $0x9e8] sm:$0xf]
  %v3309 = vld [vmem:[%s2 + $0x9ec] sm:$0xf]
  %v3310 = vld [vmem:[%s2 + $0x9f0] sm:$0xf]
  %v3311 = vld [vmem:[%s2 + $0x9f4] sm:$0xf]
  %v3312 = vld [vmem:[%s2 + $0x9f8] sm:$0xf]
  %v3313 = vld [vmem:[%s2 + $0x9fc] sm:$0xf]
  %s3314 = scalar_lea.vmem %s3, 21
  %v3315 = vld [vmem:[%s3314] sm:$0x1]
  %s3316 = scalar_lea.vmem %s3, 22
  %v3317 = vld [vmem:[%s3316] sm:$0x1]
  %s3318 = scalar_lea.vmem %s3, 23
  %v3319 = vld [vmem:[%s3318] sm:$0x1]
  %v3321 = vperm.slane %v3315, 0
  %v3333 = vunpack.c.l.b16 %v3160
  %v3334 = vunpack.c.h.b16 %v3160
  %v3335 = vunpack.c.l.b16 %v3161
  %v3336 = vunpack.c.h.b16 %v3161
  %v3337 = vunpack.c.l.b16 %v3162
  %v3338 = vunpack.c.h.b16 %v3162
  %v3339 = vunpack.c.l.b16 %v3163
  %v3340 = vunpack.c.h.b16 %v3163
  %v3341 = vunpack.c.l.b16 %v3164
  %v3342 = vunpack.c.l.b16 %v3165
  %v3343 = vunpack.c.h.b16 %v3165
  %v3344 = vunpack.c.l.b16 %v3166
  %v3345 = vunpack.c.h.b16 %v3166
  %v3346 = vunpack.c.l.b16 %v3167
  %v3347 = vunpack.c.h.b16 %v3167
  %v3348 = vunpack.c.l.b16 %v3168
  %v3349 = vunpack.c.h.b16 %v3168
  %v3350 = vunpack.c.l.b16 %v3169
  %v3351 = vpack.c.b16 %v3342, %v3333
  %v3352 = vpack.c.b16 %v3343, %v3334
  %v3353 = vpack.c.b16 %v3344, %v3335
  %v3354 = vpack.c.b16 %v3345, %v3336
  %v3355 = vpack.c.b16 %v3346, %v3337
  %v3356 = vpack.c.b16 %v3347, %v3338
  %v3357 = vpack.c.b16 %v3348, %v3339
  %v3358 = vpack.c.b16 %v3349, %v3340
  %v3359 = vpack.c.b16 %v3350, %v3341
  %v3513 = vunpack.c.l.b16 %v3170
  %v3514 = vunpack.c.l.b16 %v3171
  %v3515 = vunpack.c.l.b16 %v3172
  %v3516 = vunpack.c.l.b16 %v3173
  %v3517 = vunpack.c.l.b16 %v3174
  %v3518 = vunpack.c.l.b16 %v3175
  %v3519 = vunpack.c.l.b16 %v3176
  %v3520 = vunpack.c.l.b16 %v3177
  %v3521 = vunpack.c.l.b16 %v3178
  %v3522 = vunpack.c.l.b16 %v3179
  %v3523 = vunpack.c.l.b16 %v3180
  %v3524 = vunpack.c.l.b16 %v3181
  %v3525 = vunpack.c.l.b16 %v3182
  %v3526 = vunpack.c.l.b16 %v3183
  %v3527 = vunpack.c.l.b16 %v3184
  %v3528 = vunpack.c.l.b16 %v3185
  %v3529 = vunpack.c.l.b16 %v3186
  %v3530 = vunpack.c.l.b16 %v3187
  %v3531 = vunpack.c.l.b16 %v3188
  %v3532 = vunpack.c.l.b16 %v3189
  %v3533 = vunpack.c.l.b16 %v3190
  %v3534 = vunpack.c.l.b16 %v3191
  %v3535 = vunpack.c.l.b16 %v3192
  %v3536 = vunpack.c.l.b16 %v3193
  %v3537 = vunpack.c.l.b16 %v3194
  %v3538 = vunpack.c.l.b16 %v3195
  %v3539 = vunpack.c.l.b16 %v3196
  %v3540 = vunpack.c.l.b16 %v3197
  %v3541 = vunpack.c.l.b16 %v3198
  %v3542 = vunpack.c.l.b16 %v3199
  %v3543 = vunpack.c.l.b16 %v3200
  %v3544 = vunpack.c.l.b16 %v3201
  %v3545 = vunpack.c.l.b16 %v3202
  %v3546 = vunpack.c.l.b16 %v3203
  %v3547 = vunpack.c.l.b16 %v3204
  %v3548 = vunpack.c.l.b16 %v3205
  %v3549 = vunpack.c.l.b16 %v3206
  %v3550 = vunpack.c.l.b16 %v3207
  %v3551 = vunpack.c.l.b16 %v3208
  %v3552 = vunpack.c.l.b16 %v3209
  %v3553 = vunpack.c.l.b16 %v3210
  %v3554 = vunpack.c.l.b16 %v3211
  %v3555 = vunpack.c.l.b16 %v3212
  %v3556 = vunpack.c.l.b16 %v3213
  %v3557 = vunpack.c.l.b16 %v3214
  %v3558 = vunpack.c.l.b16 %v3215
  %v3559 = vunpack.c.l.b16 %v3216
  %v3560 = vunpack.c.l.b16 %v3217
  %v3561 = vunpack.c.l.b16 %v3218
  %v3562 = vunpack.c.l.b16 %v3219
  %v3563 = vunpack.c.l.b16 %v3220
  %v3564 = vunpack.c.l.b16 %v3221
  %v3565 = vunpack.c.l.b16 %v3222
  %v3566 = vunpack.c.l.b16 %v3223
  %v3567 = vunpack.c.l.b16 %v3224
  %v3568 = vunpack.c.l.b16 %v3225
  %v3569 = vunpack.c.l.b16 %v3226
  %v3570 = vunpack.c.l.b16 %v3227
  %v3571 = vunpack.c.l.b16 %v3228
  %v3572 = vunpack.c.l.b16 %v3229
  %v3573 = vunpack.c.l.b16 %v3230
  %v3574 = vunpack.c.l.b16 %v3231
  %v3575 = vunpack.c.l.b16 %v3232
  %v3576 = vunpack.c.l.b16 %v3233
  %v3577 = vunpack.c.l.b16 %v3234
  %v3578 = vunpack.c.l.b16 %v3235
  %v3579 = vunpack.c.l.b16 %v3236
  %v3580 = vunpack.c.l.b16 %v3237
  %v3581 = vunpack.c.l.b16 %v3238
  %v3582 = vunpack.c.l.b16 %v3239
  %v3583 = vunpack.c.l.b16 %v3240
  %v3584 = vunpack.c.l.b16 %v3241
  %v3585 = vunpack.c.l.b16 %v3242
  %v3586 = vunpack.c.l.b16 %v3243
  %v3587 = vunpack.c.l.b16 %v3244
  %v3588 = vunpack.c.l.b16 %v3245
  %v3589 = vunpack.c.l.b16 %v3246
  %v3590 = vunpack.c.l.b16 %v3247
  %v3591 = vunpack.c.l.b16 %v3248
  %v3592 = vunpack.c.l.b16 %v3249
  %v3593 = vunpack.c.l.b16 %v3250
  %v3594 = vunpack.c.l.b16 %v3251
  %v3595 = vunpack.c.l.b16 %v3252
  %v3596 = vunpack.c.l.b16 %v3253
  %v3597 = vunpack.c.l.b16 %v3254
  %v3598 = vunpack.c.l.b16 %v3255
  %v3599 = vunpack.c.l.b16 %v3256
  %v3600 = vunpack.c.l.b16 %v3257
  %v3601 = vunpack.c.l.b16 %v3258
  %v3602 = vunpack.c.l.b16 %v3259
  %v3603 = vunpack.c.l.b16 %v3260
  %v3604 = vunpack.c.l.b16 %v3261
  %v3605 = vunpack.c.l.b16 %v3262
  %v3606 = vunpack.c.l.b16 %v3263
  %v3607 = vunpack.c.l.b16 %v3264
  %v3608 = vunpack.c.l.b16 %v3265
  %v3609 = vunpack.c.l.b16 %v3266
  %v3610 = vunpack.c.l.b16 %v3267
  %v3611 = vunpack.c.l.b16 %v3268
  %v3612 = vunpack.c.l.b16 %v3269
  %v3613 = vunpack.c.l.b16 %v3270
  %v3614 = vunpack.c.l.b16 %v3271
  %v3615 = vunpack.c.l.b16 %v3272
  %v3616 = vunpack.c.l.b16 %v3273
  %v3617 = vunpack.c.l.b16 %v3274
  %v3618 = vunpack.c.l.b16 %v3275
  %v3619 = vunpack.c.l.b16 %v3276
  %v3620 = vunpack.c.l.b16 %v3277
  %v3621 = vunpack.c.l.b16 %v3278
  %v3622 = vunpack.c.l.b16 %v3279
  %v3623 = vunpack.c.l.b16 %v3280
  %v3624 = vunpack.c.l.b16 %v3281
  %v3625 = vunpack.c.l.b16 %v3282
  %v3626 = vunpack.c.l.b16 %v3283
  %v3627 = vunpack.c.l.b16 %v3284
  %v3628 = vunpack.c.l.b16 %v3285
  %v3629 = vunpack.c.l.b16 %v3286
  %v3630 = vunpack.c.l.b16 %v3287
  %v3631 = vunpack.c.l.b16 %v3288
  %v3632 = vunpack.c.l.b16 %v3289
  %v3633 = vunpack.c.l.b16 %v3290
  %v3634 = vunpack.c.l.b16 %v3291
  %v3635 = vunpack.c.l.b16 %v3292
  %v3636 = vunpack.c.l.b16 %v3293
  %v3637 = vunpack.c.l.b16 %v3294
  %v3638 = vunpack.c.l.b16 %v3295
  %v3639 = vunpack.c.l.b16 %v3296
  %v3640 = vunpack.c.l.b16 %v3297
  %v3641 = vunpack.c.l.b16 %v3298
  %v3642 = vunpack.c.l.b16 %v3299
  %v3643 = vunpack.c.l.b16 %v3300
  %v3644 = vunpack.c.l.b16 %v3301
  %v3645 = vunpack.c.l.b16 %v3302
  %v3646 = vunpack.c.l.b16 %v3303
  %v3647 = vunpack.c.l.b16 %v3304
  %v3648 = vunpack.c.l.b16 %v3305
  %v3649 = vunpack.c.l.b16 %v3306
  %v3650 = vunpack.c.l.b16 %v3307
  %v3651 = vunpack.c.l.b16 %v3308
  %v3652 = vunpack.c.l.b16 %v3309
  %v3653 = vunpack.c.l.b16 %v3310
  %v3654 = vunpack.c.l.b16 %v3311
  %v3655 = vunpack.c.l.b16 %v3312
  %v3656 = vunpack.c.l.b16 %v3313
  %v3657 = vpack.c.b16 %v3514, %v3513
  %v3658 = vpack.c.b16 %v3516, %v3515
  %v3659 = vpack.c.b16 %v3518, %v3517
  %v3660 = vpack.c.b16 %v3520, %v3519
  %v3661 = vpack.c.b16 %v3522, %v3521
  %v3662 = vpack.c.b16 %v3524, %v3523
  %v3663 = vpack.c.b16 %v3526, %v3525
  %v3664 = vpack.c.b16 %v3528, %v3527
  %v3665 = vpack.c.b16 %v3530, %v3529
  %v3666 = vpack.c.b16 %v3532, %v3531
  %v3667 = vpack.c.b16 %v3534, %v3533
  %v3668 = vpack.c.b16 %v3536, %v3535
  %v3669 = vpack.c.b16 %v3538, %v3537
  %v3670 = vpack.c.b16 %v3540, %v3539
  %v3671 = vpack.c.b16 %v3542, %v3541
  %v3672 = vpack.c.b16 %v3544, %v3543
  %v3673 = vpack.c.b16 %v3546, %v3545
  %v3674 = vpack.c.b16 %v3548, %v3547
  %v3675 = vpack.c.b16 %v3550, %v3549
  %v3676 = vpack.c.b16 %v3552, %v3551
  %v3677 = vpack.c.b16 %v3554, %v3553
  %v3678 = vpack.c.b16 %v3556, %v3555
  %v3679 = vpack.c.b16 %v3558, %v3557
  %v3680 = vpack.c.b16 %v3560, %v3559
  %v3681 = vpack.c.b16 %v3562, %v3561
  %v3682 = vpack.c.b16 %v3564, %v3563
  %v3683 = vpack.c.b16 %v3566, %v3565
  %v3684 = vpack.c.b16 %v3568, %v3567
  %v3685 = vpack.c.b16 %v3570, %v3569
  %v3686 = vpack.c.b16 %v3572, %v3571
  %v3687 = vpack.c.b16 %v3574, %v3573
  %v3688 = vpack.c.b16 %v3576, %v3575
  %v3689 = vpack.c.b16 %v3578, %v3577
  %v3690 = vpack.c.b16 %v3580, %v3579
  %v3691 = vpack.c.b16 %v3582, %v3581
  %v3692 = vpack.c.b16 %v3584, %v3583
  %v3693 = vpack.c.b16 %v3586, %v3585
  %v3694 = vpack.c.b16 %v3588, %v3587
  %v3695 = vpack.c.b16 %v3590, %v3589
  %v3696 = vpack.c.b16 %v3592, %v3591
  %v3697 = vpack.c.b16 %v3594, %v3593
  %v3698 = vpack.c.b16 %v3596, %v3595
  %v3699 = vpack.c.b16 %v3598, %v3597
  %v3700 = vpack.c.b16 %v3600, %v3599
  %v3701 = vpack.c.b16 %v3602, %v3601
  %v3702 = vpack.c.b16 %v3604, %v3603
  %v3703 = vpack.c.b16 %v3606, %v3605
  %v3704 = vpack.c.b16 %v3608, %v3607
  %v3705 = vpack.c.b16 %v3610, %v3609
  %v3706 = vpack.c.b16 %v3612, %v3611
  %v3707 = vpack.c.b16 %v3614, %v3613
  %v3708 = vpack.c.b16 %v3616, %v3615
  %v3709 = vpack.c.b16 %v3618, %v3617
  %v3710 = vpack.c.b16 %v3620, %v3619
  %v3711 = vpack.c.b16 %v3622, %v3621
  %v3712 = vpack.c.b16 %v3624, %v3623
  %v3713 = vpack.c.b16 %v3626, %v3625
  %v3714 = vpack.c.b16 %v3628, %v3627
  %v3715 = vpack.c.b16 %v3630, %v3629
  %v3716 = vpack.c.b16 %v3632, %v3631
  %v3717 = vpack.c.b16 %v3634, %v3633
  %v3718 = vpack.c.b16 %v3636, %v3635
  %v3719 = vpack.c.b16 %v3638, %v3637
  %v3720 = vpack.c.b16 %v3640, %v3639
  %v3721 = vpack.c.b16 %v3642, %v3641
  %v3722 = vpack.c.b16 %v3644, %v3643
  %v3723 = vpack.c.b16 %v3646, %v3645
  %v3724 = vpack.c.b16 %v3648, %v3647
  %v3725 = vpack.c.b16 %v3650, %v3649
  %v3726 = vpack.c.b16 %v3652, %v3651
  %v3727 = vpack.c.b16 %v3654, %v3653
  %v3728 = vpack.c.b16 %v3656, %v3655
  %3801 = vmatpush.bf16.msra.mxu0 %v3664
  %3802 = vmatpush.bf16.msra.mxu0 %v3663
  %3803 = vmatpush.bf16.msra.mxu0 %v3662
  %3804 = vmatpush.bf16.msra.mxu0 %v3661
  %3805 = vmatpush.bf16.msra.mxu0 %v3660
  %3806 = vmatpush.bf16.msra.mxu0 %v3659
  %3807 = vmatpush.bf16.msra.mxu0 %v3658
  %3808 = vmatpush.bf16.msra.mxu0 %v3657
  %3809 = vmatmul.bf16.gmra.mxu0 %v3351
  %v3810 = vpop.f32.mrf.mxu0
  %v3811 = vadd.f32 %v3321, %v3810
  %v3812 = vpop.f32.mrf.mxu0
  %v3813 = vadd.f32 %v3321, %v3812
  %3814 = vdwg.mxu0
  %3815 = vmatpush.bf16.msra.mxu0 %v3672
  %3816 = vmatpush.bf16.msra.mxu0 %v3671
  %3817 = vmatpush.bf16.msra.mxu0 %v3670
  %3818 = vmatpush.bf16.msra.mxu0 %v3669
  %3819 = vmatpush.bf16.msra.mxu0 %v3668
  %3820 = vmatpush.bf16.msra.mxu0 %v3667
  %3821 = vmatpush.bf16.msra.mxu0 %v3666
  %3822 = vmatpush.bf16.msra.mxu0 %v3665
  %3823 = vmatmul.bf16.gmra.mxu0 %v3352
  %v3824 = vpop.f32.mrf.mxu0
  %v3825 = vadd.f32 %v3811, %v3824
  %v3826 = vpop.f32.mrf.mxu0
  %v3827 = vadd.f32 %v3813, %v3826
  %3828 = vdwg.mxu0
  %3829 = vmatpush.bf16.msra.mxu0 %v3680
  %3830 = vmatpush.bf16.msra.mxu0 %v3679
  %3831 = vmatpush.bf16.msra.mxu0 %v3678
  %3832 = vmatpush.bf16.msra.mxu0 %v3677
  %3833 = vmatpush.bf16.msra.mxu0 %v3676
  %3834 = vmatpush.bf16.msra.mxu0 %v3675
  %3835 = vmatpush.bf16.msra.mxu0 %v3674
  %3836 = vmatpush.bf16.msra.mxu0 %v3673
  %3837 = vmatmul.bf16.gmra.mxu0 %v3353
  %v3838 = vpop.f32.mrf.mxu0
  %v3839 = vadd.f32 %v3825, %v3838
  %v3840 = vpop.f32.mrf.mxu0
  %v3841 = vadd.f32 %v3827, %v3840
  %3842 = vdwg.mxu0
  %3843 = vmatpush.bf16.msra.mxu0 %v3688
  %3844 = vmatpush.bf16.msra.mxu0 %v3687
  %3845 = vmatpush.bf16.msra.mxu0 %v3686
  %3846 = vmatpush.bf16.msra.mxu0 %v3685
  %3847 = vmatpush.bf16.msra.mxu0 %v3684
  %3848 = vmatpush.bf16.msra.mxu0 %v3683
  %3849 = vmatpush.bf16.msra.mxu0 %v3682
  %3850 = vmatpush.bf16.msra.mxu0 %v3681
  %3851 = vmatmul.bf16.gmra.mxu0 %v3354
  %v3852 = vpop.f32.mrf.mxu0
  %v3853 = vadd.f32 %v3839, %v3852
  %v3854 = vpop.f32.mrf.mxu0
  %v3855 = vadd.f32 %v3841, %v3854
  %3856 = vdwg.mxu0
  %3857 = vmatpush.bf16.msra.mxu0 %v3696
  %3858 = vmatpush.bf16.msra.mxu0 %v3695
  %3859 = vmatpush.bf16.msra.mxu0 %v3694
  %3860 = vmatpush.bf16.msra.mxu0 %v3693
  %3861 = vmatpush.bf16.msra.mxu0 %v3692
  %3862 = vmatpush.bf16.msra.mxu0 %v3691
  %3863 = vmatpush.bf16.msra.mxu0 %v3690
  %3864 = vmatpush.bf16.msra.mxu0 %v3689
  %3865 = vmatmul.bf16.gmra.mxu0 %v3355
  %v3866 = vpop.f32.mrf.mxu0
  %v3867 = vadd.f32 %v3853, %v3866
  %v3868 = vpop.f32.mrf.mxu0
  %v3869 = vadd.f32 %v3855, %v3868
  %3870 = vdwg.mxu0
  %3871 = vmatpush.bf16.msra.mxu0 %v3704
  %3872 = vmatpush.bf16.msra.mxu0 %v3703
  %3873 = vmatpush.bf16.msra.mxu0 %v3702
  %3874 = vmatpush.bf16.msra.mxu0 %v3701
  %3875 = vmatpush.bf16.msra.mxu0 %v3700
  %3876 = vmatpush.bf16.msra.mxu0 %v3699
  %3877 = vmatpush.bf16.msra.mxu0 %v3698
  %3878 = vmatpush.bf16.msra.mxu0 %v3697
  %3879 = vmatmul.bf16.gmra.mxu0 %v3356
  %v3880 = vpop.f32.mrf.mxu0
  %v3881 = vadd.f32 %v3867, %v3880
  %v3882 = vpop.f32.mrf.mxu0
  %v3883 = vadd.f32 %v3869, %v3882
  %3884 = vdwg.mxu0
  %3885 = vmatpush.bf16.msra.mxu0 %v3712
  %3886 = vmatpush.bf16.msra.mxu0 %v3711
  %3887 = vmatpush.bf16.msra.mxu0 %v3710
  %3888 = vmatpush.bf16.msra.mxu0 %v3709
  %3889 = vmatpush.bf16.msra.mxu0 %v3708
  %3890 = vmatpush.bf16.msra.mxu0 %v3707
  %3891 = vmatpush.bf16.msra.mxu0 %v3706
  %3892 = vmatpush.bf16.msra.mxu0 %v3705
  %3893 = vmatmul.bf16.gmra.mxu0 %v3357
  %v3894 = vpop.f32.mrf.mxu0
  %v3895 = vadd.f32 %v3881, %v3894
  %v3896 = vpop.f32.mrf.mxu0
  %v3897 = vadd.f32 %v3883, %v3896
  %3898 = vdwg.mxu0
  %3899 = vmatpush.bf16.msra.mxu0 %v3720
  %3900 = vmatpush.bf16.msra.mxu0 %v3719
  %3901 = vmatpush.bf16.msra.mxu0 %v3718
  %3902 = vmatpush.bf16.msra.mxu0 %v3717
  %3903 = vmatpush.bf16.msra.mxu0 %v3716
  %3904 = vmatpush.bf16.msra.mxu0 %v3715
  %3905 = vmatpush.bf16.msra.mxu0 %v3714
  %3906 = vmatpush.bf16.msra.mxu0 %v3713
  %3907 = vmatmul.bf16.gmra.mxu0 %v3358
  %v3908 = vpop.f32.mrf.mxu0
  %v3909 = vadd.f32 %v3895, %v3908
  %v3910 = vpop.f32.mrf.mxu0
  %v3911 = vadd.f32 %v3897, %v3910
  %3912 = vdwg.mxu0
  %3913 = vmatpush.bf16.msra.mxu0 %v3728
  %3914 = vmatpush.bf16.msra.mxu0 %v3727
  %3915 = vmatpush.bf16.msra.mxu0 %v3726
  %3916 = vmatpush.bf16.msra.mxu0 %v3725
  %3917 = vmatpush.bf16.msra.mxu0 %v3724
  %3918 = vmatpush.bf16.msra.mxu0 %v3723
  %3919 = vmatpush.bf16.msra.mxu0 %v3722
  %3920 = vmatpush.bf16.msra.mxu0 %v3721
  %3921 = vmatmul.bf16.gmra.mxu0 %v3359
  %v3922 = vpop.f32.mrf.mxu0
  %v3923 = vadd.f32 %v3909, %v3922
  %v3924 = vpop.f32.mrf.mxu0
  %v3925 = vadd.f32 %v3911, %v3924
  %3926 = vdwg.mxu0
  %v3927 = vsel %vm138, %v3923, 0.0
  %v3928 = vsel %vm138, %v3925, 0.0
  %v3929 = vadd.f32 %v3927, %v3928
  %v3930 = vrot.slane %v3929, 4
  %v3931 = vadd.f32 %v3929, %v3930
  %v3932 = vrot.slane %v3931, 2
  %v3933 = vadd.f32 %v3931, %v3932
  %v3934 = vrot.slane %v3933, 1
  %v3935 = vadd.f32 %v3933, %v3934
  %v3936 = vmul.f32 %v3935, %v154
  %v3937 = vsub.f32 %v3923, %v3936
  %v3938 = vsub.f32 %v3925, %v3936
  %v3939 = vmul.f32 %v3937, %v3937
  %v3940 = vmul.f32 %v3938, %v3938
  %v3941 = vsel %vm138, %v3939, 0.0
  %v3942 = vsel %vm138, %v3940, 0.0
  %v3943 = vadd.f32 %v3941, %v3942
  %v3944 = vrot.slane %v3943, 4
  %v3945 = vadd.f32 %v3943, %v3944
  %v3946 = vrot.slane %v3945, 2
  %v3947 = vadd.f32 %v3945, %v3946
  %v3948 = vrot.slane %v3947, 1
  %v3949 = vadd.f32 %v3947, %v3948
  %v3950 = vmul.f32 %v3949, %v154
  %v3951 = vadd.f32 %v3950, 1e-05
  %v3952 = vrsqrt.pop %v3951
  %v3953 = vmul.f32 %v3952, %v3951
  %v3954 = vmul.f32 %v3953, %v3952
  %v3955 = vmul.f32 0.5, %v3954
  %v3956 = vsub.f32 1.5, %v3955
  %v3957 = vmul.f32 %v3952, %v3956
  %vm3958 = vweird.f32 %v3951
  %vm3959 = vweird.f32 %v3952
  %vm3960 = vmor %vm3958, %vm3959
  %v3961 = vsel %vm3960, %v3952, %v3957
  %v3962 = vmul.f32 %v3317, %v3961
  %v3964 = vperm.slane %v3962, 0
  %v3966 = vmul.f32 %v3937, %v3964
  %v3967 = vmul.f32 %v3938, %v3964
  %v3969 = vperm.slane %v3319, 0
  %v3971 = vadd.f32 %v3966, %v3969
  %v3972 = vadd.f32 %v3967, %v3969
  %v3973 = vmul.f32 %v3971, 0.5
  %v3974 = vmul.f32 %v3972, 0.5
  %v3975 = vtanh.pop %v3973
  %v3976 = vtanh.pop %v3974
  %v3977 = vmul.f32 %v3975, 0.5
  %v3978 = vmul.f32 %v3976, 0.5
  %v3979 = vadd.f32 %v3977, 0.5
  %v3980 = vadd.f32 %v3978, 0.5
  %v3981 = vmul.f32 %v3971, %v3979
  %v3982 = vmul.f32 %v3972, %v3980
  %v3983 = vpack.c.bf16 %v3981, %v3981
  %v3984 = vpack.c.bf16 %v3982, %v3982
  %3985 = vst.msk [vmem:[#allocation2 + $0x24] sm:$0xf] %vm204, %v3983
  %3986 = vst.msk [vmem:[#allocation2 + $0x4c] sm:$0xf] %vm204, %v3984
  %3987 = vst.msk [vmem:[#allocation2 + $0x24] sm:$0xf] %vm207, 0
  %3988 = vst.msk [vmem:[#allocation2 + $0x4c] sm:$0xf] %vm207, 0
  %v3989 = vld [vmem:[#allocation2] sm:$0xff]
  %v3990 = vld [vmem:[#allocation2 + $0x8] sm:$0xff]
  %v3991 = vld [vmem:[#allocation2 + $0x10] sm:$0xff]
  %v3992 = vld [vmem:[#allocation2 + $0x18] sm:$0xff]
  %v3993 = vld [vmem:[#allocation2 + $0x20] sm:$0xff]
  %v3994 = vld [vmem:[#allocation2 + $0x28] sm:$0xff]
  %v3995 = vld [vmem:[#allocation2 + $0x30] sm:$0xff]
  %v3996 = vld [vmem:[#allocation2 + $0x38] sm:$0xff]
  %v3997 = vld [vmem:[#allocation2 + $0x40] sm:$0xff]
  %v3998 = vld [vmem:[#allocation2 + $0x48] sm:$0xff]
  %v3999 = vld [vmem:[%s4] sm:$0xf]
  %v4000 = vld [vmem:[%s4 + $0x4] sm:$0xf]
  %v4001 = vld [vmem:[%s4 + $0x8] sm:$0xf]
  %v4002 = vld [vmem:[%s4 + $0xc] sm:$0xf]
  %v4003 = vld [vmem:[%s4 + $0x10] sm:$0xf]
  %v4004 = vld [vmem:[%s4 + $0x14] sm:$0xf]
  %v4005 = vld [vmem:[%s4 + $0x18] sm:$0xf]
  %v4006 = vld [vmem:[%s4 + $0x1c] sm:$0xf]
  %v4007 = vld [vmem:[%s4 + $0x20] sm:$0xf]
  %v4008 = vld [vmem:[%s4 + $0x24] sm:$0xf]
  %v4009 = vld [vmem:[%s4 + $0x28] sm:$0xf]
  %v4010 = vld [vmem:[%s4 + $0x2c] sm:$0xf]
  %v4011 = vld [vmem:[%s4 + $0x30] sm:$0xf]
  %v4012 = vld [vmem:[%s4 + $0x34] sm:$0xf]
  %v4013 = vld [vmem:[%s4 + $0x38] sm:$0xf]
  %v4014 = vld [vmem:[%s4 + $0x3c] sm:$0xf]
  %v4015 = vld [vmem:[%s4 + $0x40] sm:$0xf]
  %v4016 = vld [vmem:[%s4 + $0x44] sm:$0xf]
  %v4017 = vld [vmem:[%s4 + $0x48] sm:$0xf]
  %v4018 = vld [vmem:[%s4 + $0x4c] sm:$0xf]
  %v4019 = vld [vmem:[%s4 + $0x50] sm:$0xf]
  %v4020 = vld [vmem:[%s4 + $0x54] sm:$0xf]
  %v4021 = vld [vmem:[%s4 + $0x58] sm:$0xf]
  %v4022 = vld [vmem:[%s4 + $0x5c] sm:$0xf]
  %v4023 = vld [vmem:[%s4 + $0x60] sm:$0xf]
  %v4024 = vld [vmem:[%s4 + $0x64] sm:$0xf]
  %v4025 = vld [vmem:[%s4 + $0x68] sm:$0xf]
  %v4026 = vld [vmem:[%s4 + $0x6c] sm:$0xf]
  %v4027 = vld [vmem:[%s4 + $0x70] sm:$0xf]
  %v4028 = vld [vmem:[%s4 + $0x74] sm:$0xf]
  %v4029 = vld [vmem:[%s4 + $0x78] sm:$0xf]
  %v4030 = vld [vmem:[%s4 + $0x7c] sm:$0xf]
  %v4031 = vld [vmem:[%s4 + $0x80] sm:$0xf]
  %v4032 = vld [vmem:[%s4 + $0x84] sm:$0xf]
  %v4033 = vld [vmem:[%s4 + $0x88] sm:$0xf]
  %v4034 = vld [vmem:[%s4 + $0x8c] sm:$0xf]
  %v4035 = vld [vmem:[%s4 + $0x90] sm:$0xf]
  %v4036 = vld [vmem:[%s4 + $0x94] sm:$0xf]
  %v4037 = vld [vmem:[%s4 + $0x98] sm:$0xf]
  %v4038 = vld [vmem:[%s4 + $0x9c] sm:$0xf]
  %v4039 = vld [vmem:[%s4 + $0xa0] sm:$0xf]
  %v4040 = vld [vmem:[%s4 + $0xa4] sm:$0xf]
  %v4041 = vld [vmem:[%s4 + $0xa8] sm:$0xf]
  %v4042 = vld [vmem:[%s4 + $0xac] sm:$0xf]
  %v4043 = vld [vmem:[%s4 + $0xb0] sm:$0xf]
  %v4044 = vld [vmem:[%s4 + $0xb4] sm:$0xf]
  %v4045 = vld [vmem:[%s4 + $0xb8] sm:$0xf]
  %v4046 = vld [vmem:[%s4 + $0xbc] sm:$0xf]
  %v4047 = vld [vmem:[%s4 + $0xc0] sm:$0xf]
  %v4048 = vld [vmem:[%s4 + $0xc4] sm:$0xf]
  %v4049 = vld [vmem:[%s4 + $0xc8] sm:$0xf]
  %v4050 = vld [vmem:[%s4 + $0xcc] sm:$0xf]
  %v4051 = vld [vmem:[%s4 + $0xd0] sm:$0xf]
  %v4052 = vld [vmem:[%s4 + $0xd4] sm:$0xf]
  %v4053 = vld [vmem:[%s4 + $0xd8] sm:$0xf]
  %v4054 = vld [vmem:[%s4 + $0xdc] sm:$0xf]
  %v4055 = vld [vmem:[%s4 + $0xe0] sm:$0xf]
  %v4056 = vld [vmem:[%s4 + $0xe4] sm:$0xf]
  %v4057 = vld [vmem:[%s4 + $0xe8] sm:$0xf]
  %v4058 = vld [vmem:[%s4 + $0xec] sm:$0xf]
  %v4059 = vld [vmem:[%s4 + $0xf0] sm:$0xf]
  %v4060 = vld [vmem:[%s4 + $0xf4] sm:$0xf]
  %v4061 = vld [vmem:[%s4 + $0xf8] sm:$0xf]
  %v4062 = vld [vmem:[%s4 + $0xfc] sm:$0xf]
  %v4063 = vld [vmem:[%s4 + $0x100] sm:$0xf]
  %v4064 = vld [vmem:[%s4 + $0x104] sm:$0xf]
  %v4065 = vld [vmem:[%s4 + $0x108] sm:$0xf]
  %v4066 = vld [vmem:[%s4 + $0x10c] sm:$0xf]
  %v4067 = vld [vmem:[%s4 + $0x110] sm:$0xf]
  %v4068 = vld [vmem:[%s4 + $0x114] sm:$0xf]
  %v4069 = vld [vmem:[%s4 + $0x118] sm:$0xf]
  %v4070 = vld [vmem:[%s4 + $0x11c] sm:$0xf]
  %v4071 = vld [vmem:[%s4 + $0x120] sm:$0xf]
  %v4072 = vld [vmem:[%s4 + $0x124] sm:$0xf]
  %v4073 = vld [vmem:[%s4 + $0x128] sm:$0xf]
  %v4074 = vld [vmem:[%s4 + $0x12c] sm:$0xf]
  %v4075 = vld [vmem:[%s4 + $0x130] sm:$0xf]
  %v4076 = vld [vmem:[%s4 + $0x134] sm:$0xf]
  %v4077 = vld [vmem:[%s4 + $0x138] sm:$0xf]
  %v4078 = vld [vmem:[%s4 + $0x13c] sm:$0xf]
  %v4079 = vld [vmem:[%s4 + $0x140] sm:$0xf]
  %v4080 = vld [vmem:[%s4 + $0x144] sm:$0xf]
  %v4081 = vld [vmem:[%s4 + $0x148] sm:$0xf]
  %v4082 = vld [vmem:[%s4 + $0x14c] sm:$0xf]
  %v4083 = vld [vmem:[%s4 + $0x150] sm:$0xf]
  %v4084 = vld [vmem:[%s4 + $0x154] sm:$0xf]
  %v4085 = vld [vmem:[%s4 + $0x158] sm:$0xf]
  %v4086 = vld [vmem:[%s4 + $0x15c] sm:$0xf]
  %v4087 = vld [vmem:[%s4 + $0x160] sm:$0xf]
  %v4088 = vld [vmem:[%s4 + $0x164] sm:$0xf]
  %v4089 = vld [vmem:[%s4 + $0x168] sm:$0xf]
  %v4090 = vld [vmem:[%s4 + $0x16c] sm:$0xf]
  %v4091 = vld [vmem:[%s4 + $0x170] sm:$0xf]
  %v4092 = vld [vmem:[%s4 + $0x174] sm:$0xf]
  %v4093 = vld [vmem:[%s4 + $0x178] sm:$0xf]
  %v4094 = vld [vmem:[%s4 + $0x17c] sm:$0xf]
  %v4095 = vld [vmem:[%s4 + $0x180] sm:$0xf]
  %v4096 = vld [vmem:[%s4 + $0x184] sm:$0xf]
  %v4097 = vld [vmem:[%s4 + $0x188] sm:$0xf]
  %v4098 = vld [vmem:[%s4 + $0x18c] sm:$0xf]
  %v4099 = vld [vmem:[%s4 + $0x190] sm:$0xf]
  %v4100 = vld [vmem:[%s4 + $0x194] sm:$0xf]
  %v4101 = vld [vmem:[%s4 + $0x198] sm:$0xf]
  %v4102 = vld [vmem:[%s4 + $0x19c] sm:$0xf]
  %v4103 = vld [vmem:[%s4 + $0x1a0] sm:$0xf]
  %v4104 = vld [vmem:[%s4 + $0x1a4] sm:$0xf]
  %v4105 = vld [vmem:[%s4 + $0x1a8] sm:$0xf]
  %v4106 = vld [vmem:[%s4 + $0x1ac] sm:$0xf]
  %v4107 = vld [vmem:[%s4 + $0x1b0] sm:$0xf]
  %v4108 = vld [vmem:[%s4 + $0x1b4] sm:$0xf]
  %v4109 = vld [vmem:[%s4 + $0x1b8] sm:$0xf]
  %v4110 = vld [vmem:[%s4 + $0x1bc] sm:$0xf]
  %v4111 = vld [vmem:[%s4 + $0x1c0] sm:$0xf]
  %v4112 = vld [vmem:[%s4 + $0x1c4] sm:$0xf]
  %v4113 = vld [vmem:[%s4 + $0x1c8] sm:$0xf]
  %v4114 = vld [vmem:[%s4 + $0x1cc] sm:$0xf]
  %v4115 = vld [vmem:[%s4 + $0x1d0] sm:$0xf]
  %v4116 = vld [vmem:[%s4 + $0x1d4] sm:$0xf]
  %v4117 = vld [vmem:[%s4 + $0x1d8] sm:$0xf]
  %v4118 = vld [vmem:[%s4 + $0x1dc] sm:$0xf]
  %v4119 = vld [vmem:[%s4 + $0x1e0] sm:$0xf]
  %v4120 = vld [vmem:[%s4 + $0x1e4] sm:$0xf]
  %v4121 = vld [vmem:[%s4 + $0x1e8] sm:$0xf]
  %v4122 = vld [vmem:[%s4 + $0x1ec] sm:$0xf]
  %v4123 = vld [vmem:[%s4 + $0x1f0] sm:$0xf]
  %v4124 = vld [vmem:[%s4 + $0x1f4] sm:$0xf]
  %v4125 = vld [vmem:[%s4 + $0x1f8] sm:$0xf]
  %v4126 = vld [vmem:[%s4 + $0x1fc] sm:$0xf]
  %v4127 = vld [vmem:[%s4 + $0x200] sm:$0xf]
  %v4128 = vld [vmem:[%s4 + $0x204] sm:$0xf]
  %v4129 = vld [vmem:[%s4 + $0x208] sm:$0xf]
  %v4130 = vld [vmem:[%s4 + $0x20c] sm:$0xf]
  %v4131 = vld [vmem:[%s4 + $0x210] sm:$0xf]
  %v4132 = vld [vmem:[%s4 + $0x214] sm:$0xf]
  %v4133 = vld [vmem:[%s4 + $0x218] sm:$0xf]
  %v4134 = vld [vmem:[%s4 + $0x21c] sm:$0xf]
  %v4135 = vld [vmem:[%s4 + $0x220] sm:$0xf]
  %v4136 = vld [vmem:[%s4 + $0x224] sm:$0xf]
  %v4137 = vld [vmem:[%s4 + $0x228] sm:$0xf]
  %v4138 = vld [vmem:[%s4 + $0x22c] sm:$0xf]
  %v4139 = vld [vmem:[%s4 + $0x230] sm:$0xf]
  %v4140 = vld [vmem:[%s4 + $0x234] sm:$0xf]
  %v4141 = vld [vmem:[%s4 + $0x238] sm:$0xf]
  %v4142 = vld [vmem:[%s4 + $0x23c] sm:$0xf]
  %v4143 = vld [vmem:[%s4 + $0x240] sm:$0xf]
  %v4144 = vld [vmem:[%s4 + $0x244] sm:$0xf]
  %v4145 = vld [vmem:[%s4 + $0x248] sm:$0xf]
  %v4146 = vld [vmem:[%s4 + $0x24c] sm:$0xf]
  %v4147 = vld [vmem:[%s4 + $0x250] sm:$0xf]
  %v4148 = vld [vmem:[%s4 + $0x254] sm:$0xf]
  %v4149 = vld [vmem:[%s4 + $0x258] sm:$0xf]
  %v4150 = vld [vmem:[%s4 + $0x25c] sm:$0xf]
  %v4151 = vld [vmem:[%s4 + $0x260] sm:$0xf]
  %v4152 = vld [vmem:[%s4 + $0x264] sm:$0xf]
  %v4153 = vld [vmem:[%s4 + $0x268] sm:$0xf]
  %v4154 = vld [vmem:[%s4 + $0x26c] sm:$0xf]
  %v4155 = vld [vmem:[%s4 + $0x270] sm:$0xf]
  %v4156 = vld [vmem:[%s4 + $0x274] sm:$0xf]
  %v4157 = vld [vmem:[%s4 + $0x278] sm:$0xf]
  %v4158 = vld [vmem:[%s4 + $0x27c] sm:$0xf]
  %v4159 = vld [vmem:[%s5] sm:$0x1]
  %v4161 = vperm.slane %v4159, 0
  %v4173 = vunpack.c.l.b16 %v3989
  %v4174 = vunpack.c.h.b16 %v3989
  %v4175 = vunpack.c.l.b16 %v3990
  %v4176 = vunpack.c.h.b16 %v3990
  %v4177 = vunpack.c.l.b16 %v3991
  %v4178 = vunpack.c.h.b16 %v3991
  %v4179 = vunpack.c.l.b16 %v3992
  %v4180 = vunpack.c.h.b16 %v3992
  %v4181 = vunpack.c.l.b16 %v3993
  %v4182 = vunpack.c.h.b16 %v3993
  %v4183 = vunpack.c.l.b16 %v3994
  %v4184 = vunpack.c.h.b16 %v3994
  %v4185 = vunpack.c.l.b16 %v3995
  %v4186 = vunpack.c.h.b16 %v3995
  %v4187 = vunpack.c.l.b16 %v3996
  %v4188 = vunpack.c.h.b16 %v3996
  %v4189 = vunpack.c.l.b16 %v3997
  %v4190 = vunpack.c.h.b16 %v3997
  %v4191 = vunpack.c.l.b16 %v3998
  %v4192 = vunpack.c.h.b16 %v3998
  %v4193 = vpack.c.b16 %v4183, %v4173
  %v4194 = vpack.c.b16 %v4184, %v4174
  %v4195 = vpack.c.b16 %v4185, %v4175
  %v4196 = vpack.c.b16 %v4186, %v4176
  %v4197 = vpack.c.b16 %v4187, %v4177
  %v4198 = vpack.c.b16 %v4188, %v4178
  %v4199 = vpack.c.b16 %v4189, %v4179
  %v4200 = vpack.c.b16 %v4190, %v4180
  %v4201 = vpack.c.b16 %v4191, %v4181
  %v4202 = vpack.c.b16 %v4192, %v4182
  %v4373 = vunpack.c.l.b16 %v3999
  %v4374 = vunpack.c.l.b16 %v4000
  %v4375 = vunpack.c.l.b16 %v4001
  %v4376 = vunpack.c.l.b16 %v4002
  %v4377 = vunpack.c.l.b16 %v4003
  %v4378 = vunpack.c.l.b16 %v4004
  %v4379 = vunpack.c.l.b16 %v4005
  %v4380 = vunpack.c.l.b16 %v4006
  %v4381 = vunpack.c.l.b16 %v4007
  %v4382 = vunpack.c.l.b16 %v4008
  %v4383 = vunpack.c.l.b16 %v4009
  %v4384 = vunpack.c.l.b16 %v4010
  %v4385 = vunpack.c.l.b16 %v4011
  %v4386 = vunpack.c.l.b16 %v4012
  %v4387 = vunpack.c.l.b16 %v4013
  %v4388 = vunpack.c.l.b16 %v4014
  %v4389 = vunpack.c.l.b16 %v4015
  %v4390 = vunpack.c.l.b16 %v4016
  %v4391 = vunpack.c.l.b16 %v4017
  %v4392 = vunpack.c.l.b16 %v4018
  %v4393 = vunpack.c.l.b16 %v4019
  %v4394 = vunpack.c.l.b16 %v4020
  %v4395 = vunpack.c.l.b16 %v4021
  %v4396 = vunpack.c.l.b16 %v4022
  %v4397 = vunpack.c.l.b16 %v4023
  %v4398 = vunpack.c.l.b16 %v4024
  %v4399 = vunpack.c.l.b16 %v4025
  %v4400 = vunpack.c.l.b16 %v4026
  %v4401 = vunpack.c.l.b16 %v4027
  %v4402 = vunpack.c.l.b16 %v4028
  %v4403 = vunpack.c.l.b16 %v4029
  %v4404 = vunpack.c.l.b16 %v4030
  %v4405 = vunpack.c.l.b16 %v4031
  %v4406 = vunpack.c.l.b16 %v4032
  %v4407 = vunpack.c.l.b16 %v4033
  %v4408 = vunpack.c.l.b16 %v4034
  %v4409 = vunpack.c.l.b16 %v4035
  %v4410 = vunpack.c.l.b16 %v4036
  %v4411 = vunpack.c.l.b16 %v4037
  %v4412 = vunpack.c.l.b16 %v4038
  %v4413 = vunpack.c.l.b16 %v4039
  %v4414 = vunpack.c.l.b16 %v4040
  %v4415 = vunpack.c.l.b16 %v4041
  %v4416 = vunpack.c.l.b16 %v4042
  %v4417 = vunpack.c.l.b16 %v4043
  %v4418 = vunpack.c.l.b16 %v4044
  %v4419 = vunpack.c.l.b16 %v4045
  %v4420 = vunpack.c.l.b16 %v4046
  %v4421 = vunpack.c.l.b16 %v4047
  %v4422 = vunpack.c.l.b16 %v4048
  %v4423 = vunpack.c.l.b16 %v4049
  %v4424 = vunpack.c.l.b16 %v4050
  %v4425 = vunpack.c.l.b16 %v4051
  %v4426 = vunpack.c.l.b16 %v4052
  %v4427 = vunpack.c.l.b16 %v4053
  %v4428 = vunpack.c.l.b16 %v4054
  %v4429 = vunpack.c.l.b16 %v4055
  %v4430 = vunpack.c.l.b16 %v4056
  %v4431 = vunpack.c.l.b16 %v4057
  %v4432 = vunpack.c.l.b16 %v4058
  %v4433 = vunpack.c.l.b16 %v4059
  %v4434 = vunpack.c.l.b16 %v4060
  %v4435 = vunpack.c.l.b16 %v4061
  %v4436 = vunpack.c.l.b16 %v4062
  %v4437 = vunpack.c.l.b16 %v4063
  %v4438 = vunpack.c.l.b16 %v4064
  %v4439 = vunpack.c.l.b16 %v4065
  %v4440 = vunpack.c.l.b16 %v4066
  %v4441 = vunpack.c.l.b16 %v4067
  %v4442 = vunpack.c.l.b16 %v4068
  %v4443 = vunpack.c.l.b16 %v4069
  %v4444 = vunpack.c.l.b16 %v4070
  %v4445 = vunpack.c.l.b16 %v4071
  %v4446 = vunpack.c.l.b16 %v4072
  %v4447 = vunpack.c.l.b16 %v4073
  %v4448 = vunpack.c.l.b16 %v4074
  %v4449 = vunpack.c.l.b16 %v4075
  %v4450 = vunpack.c.l.b16 %v4076
  %v4451 = vunpack.c.l.b16 %v4077
  %v4452 = vunpack.c.l.b16 %v4078
  %v4453 = vunpack.c.l.b16 %v4079
  %v4454 = vunpack.c.l.b16 %v4080
  %v4455 = vunpack.c.l.b16 %v4081
  %v4456 = vunpack.c.l.b16 %v4082
  %v4457 = vunpack.c.l.b16 %v4083
  %v4458 = vunpack.c.l.b16 %v4084
  %v4459 = vunpack.c.l.b16 %v4085
  %v4460 = vunpack.c.l.b16 %v4086
  %v4461 = vunpack.c.l.b16 %v4087
  %v4462 = vunpack.c.l.b16 %v4088
  %v4463 = vunpack.c.l.b16 %v4089
  %v4464 = vunpack.c.l.b16 %v4090
  %v4465 = vunpack.c.l.b16 %v4091
  %v4466 = vunpack.c.l.b16 %v4092
  %v4467 = vunpack.c.l.b16 %v4093
  %v4468 = vunpack.c.l.b16 %v4094
  %v4469 = vunpack.c.l.b16 %v4095
  %v4470 = vunpack.c.l.b16 %v4096
  %v4471 = vunpack.c.l.b16 %v4097
  %v4472 = vunpack.c.l.b16 %v4098
  %v4473 = vunpack.c.l.b16 %v4099
  %v4474 = vunpack.c.l.b16 %v4100
  %v4475 = vunpack.c.l.b16 %v4101
  %v4476 = vunpack.c.l.b16 %v4102
  %v4477 = vunpack.c.l.b16 %v4103
  %v4478 = vunpack.c.l.b16 %v4104
  %v4479 = vunpack.c.l.b16 %v4105
  %v4480 = vunpack.c.l.b16 %v4106
  %v4481 = vunpack.c.l.b16 %v4107
  %v4482 = vunpack.c.l.b16 %v4108
  %v4483 = vunpack.c.l.b16 %v4109
  %v4484 = vunpack.c.l.b16 %v4110
  %v4485 = vunpack.c.l.b16 %v4111
  %v4486 = vunpack.c.l.b16 %v4112
  %v4487 = vunpack.c.l.b16 %v4113
  %v4488 = vunpack.c.l.b16 %v4114
  %v4489 = vunpack.c.l.b16 %v4115
  %v4490 = vunpack.c.l.b16 %v4116
  %v4491 = vunpack.c.l.b16 %v4117
  %v4492 = vunpack.c.l.b16 %v4118
  %v4493 = vunpack.c.l.b16 %v4119
  %v4494 = vunpack.c.l.b16 %v4120
  %v4495 = vunpack.c.l.b16 %v4121
  %v4496 = vunpack.c.l.b16 %v4122
  %v4497 = vunpack.c.l.b16 %v4123
  %v4498 = vunpack.c.l.b16 %v4124
  %v4499 = vunpack.c.l.b16 %v4125
  %v4500 = vunpack.c.l.b16 %v4126
  %v4501 = vunpack.c.l.b16 %v4127
  %v4502 = vunpack.c.l.b16 %v4128
  %v4503 = vunpack.c.l.b16 %v4129
  %v4504 = vunpack.c.l.b16 %v4130
  %v4505 = vunpack.c.l.b16 %v4131
  %v4506 = vunpack.c.l.b16 %v4132
  %v4507 = vunpack.c.l.b16 %v4133
  %v4508 = vunpack.c.l.b16 %v4134
  %v4509 = vunpack.c.l.b16 %v4135
  %v4510 = vunpack.c.l.b16 %v4136
  %v4511 = vunpack.c.l.b16 %v4137
  %v4512 = vunpack.c.l.b16 %v4138
  %v4513 = vunpack.c.l.b16 %v4139
  %v4514 = vunpack.c.l.b16 %v4140
  %v4515 = vunpack.c.l.b16 %v4141
  %v4516 = vunpack.c.l.b16 %v4142
  %v4517 = vunpack.c.l.b16 %v4143
  %v4518 = vunpack.c.l.b16 %v4144
  %v4519 = vunpack.c.l.b16 %v4145
  %v4520 = vunpack.c.l.b16 %v4146
  %v4521 = vunpack.c.l.b16 %v4147
  %v4522 = vunpack.c.l.b16 %v4148
  %v4523 = vunpack.c.l.b16 %v4149
  %v4524 = vunpack.c.l.b16 %v4150
  %v4525 = vunpack.c.l.b16 %v4151
  %v4526 = vunpack.c.l.b16 %v4152
  %v4527 = vunpack.c.l.b16 %v4153
  %v4528 = vunpack.c.l.b16 %v4154
  %v4529 = vunpack.c.l.b16 %v4155
  %v4530 = vunpack.c.l.b16 %v4156
  %v4531 = vunpack.c.l.b16 %v4157
  %v4532 = vunpack.c.l.b16 %v4158
  %v4533 = vpack.c.b16 %v4374, %v4373
  %v4534 = vpack.c.b16 %v4376, %v4375
  %v4535 = vpack.c.b16 %v4378, %v4377
  %v4536 = vpack.c.b16 %v4380, %v4379
  %v4537 = vpack.c.b16 %v4382, %v4381
  %v4538 = vpack.c.b16 %v4384, %v4383
  %v4539 = vpack.c.b16 %v4386, %v4385
  %v4540 = vpack.c.b16 %v4388, %v4387
  %v4541 = vpack.c.b16 %v4390, %v4389
  %v4542 = vpack.c.b16 %v4392, %v4391
  %v4543 = vpack.c.b16 %v4394, %v4393
  %v4544 = vpack.c.b16 %v4396, %v4395
  %v4545 = vpack.c.b16 %v4398, %v4397
  %v4546 = vpack.c.b16 %v4400, %v4399
  %v4547 = vpack.c.b16 %v4402, %v4401
  %v4548 = vpack.c.b16 %v4404, %v4403
  %v4549 = vpack.c.b16 %v4406, %v4405
  %v4550 = vpack.c.b16 %v4408, %v4407
  %v4551 = vpack.c.b16 %v4410, %v4409
  %v4552 = vpack.c.b16 %v4412, %v4411
  %v4553 = vpack.c.b16 %v4414, %v4413
  %v4554 = vpack.c.b16 %v4416, %v4415
  %v4555 = vpack.c.b16 %v4418, %v4417
  %v4556 = vpack.c.b16 %v4420, %v4419
  %v4557 = vpack.c.b16 %v4422, %v4421
  %v4558 = vpack.c.b16 %v4424, %v4423
  %v4559 = vpack.c.b16 %v4426, %v4425
  %v4560 = vpack.c.b16 %v4428, %v4427
  %v4561 = vpack.c.b16 %v4430, %v4429
  %v4562 = vpack.c.b16 %v4432, %v4431
  %v4563 = vpack.c.b16 %v4434, %v4433
  %v4564 = vpack.c.b16 %v4436, %v4435
  %v4565 = vpack.c.b16 %v4438, %v4437
  %v4566 = vpack.c.b16 %v4440, %v4439
  %v4567 = vpack.c.b16 %v4442, %v4441
  %v4568 = vpack.c.b16 %v4444, %v4443
  %v4569 = vpack.c.b16 %v4446, %v4445
  %v4570 = vpack.c.b16 %v4448, %v4447
  %v4571 = vpack.c.b16 %v4450, %v4449
  %v4572 = vpack.c.b16 %v4452, %v4451
  %v4573 = vpack.c.b16 %v4454, %v4453
  %v4574 = vpack.c.b16 %v4456, %v4455
  %v4575 = vpack.c.b16 %v4458, %v4457
  %v4576 = vpack.c.b16 %v4460, %v4459
  %v4577 = vpack.c.b16 %v4462, %v4461
  %v4578 = vpack.c.b16 %v4464, %v4463
  %v4579 = vpack.c.b16 %v4466, %v4465
  %v4580 = vpack.c.b16 %v4468, %v4467
  %v4581 = vpack.c.b16 %v4470, %v4469
  %v4582 = vpack.c.b16 %v4472, %v4471
  %v4583 = vpack.c.b16 %v4474, %v4473
  %v4584 = vpack.c.b16 %v4476, %v4475
  %v4585 = vpack.c.b16 %v4478, %v4477
  %v4586 = vpack.c.b16 %v4480, %v4479
  %v4587 = vpack.c.b16 %v4482, %v4481
  %v4588 = vpack.c.b16 %v4484, %v4483
  %v4589 = vpack.c.b16 %v4486, %v4485
  %v4590 = vpack.c.b16 %v4488, %v4487
  %v4591 = vpack.c.b16 %v4490, %v4489
  %v4592 = vpack.c.b16 %v4492, %v4491
  %v4593 = vpack.c.b16 %v4494, %v4493
  %v4594 = vpack.c.b16 %v4496, %v4495
  %v4595 = vpack.c.b16 %v4498, %v4497
  %v4596 = vpack.c.b16 %v4500, %v4499
  %v4597 = vpack.c.b16 %v4502, %v4501
  %v4598 = vpack.c.b16 %v4504, %v4503
  %v4599 = vpack.c.b16 %v4506, %v4505
  %v4600 = vpack.c.b16 %v4508, %v4507
  %v4601 = vpack.c.b16 %v4510, %v4509
  %v4602 = vpack.c.b16 %v4512, %v4511
  %v4603 = vpack.c.b16 %v4514, %v4513
  %v4604 = vpack.c.b16 %v4516, %v4515
  %v4605 = vpack.c.b16 %v4518, %v4517
  %v4606 = vpack.c.b16 %v4520, %v4519
  %v4607 = vpack.c.b16 %v4522, %v4521
  %v4608 = vpack.c.b16 %v4524, %v4523
  %v4609 = vpack.c.b16 %v4526, %v4525
  %v4610 = vpack.c.b16 %v4528, %v4527
  %v4611 = vpack.c.b16 %v4530, %v4529
  %v4612 = vpack.c.b16 %v4532, %v4531
  %4693 = vmatpush.bf16.msra.mxu0 %v4540
  %4694 = vmatpush.bf16.msra.mxu0 %v4539
  %4695 = vmatpush.bf16.msra.mxu0 %v4538
  %4696 = vmatpush.bf16.msra.mxu0 %v4537
  %4697 = vmatpush.bf16.msra.mxu0 %v4536
  %4698 = vmatpush.bf16.msra.mxu0 %v4535
  %4699 = vmatpush.bf16.msra.mxu0 %v4534
  %4700 = vmatpush.bf16.msra.mxu0 %v4533
  %4701 = vmatmul.bf16.gmra.mxu0 %v4193
  %v4702 = vpop.f32.mrf.mxu0
  %v4703 = vadd.f32 %v4161, %v4702
  %v4704 = vpop.f32.mrf.mxu0
  %v4705 = vadd.f32 %v4161, %v4704
  %4706 = vdwg.mxu0
  %4707 = vmatpush.bf16.msra.mxu0 %v4548
  %4708 = vmatpush.bf16.msra.mxu0 %v4547
  %4709 = vmatpush.bf16.msra.mxu0 %v4546
  %4710 = vmatpush.bf16.msra.mxu0 %v4545
  %4711 = vmatpush.bf16.msra.mxu0 %v4544
  %4712 = vmatpush.bf16.msra.mxu0 %v4543
  %4713 = vmatpush.bf16.msra.mxu0 %v4542
  %4714 = vmatpush.bf16.msra.mxu0 %v4541
  %4715 = vmatmul.bf16.gmra.mxu0 %v4194
  %v4716 = vpop.f32.mrf.mxu0
  %v4717 = vadd.f32 %v4703, %v4716
  %v4718 = vpop.f32.mrf.mxu0
  %v4719 = vadd.f32 %v4705, %v4718
  %4720 = vdwg.mxu0
  %4721 = vmatpush.bf16.msra.mxu0 %v4556
  %4722 = vmatpush.bf16.msra.mxu0 %v4555
  %4723 = vmatpush.bf16.msra.mxu0 %v4554
  %4724 = vmatpush.bf16.msra.mxu0 %v4553
  %4725 = vmatpush.bf16.msra.mxu0 %v4552
  %4726 = vmatpush.bf16.msra.mxu0 %v4551
  %4727 = vmatpush.bf16.msra.mxu0 %v4550
  %4728 = vmatpush.bf16.msra.mxu0 %v4549
  %4729 = vmatmul.bf16.gmra.mxu0 %v4195
  %v4730 = vpop.f32.mrf.mxu0
  %v4731 = vadd.f32 %v4717, %v4730
  %v4732 = vpop.f32.mrf.mxu0
  %v4733 = vadd.f32 %v4719, %v4732
  %4734 = vdwg.mxu0
  %4735 = vmatpush.bf16.msra.mxu0 %v4564
  %4736 = vmatpush.bf16.msra.mxu0 %v4563
  %4737 = vmatpush.bf16.msra.mxu0 %v4562
  %4738 = vmatpush.bf16.msra.mxu0 %v4561
  %4739 = vmatpush.bf16.msra.mxu0 %v4560
  %4740 = vmatpush.bf16.msra.mxu0 %v4559
  %4741 = vmatpush.bf16.msra.mxu0 %v4558
  %4742 = vmatpush.bf16.msra.mxu0 %v4557
  %4743 = vmatmul.bf16.gmra.mxu0 %v4196
  %v4744 = vpop.f32.mrf.mxu0
  %v4745 = vadd.f32 %v4731, %v4744
  %v4746 = vpop.f32.mrf.mxu0
  %v4747 = vadd.f32 %v4733, %v4746
  %4748 = vdwg.mxu0
  %4749 = vmatpush.bf16.msra.mxu0 %v4572
  %4750 = vmatpush.bf16.msra.mxu0 %v4571
  %4751 = vmatpush.bf16.msra.mxu0 %v4570
  %4752 = vmatpush.bf16.msra.mxu0 %v4569
  %4753 = vmatpush.bf16.msra.mxu0 %v4568
  %4754 = vmatpush.bf16.msra.mxu0 %v4567
  %4755 = vmatpush.bf16.msra.mxu0 %v4566
  %4756 = vmatpush.bf16.msra.mxu0 %v4565
  %4757 = vmatmul.bf16.gmra.mxu0 %v4197
  %v4758 = vpop.f32.mrf.mxu0
  %v4759 = vadd.f32 %v4745, %v4758
  %v4760 = vpop.f32.mrf.mxu0
  %v4761 = vadd.f32 %v4747, %v4760
  %4762 = vdwg.mxu0
  %4763 = vmatpush.bf16.msra.mxu0 %v4580
  %4764 = vmatpush.bf16.msra.mxu0 %v4579
  %4765 = vmatpush.bf16.msra.mxu0 %v4578
  %4766 = vmatpush.bf16.msra.mxu0 %v4577
  %4767 = vmatpush.bf16.msra.mxu0 %v4576
  %4768 = vmatpush.bf16.msra.mxu0 %v4575
  %4769 = vmatpush.bf16.msra.mxu0 %v4574
  %4770 = vmatpush.bf16.msra.mxu0 %v4573
  %4771 = vmatmul.bf16.gmra.mxu0 %v4198
  %v4772 = vpop.f32.mrf.mxu0
  %v4773 = vadd.f32 %v4759, %v4772
  %v4774 = vpop.f32.mrf.mxu0
  %v4775 = vadd.f32 %v4761, %v4774
  %4776 = vdwg.mxu0
  %4777 = vmatpush.bf16.msra.mxu0 %v4588
  %4778 = vmatpush.bf16.msra.mxu0 %v4587
  %4779 = vmatpush.bf16.msra.mxu0 %v4586
  %4780 = vmatpush.bf16.msra.mxu0 %v4585
  %4781 = vmatpush.bf16.msra.mxu0 %v4584
  %4782 = vmatpush.bf16.msra.mxu0 %v4583
  %4783 = vmatpush.bf16.msra.mxu0 %v4582
  %4784 = vmatpush.bf16.msra.mxu0 %v4581
  %4785 = vmatmul.bf16.gmra.mxu0 %v4199
  %v4786 = vpop.f32.mrf.mxu0
  %v4787 = vadd.f32 %v4773, %v4786
  %v4788 = vpop.f32.mrf.mxu0
  %v4789 = vadd.f32 %v4775, %v4788
  %4790 = vdwg.mxu0
  %4791 = vmatpush.bf16.msra.mxu0 %v4596
  %4792 = vmatpush.bf16.msra.mxu0 %v4595
  %4793 = vmatpush.bf16.msra.mxu0 %v4594
  %4794 = vmatpush.bf16.msra.mxu0 %v4593
  %4795 = vmatpush.bf16.msra.mxu0 %v4592
  %4796 = vmatpush.bf16.msra.mxu0 %v4591
  %4797 = vmatpush.bf16.msra.mxu0 %v4590
  %4798 = vmatpush.bf16.msra.mxu0 %v4589
  %4799 = vmatmul.bf16.gmra.mxu0 %v4200
  %v4800 = vpop.f32.mrf.mxu0
  %v4801 = vadd.f32 %v4787, %v4800
  %v4802 = vpop.f32.mrf.mxu0
  %v4803 = vadd.f32 %v4789, %v4802
  %4804 = vdwg.mxu0
  %4805 = vmatpush.bf16.msra.mxu0 %v4604
  %4806 = vmatpush.bf16.msra.mxu0 %v4603
  %4807 = vmatpush.bf16.msra.mxu0 %v4602
  %4808 = vmatpush.bf16.msra.mxu0 %v4601
  %4809 = vmatpush.bf16.msra.mxu0 %v4600
  %4810 = vmatpush.bf16.msra.mxu0 %v4599
  %4811 = vmatpush.bf16.msra.mxu0 %v4598
  %4812 = vmatpush.bf16.msra.mxu0 %v4597
  %4813 = vmatmul.bf16.gmra.mxu0 %v4201
  %v4814 = vpop.f32.mrf.mxu0
  %v4815 = vadd.f32 %v4801, %v4814
  %v4816 = vpop.f32.mrf.mxu0
  %v4817 = vadd.f32 %v4803, %v4816
  %4818 = vdwg.mxu0
  %4819 = vmatpush.bf16.msra.mxu0 %v4612
  %4820 = vmatpush.bf16.msra.mxu0 %v4611
  %4821 = vmatpush.bf16.msra.mxu0 %v4610
  %4822 = vmatpush.bf16.msra.mxu0 %v4609
  %4823 = vmatpush.bf16.msra.mxu0 %v4608
  %4824 = vmatpush.bf16.msra.mxu0 %v4607
  %4825 = vmatpush.bf16.msra.mxu0 %v4606
  %4826 = vmatpush.bf16.msra.mxu0 %v4605
  %4827 = vmatmul.bf16.gmra.mxu0 %v4202
  %v4828 = vpop.f32.mrf.mxu0
  %v4829 = vadd.f32 %v4815, %v4828
  %v4830 = vpop.f32.mrf.mxu0
  %v4831 = vadd.f32 %v4817, %v4830
  %4832 = vdwg.mxu0
  %vm4833 = vcmask 64512
  %4834 = vst.msk [vmem:[%s6] sm:$0xff] %vm4833, %v4829
  %4835 = vst.msk [vmem:[%s6 + $0x8] sm:$0xff] %vm4833, %v4831
  // Predicated region
  $region26: #{ofenet_forward.1} parent=0 // pred_check
    _
  $region27: #{ofenet_forward.1} parent=0 // pred_check_branch
    %4837 = sbr.rel (0) target = $region29
  $region28: #{ofenet_forward.1} parent=0 // pred_region
    _
  $region29: #{ofenet_forward.1} parent=0 // pred_fallthru
    _
  // Predicated region
  $region30: #{ofenet_forward.1} parent=0 // pred_check
    _
  $region31: #{ofenet_forward.1} parent=0 // pred_check_branch
    %4839 = sbr.rel (0) target = $region33
  $region32: #{ofenet_forward.1} parent=0 // pred_region
    _
  $region33: #{ofenet_forward.1} parent=0 // pred_fallthru
    _

</llo_original>
